<compile_context>
chip_gen: v5e
topology: v5e:2x2
jax: 0.10.0
libtpu: 0.0.40
codegen_flags: <defaults>
</compile_context>

<pallas_src>
import functools

import jax
import jax.numpy as jnp
from jax.experimental import pallas as pl
from jax.experimental.pallas import tpu as pltpu

# ----------------------------- small synthetic config -----------------------------
BATCH = 2
IMG = 16          # config['image_res'] (scaled down)
IN_CH = 3
PATCH = 4         # patch_size (scaled down from 16)
VIT_DIM = 32      # vision_width / ViT embed_dim (scaled down from 768)
VIT_DEPTH = 2     # depth (scaled down from 12)
VIT_HEADS = 2
MLP_RATIO = 4

SEQ = 8
VOCAB = 64
MAX_POS = 16
TXT_DIM = 32      # BERT hidden_size (scaled down from 768)
TXT_LAYERS = 2
TXT_HEADS = 2

EMBED_DIM = 16    # config['embed_dim'] (projection dim)
TEMP = 0.07       # config['temp']

VMEM = pltpu.MemorySpace.VMEM
SMEM = pltpu.MemorySpace.SMEM


def _vspec():
    return pl.BlockSpec(memory_space=VMEM)


# ----------------------------- in-kernel helpers -----------------------------
def _ln(x, g, b, eps):
    x = x.astype(jnp.float32)
    mu = jnp.mean(x, axis=-1, keepdims=True)
    var = jnp.mean(jnp.square(x - mu), axis=-1, keepdims=True)
    return (x - mu) * jax.lax.rsqrt(var + eps) * g + b


def _mm(x, w, b=None):
    # bf16 operands on the MXU, f32 accumulation.
    y = jnp.dot(x.astype(jnp.bfloat16), w.astype(jnp.bfloat16),
                preferred_element_type=jnp.float32)
    if b is not None:
        y = y + b
    return y


def _attn(x, wqkv_ref, bqkv_ref, wproj_ref, li, heads, bias, scale):
    """Multi-head self-attention on a (S, D) slab (one batch element / grid step).

    Per-head Q/K/V/proj weights are leading-axis slices of stacked weight refs
    (free), and the output projection is accumulated per head, so there is no
    minor-dim column slicing and no concatenation anywhere.
    bias: None (ViT) or a (1, S) additive key mask (BERT), broadcast in-kernel.
    """
    base = li * 3 * heads
    out = None
    for h in range(heads):                                                        # static unroll
        q = _mm(x, wqkv_ref[base + h], bqkv_ref[base + h])                        # (S, dh)
        k = _mm(x, wqkv_ref[base + heads + h], bqkv_ref[base + heads + h])
        v = _mm(x, wqkv_ref[base + 2 * heads + h], bqkv_ref[base + 2 * heads + h])
        s = jax.lax.dot_general(q.astype(jnp.bfloat16), k.astype(jnp.bfloat16),
                                (((1,), (1,)), ((), ())),
                                preferred_element_type=jnp.float32) * scale       # (S, S)
        if bias is not None:
            s = s + bias
        s = s - jnp.max(s, axis=-1, keepdims=True)
        p = jnp.exp(s)
        p = p * pl.reciprocal(jnp.sum(p, axis=-1, keepdims=True), approx=True)
        o = jnp.dot(p.astype(jnp.bfloat16), v.astype(jnp.bfloat16),
                    preferred_element_type=jnp.float32)                           # (S, dh)
        ph = _mm(o, wproj_ref[li * heads + h])                                    # (S, D)
        out = ph if out is None else out + ph
    return out


# ----------------------------- fused tower kernels -----------------------------
def _vit_tower_kernel(patch_ref, pw, pb, cls_ref, pos_ref,
                      ln1g, ln1b, wqkv, bqkv, wproj, bproj,
                      ln2g, ln2b, wfc1, bfc1, wfc2, bfc2,
                      lnfg, lnfb, o_ref, *, depth, heads, eps):
    dh = wqkv.shape[-1]
    scale = float(dh) ** -0.5
    # patch-embed conv(k=P, stride=P) as a single matmul; cls prepend; pos add.
    pe = _mm(patch_ref[0], pw[...], pb[...])                            # (Np, D)
    x = jnp.concatenate([cls_ref[...], pe], axis=0) + pos_ref[...]      # (S, D) f32
    for li in range(depth):                                             # static unroll, all in VMEM
        h1 = _ln(x, ln1g[li], ln1b[li], eps)
        x = x + _attn(h1, wqkv, bqkv, wproj, li, heads, None, scale) + bproj[li]
        h2 = _ln(x, ln2g[li], ln2b[li], eps)
        # TODO(synk): PyTorch nn.GELU is exact (erf); tanh approximation used for Mosaic-safe lowering.
        m = jax.nn.gelu(_mm(h2, wfc1[li], bfc1[li]), approximate=True)
        x = x + _mm(m, wfc2[li], bfc2[li])
    # Final ViT LN applied to the CLS row only (only [:, 0, :] feeds the ITC head).
    o_ref[0] = _ln(x[0:1, :], lnfg[...], lnfb[...], eps)


def _bert_tower_kernel(we_ref, bias_ref, pos_ref, type_ref, embg, embb,
                       wqkv, bqkv, wao, bao, ln1g, ln1b,
                       winter, binter, wout, bout, ln2g, ln2b,
                       o_ref, *, layers, heads, eps):
    dh = wqkv.shape[-1]
    scale = float(dh) ** -0.5
    # embeddings: word + position + token-type(=0), then LN (dropout = identity at eval)
    x = we_ref[0].astype(jnp.float32) + pos_ref[...] + type_ref[...]    # (S, D)
    x = _ln(x, embg[...], embb[...], eps)
    bias = bias_ref[0]                                                  # (1, S) additive key mask
    for li in range(layers):                                            # static unroll, post-LN layers
        ao = _attn(x, wqkv, bqkv, wao, li, heads, bias, scale) + bao[li]
        x = _ln(x + ao, ln1g[li], ln1b[li], eps)
        it = jax.nn.gelu(_mm(x, winter[li], binter[li]), approximate=True)
        x = _ln(x + _mm(it, wout[li], bout[li]), ln2g[li], ln2b[li], eps)
    o_ref[0] = x[0:1, :]                                                # CLS row only


def _head_loss_kernel(icls_ref, vpw, vpb, tcls_ref, tpw, tpb, temp_ref, o_ref):
    # temp.clamp_(0.001, 0.5)
    temp = jnp.clip(temp_ref[0, 0], 0.001, 0.5)
    iv = _mm(icls_ref[...], vpw[...], vpb[...])                         # vision_proj -> (B, E)
    tv = _mm(tcls_ref[...], tpw[...], tpb[...])                         # text_proj   -> (B, E)
    # F.normalize(dim=-1) via rsqrt on the EUP (~ PyTorch's 1e-12 norm clamp)
    iv = iv * jax.lax.rsqrt(jnp.maximum(jnp.sum(iv * iv, axis=-1, keepdims=True), 1e-24))
    tv = tv * jax.lax.rsqrt(jnp.maximum(jnp.sum(tv * tv, axis=-1, keepdims=True), 1e-24))
    # single MXU dot; sim_t2i == sim_i2t.T so it is never recomputed.
    sim_i2t = jax.lax.dot_general(iv, tv, (((1,), (1,)), ((), ())),
                                  preferred_element_type=jnp.float32) / temp
    n = iv.shape[0]
    row = jax.lax.broadcasted_iota(jnp.int32, (n, n), 0)
    col = jax.lax.broadcasted_iota(jnp.int32, (n, n), 1)
    eye = (row == col).astype(jnp.float32)                              # sim_targets (identity)

    # loss_i2t: row-wise log-softmax of sim_i2t.
    m1 = jnp.max(sim_i2t, axis=1, keepdims=True)
    z1 = sim_i2t - m1
    ls_i2t = z1 - jnp.log(jnp.sum(jnp.exp(z1), axis=1, keepdims=True))
    loss_i2t = jnp.mean(-jnp.sum(ls_i2t * eye, axis=1, keepdims=True),
                        axis=0, keepdims=True)                          # (1, 1)

    # loss_t2i: diag of row-wise log-softmax of sim_i2t.T
    #         == diag of column-wise log-softmax of sim_i2t (no transpose needed).
    m0 = jnp.max(sim_i2t, axis=0, keepdims=True)
    z0 = sim_i2t - m0
    ls_t2i = z0 - jnp.log(jnp.sum(jnp.exp(z0), axis=0, keepdims=True))
    loss_t2i = jnp.mean(-jnp.sum(ls_t2i * eye, axis=0, keepdims=True),
                        axis=1, keepdims=True)                          # (1, 1)

    o_ref[...] = 0.5 * (loss_i2t + loss_t2i)


# ----------------------------- model forward (glue + fused kernels) -----------------------------
def vit_forward(p, image):
    """timm-style ViT, fully fused into ONE pallas_call gridded over batch; returns final-LN'd CLS."""
    b, c, h, w = image.shape
    gp = h // PATCH
    n_patch = gp * gp
    cpp = c * PATCH * PATCH
    # conv(k=P, stride=P) == patch unfold (pure reshape/transpose glue) + in-kernel matmul
    patches = image.reshape(b, c, gp, PATCH, gp, PATCH)
    patches = patches.transpose(0, 2, 4, 1, 3, 5).reshape(b, n_patch, cpp)

    cls_out = pl.pallas_call(
        functools.partial(_vit_tower_kernel, depth=VIT_DEPTH, heads=VIT_HEADS, eps=1e-6),
        out_shape=jax.ShapeDtypeStruct((b, 1, VIT_DIM), jnp.float32),
        grid=(b,),
        in_specs=[pl.BlockSpec((1, n_patch, cpp), lambda i: (i, 0, 0))] + [_vspec()] * 18,
        out_specs=pl.BlockSpec((1, 1, VIT_DIM), lambda i: (i, 0, 0)),
        compiler_params=pltpu.CompilerParams(dimension_semantics=("parallel",)),
    )(patches, p["patch_w"], p["patch_b"], p["cls"], p["pos"],
      p["ln1_g"], p["ln1_b"], p["wqkv"], p["bqkv"], p["wproj"], p["bproj"],
      p["ln2_g"], p["ln2_b"], p["wfc1"], p["bfc1"], p["wfc2"], p["bfc2"],
      p["lnf_g"], p["lnf_b"])
    return cls_out.reshape(b, VIT_DIM)


def bert_forward(p, input_ids, attention_mask):
    """BERT encoder (post-LN), fully fused into ONE pallas_call gridded over batch; returns CLS."""
    b, s = input_ids.shape
    we = jnp.take(p["word_emb"], input_ids, axis=0)                      # (B, S, D) gather (glue)
    # (B, 1, S) additive key-mask bias; broadcast inside the kernel (never (B*H, S, S)).
    mask_bias = ((1.0 - attention_mask.astype(jnp.float32)) * -10000.0).reshape(b, 1, s)

    cls_out = pl.pallas_call(
        functools.partial(_bert_tower_kernel, layers=TXT_LAYERS, heads=TXT_HEADS, eps=1e-12),
        out_shape=jax.ShapeDtypeStruct((b, 1, TXT_DIM), jnp.float32),
        grid=(b,),
        in_specs=[pl.BlockSpec((1, s, TXT_DIM), lambda i: (i, 0, 0)),
                  pl.BlockSpec((1, 1, s), lambda i: (i, 0, 0))] + [_vspec()] * 16,
        out_specs=pl.BlockSpec((1, 1, TXT_DIM), lambda i: (i, 0, 0)),
        compiler_params=pltpu.CompilerParams(dimension_semantics=("parallel",)),
    )(we, mask_bias, p["pos_emb"][:s], p["type_emb"][0:1],
      p["emb_ln_g"], p["emb_ln_b"],
      p["wqkv"], p["bqkv"], p["wao"], p["bao"], p["ln1_g"], p["ln1_b"],
      p["winter"], p["binter"], p["wout"], p["bout"], p["ln2_g"], p["ln2_b"])
    return cls_out.reshape(b, TXT_DIM)


def clip_forward(params, image, input_ids, attention_mask):
    img_cls = vit_forward(params["vit"], image)                          # (B, Dv), final-LN'd CLS
    txt_cls = bert_forward(params["bert"], input_ids, attention_mask)    # (B, Dt), CLS

    loss = pl.pallas_call(
        _head_loss_kernel,
        out_shape=jax.ShapeDtypeStruct((1, 1), jnp.float32),
        in_specs=[_vspec()] * 6 + [pl.BlockSpec(memory_space=SMEM)],
        out_specs=_vspec(),
    )(img_cls, params["vision_proj"]["w"], params["vision_proj"]["b"],
      txt_cls, params["text_proj"]["w"], params["text_proj"]["b"],
      params["temp"])
    return loss[0, 0]


# ----------------------------- deterministic parameter init (with one-time packing) -----------------------------
def init_params(key):
    kiter = iter(jax.random.split(key, 256))

    def nrm(shape, scale=0.02):
        return jax.random.normal(next(kiter), shape, jnp.float32) * scale

    def zeros(shape):
        return jnp.zeros(shape, jnp.float32)

    def ones(shape):
        return jnp.ones(shape, jnp.float32)

    # ----- ViT (timm-style, qkv_bias=True, pre-LN) -----
    D, H, L = VIT_DIM, VIT_HEADS, VIT_DEPTH
    dh, MD = D // H, MLP_RATIO * VIT_DIM
    n_patch = (IMG // PATCH) ** 2

    wqkv, bqkv, wproj = [], [], []
    bproj, ln1g, ln1b, ln2g, ln2b = [], [], [], [], []
    wfc1, bfc1, wfc2, bfc2 = [], [], [], []
    for _ in range(L):
        # Fused (D, 3D) qkv linear, head-split ONCE here (hoisted out of the forward pass).
        w = nrm((D, 3 * D)).reshape(D, 3, H, dh).transpose(1, 2, 0, 3)   # (3, H, D, dh)
        b = zeros((1, 3 * D)).reshape(1, 3, H, dh).transpose(1, 2, 0, 3)  # (3, H, 1, dh)
        wqkv.append(w.reshape(3 * H, D, dh))
        bqkv.append(b.reshape(3 * H, 1, dh))
        wproj.append(nrm((D, D)).reshape(H, dh, D))                      # per-head output proj rows
        bproj.append(zeros((1, D)))
        ln1g.append(ones((1, D))); ln1b.append(zeros((1, D)))
        ln2g.append(ones((1, D))); ln2b.append(zeros((1, D)))
        wfc1.append(nrm((D, MD))); bfc1.append(zeros((1, MD)))
        wfc2.append(nrm((MD, D))); bfc2.append(zeros((1, D)))
    vit = {
        "patch_w": nrm((IN_CH * PATCH * PATCH, D)),
        "patch_b": zeros((1, D)),
        "cls": nrm((1, D)),
        "pos": nrm((n_patch + 1, D)),
        "wqkv": jnp.concatenate(wqkv, 0), "bqkv": jnp.concatenate(bqkv, 0),   # (L*3H, D, dh)
        "wproj": jnp.concatenate(wproj, 0), "bproj": jnp.stack(bproj, 0),     # (L*H, dh, D)
        "ln1_g": jnp.stack(ln1g, 0), "ln1_b": jnp.stack(ln1b, 0),
        "ln2_g": jnp.stack(ln2g, 0), "ln2_b": jnp.stack(ln2b, 0),
        "wfc1": jnp.stack(wfc1, 0), "bfc1": jnp.stack(bfc1, 0),
        "wfc2": jnp.stack(wfc2, 0), "bfc2": jnp.stack(bfc2, 0),
        "lnf_g": ones((1, D)), "lnf_b": zeros((1, D)),
    }

    # ----- BERT (post-LN) -----
    Dt, Ht, Lt = TXT_DIM, TXT_HEADS, TXT_LAYERS
    dht, MDt = Dt // Ht, 4 * TXT_DIM
    wq3, bq3, wao, bao = [], [], [], []
    l1g, l1b, l2g, l2b = [], [], [], []
    wint, bint, wout, bout = [], [], [], []
    for _ in range(Lt):
        # Separate q/k/v linears fused + head-split ONCE here (hoisted out of the forward pass).
        w = jnp.stack([nrm((Dt, Dt)), nrm((Dt, Dt)), nrm((Dt, Dt))], 0)
        b = jnp.stack([zeros((1, Dt))] * 3, 0)
        wq3.append(w.reshape(3, Dt, Ht, dht).transpose(0, 2, 1, 3).reshape(3 * Ht, Dt, dht))
        bq3.append(b.reshape(3, 1, Ht, dht).transpose(0, 2, 1, 3).reshape(3 * Ht, 1, dht))
        wao.append(nrm((Dt, Dt)).reshape(Ht, dht, Dt))
        bao.append(zeros((1, Dt)))
        l1g.append(ones((1, Dt))); l1b.append(zeros((1, Dt)))
        wint.append(nrm((Dt, MDt))); bint.append(zeros((1, MDt)))
        wout.append(nrm((MDt, Dt))); bout.append(zeros((1, Dt)))
        l2g.append(ones((1, Dt))); l2b.append(zeros((1, Dt)))
    bert = {
        "word_emb": nrm((VOCAB, Dt)),
        "pos_emb": nrm((MAX_POS, Dt)),
        "type_emb": nrm((2, Dt)),
        "emb_ln_g": ones((1, Dt)), "emb_ln_b": zeros((1, Dt)),
        "wqkv": jnp.concatenate(wq3, 0), "bqkv": jnp.concatenate(bq3, 0),     # (L*3H, D, dh)
        "wao": jnp.concatenate(wao, 0), "bao": jnp.stack(bao, 0),             # (L*H, dh, D)
        "ln1_g": jnp.stack(l1g, 0), "ln1_b": jnp.stack(l1b, 0),
        "winter": jnp.stack(wint, 0), "binter": jnp.stack(bint, 0),
        "wout": jnp.stack(wout, 0), "bout": jnp.stack(bout, 0),
        "ln2_g": jnp.stack(l2g, 0), "ln2_b": jnp.stack(l2b, 0),
    }
    return {
        "vit": vit,
        "bert": bert,
        "vision_proj": {"w": nrm((VIT_DIM, EMBED_DIM)), "b": zeros((1, EMBED_DIM))},
        "text_proj": {"w": nrm((TXT_DIM, EMBED_DIM)), "b": zeros((1, EMBED_DIM))},
        "temp": jnp.full((1, 1), TEMP, jnp.float32),
    }


# ----------------------------- main -----------------------------
if __name__ == "__main__":
    key = jax.random.PRNGKey(0)
    pkey, imkey, idkey = jax.random.split(key, 3)
    params = init_params(pkey)

    image = jax.random.normal(imkey, (BATCH, IN_CH, IMG, IMG), jnp.float32)  # NCHW like PyTorch
    input_ids = jax.random.randint(idkey, (BATCH, SEQ), 0, VOCAB, dtype=jnp.int32)
    attention_mask = jnp.array([[1] * SEQ, [1] * (SEQ - 2) + [0] * 2], dtype=jnp.int32)

    # TODO(synk): pretrained DeiT / BERT checkpoint loading and the tokenizer are not translatable;
    # parameters are deterministic synthetic inits of the same structure.
    loss_itc = jax.jit(clip_forward)(params, image, input_ids, attention_mask)
    jax.block_until_ready(loss_itc)
    assert loss_itc.shape == () and bool(jnp.isfinite(loss_itc))
    print("KERNEL_OK")
</pallas_src>

<mosaic_0001>
module attributes {stable_mosaic.version = 11 : i64} {
  func.func @_head_loss_kernel(%arg0: memref<2x32xf32, #tpu.memory_space<vmem>>, %arg1: memref<32x16xf32, #tpu.memory_space<vmem>>, %arg2: memref<1x16xf32, #tpu.memory_space<vmem>>, %arg3: memref<2x32xf32, #tpu.memory_space<vmem>>, %arg4: memref<32x16xf32, #tpu.memory_space<vmem>>, %arg5: memref<1x16xf32, #tpu.memory_space<vmem>>, %arg6: memref<1x1xf32, #tpu.memory_space<smem>>, %arg7: memref<1x1xf32, #tpu.memory_space<vmem>>) attributes {dimension_semantics = [], scalar_prefetch = 0 : i64, scratch_operands = 0 : i64, tpu.core_type = #tpu.core_type<tc>} {
    %c0 = arith.constant 0 : index
    %c0_0 = arith.constant 0 : index
    %0 = memref.load %arg6[%c0, %c0_0] : memref<1x1xf32, #tpu.memory_space<smem>>
    %cst = arith.constant 1.000000e-03 : f32
    %cst_1 = arith.constant 5.000000e-01 : f32
    %1 = arith.maximumf %cst, %0 : f32
    %2 = arith.minimumf %cst_1, %1 : f32
    %c0_2 = arith.constant 0 : index
    %c0_3 = arith.constant 0 : index
    %3 = vector.load %arg0[%c0_2, %c0_3] : memref<2x32xf32, #tpu.memory_space<vmem>>, vector<2x32xf32>
    %c0_4 = arith.constant 0 : index
    %c0_5 = arith.constant 0 : index
    %4 = vector.load %arg1[%c0_4, %c0_5] : memref<32x16xf32, #tpu.memory_space<vmem>>, vector<32x16xf32>
    %c0_6 = arith.constant 0 : index
    %c0_7 = arith.constant 0 : index
    %5 = vector.load %arg2[%c0_6, %c0_7] : memref<1x16xf32, #tpu.memory_space<vmem>>, vector<1x16xf32>
    %6 = arith.truncf %3 : vector<2x32xf32> to vector<2x32xbf16>
    %7 = arith.truncf %4 : vector<32x16xf32> to vector<32x16xbf16>
    %cst_8 = arith.constant dense<0.000000e+00> : vector<2x16xf32>
    %8 = tpu.matmul %6, %7, %cst_8 {dimension_numbers = #tpu.dot_dimension_numbers<[1], [0], [0], [1], [0, 0, 1, 1], [], []>} : vector<2x32xbf16>, vector<32x16xbf16>, vector<2x16xf32> -> vector<2x16xf32>
    %9 = vector.broadcast %5 : vector<1x16xf32> to vector<2x16xf32>
    %10 = arith.addf %8, %9 : vector<2x16xf32>
    %c0_9 = arith.constant 0 : index
    %c0_10 = arith.constant 0 : index
    %11 = vector.load %arg3[%c0_9, %c0_10] : memref<2x32xf32, #tpu.memory_space<vmem>>, vector<2x32xf32>
    %c0_11 = arith.constant 0 : index
    %c0_12 = arith.constant 0 : index
    %12 = vector.load %arg4[%c0_11, %c0_12] : memref<32x16xf32, #tpu.memory_space<vmem>>, vector<32x16xf32>
    %c0_13 = arith.constant 0 : index
    %c0_14 = arith.constant 0 : index
    %13 = vector.load %arg5[%c0_13, %c0_14] : memref<1x16xf32, #tpu.memory_space<vmem>>, vector<1x16xf32>
    %14 = arith.truncf %11 : vector<2x32xf32> to vector<2x32xbf16>
    %15 = arith.truncf %12 : vector<32x16xf32> to vector<32x16xbf16>
    %cst_15 = arith.constant dense<0.000000e+00> : vector<2x16xf32>
    %16 = tpu.matmul %14, %15, %cst_15 {dimension_numbers = #tpu.dot_dimension_numbers<[1], [0], [0], [1], [0, 0, 1, 1], [], []>} : vector<2x32xbf16>, vector<32x16xbf16>, vector<2x16xf32> -> vector<2x16xf32>
    %17 = vector.broadcast %13 : vector<1x16xf32> to vector<2x16xf32>
    %18 = arith.addf %16, %17 : vector<2x16xf32>
    %19 = arith.mulf %10, %10 : vector<2x16xf32>
    %cst_16 = arith.constant dense<0.000000e+00> : vector<2xf32>
    %20 = vector.multi_reduction <add>, %19, %cst_16 [1] : vector<2x16xf32> to vector<2xf32>
    %21 = vector.shape_cast %20 : vector<2xf32> to vector<2x1xf32>
    %cst_17 = arith.constant 1.000000e-24 : f32
    %22 = vector.broadcast %cst_17 : f32 to vector<2x1xf32>
    %23 = arith.maximumf %21, %22 : vector<2x1xf32>
    %24 = math.rsqrt %23 : vector<2x1xf32>
    %25 = vector.broadcast %24 : vector<2x1xf32> to vector<2x16xf32>
    %26 = arith.mulf %10, %25 : vector<2x16xf32>
    %27 = arith.mulf %18, %18 : vector<2x16xf32>
    %cst_18 = arith.constant dense<0.000000e+00> : vector<2xf32>
    %28 = vector.multi_reduction <add>, %27, %cst_18 [1] : vector<2x16xf32> to vector<2xf32>
    %29 = vector.shape_cast %28 : vector<2xf32> to vector<2x1xf32>
    %cst_19 = arith.constant 1.000000e-24 : f32
    %30 = vector.broadcast %cst_19 : f32 to vector<2x1xf32>
    %31 = arith.maximumf %29, %30 : vector<2x1xf32>
    %32 = math.rsqrt %31 : vector<2x1xf32>
    %33 = vector.broadcast %32 : vector<2x1xf32> to vector<2x16xf32>
    %34 = arith.mulf %18, %33 : vector<2x16xf32>
    %cst_20 = arith.constant dense<0.000000e+00> : vector<2x2xf32>
    %35 = tpu.matmul %26, %34, %cst_20 {dimension_numbers = #tpu.dot_dimension_numbers<[1], [1], [0], [0], [0, 0, 1, 0], [], []>} : vector<2x16xf32>, vector<2x16xf32>, vector<2x2xf32> -> vector<2x2xf32>
    %36 = vector.broadcast %2 : f32 to vector<2x2xf32>
    %37 = arith.divf %35, %36 : vector<2x2xf32>
    %38 = tpu.iota {dimensions = array<i32: 0>} : vector<2x2xi32>
    %39 = tpu.iota {dimensions = array<i32: 1>} : vector<2x2xi32>
    %40 = arith.cmpi eq, %38, %39 : vector<2x2xi32>
    %41 = arith.extui %40 : vector<2x2xi1> to vector<2x2xi32>
    %42 = arith.sitofp %41 : vector<2x2xi32> to vector<2x2xf32>
    %cst_21 = arith.constant dense<0xFF800000> : vector<2xf32>
    %43 = vector.multi_reduction <maximumf>, %37, %cst_21 [1] : vector<2x2xf32> to vector<2xf32>
    %44 = vector.shape_cast %43 : vector<2xf32> to vector<2x1xf32>
    %45 = vector.broadcast %44 : vector<2x1xf32> to vector<2x2xf32>
    %46 = arith.subf %37, %45 : vector<2x2xf32>
    %47 = math.exp %46 : vector<2x2xf32>
    %cst_22 = arith.constant dense<0.000000e+00> : vector<2xf32>
    %48 = vector.multi_reduction <add>, %47, %cst_22 [1] : vector<2x2xf32> to vector<2xf32>
    %49 = vector.shape_cast %48 : vector<2xf32> to vector<2x1xf32>
    %50 = math.log %49 : vector<2x1xf32>
    %51 = vector.broadcast %50 : vector<2x1xf32> to vector<2x2xf32>
    %52 = arith.subf %46, %51 : vector<2x2xf32>
    %53 = arith.mulf %52, %42 : vector<2x2xf32>
    %cst_23 = arith.constant dense<0.000000e+00> : vector<2xf32>
    %54 = vector.multi_reduction <add>, %53, %cst_23 [1] : vector<2x2xf32> to vector<2xf32>
    %55 = vector.shape_cast %54 : vector<2xf32> to vector<2x1xf32>
    %cst_24 = arith.constant 0.000000e+00 : f32
    %56 = vector.broadcast %cst_24 : f32 to vector<2x1xf32>
    %57 = arith.subf %56, %55 : vector<2x1xf32>
    %cst_25 = arith.constant dense<0.000000e+00> : vector<1xf32>
    %58 = vector.multi_reduction <add>, %57, %cst_25 [0] : vector<2x1xf32> to vector<1xf32>
    %59 = vector.shape_cast %58 : vector<1xf32> to vector<1x1xf32>
    %cst_26 = arith.constant 2.000000e+00 : f32
    %60 = vector.broadcast %cst_26 : f32 to vector<1x1xf32>
    %61 = arith.divf %59, %60 : vector<1x1xf32>
    %cst_27 = arith.constant dense<0xFF800000> : vector<2xf32>
    %62 = vector.multi_reduction <maximumf>, %37, %cst_27 [0] : vector<2x2xf32> to vector<2xf32>
    %63 = vector.shape_cast %62 : vector<2xf32> to vector<1x2xf32>
    %64 = vector.broadcast %63 : vector<1x2xf32> to vector<2x2xf32>
    %65 = arith.subf %37, %64 : vector<2x2xf32>
    %66 = math.exp %65 : vector<2x2xf32>
    %cst_28 = arith.constant dense<0.000000e+00> : vector<2xf32>
    %67 = vector.multi_reduction <add>, %66, %cst_28 [0] : vector<2x2xf32> to vector<2xf32>
    %68 = vector.shape_cast %67 : vector<2xf32> to vector<1x2xf32>
    %69 = math.log %68 : vector<1x2xf32>
    %70 = vector.broadcast %69 : vector<1x2xf32> to vector<2x2xf32>
    %71 = arith.subf %65, %70 : vector<2x2xf32>
    %72 = arith.mulf %71, %42 : vector<2x2xf32>
    %cst_29 = arith.constant dense<0.000000e+00> : vector<2xf32>
    %73 = vector.multi_reduction <add>, %72, %cst_29 [0] : vector<2x2xf32> to vector<2xf32>
    %74 = vector.shape_cast %73 : vector<2xf32> to vector<1x2xf32>
    %cst_30 = arith.constant 0.000000e+00 : f32
    %75 = vector.broadcast %cst_30 : f32 to vector<1x2xf32>
    %76 = arith.subf %75, %74 : vector<1x2xf32>
    %cst_31 = arith.constant dense<0.000000e+00> : vector<1xf32>
    %77 = vector.multi_reduction <add>, %76, %cst_31 [1] : vector<1x2xf32> to vector<1xf32>
    %78 = vector.shape_cast %77 : vector<1xf32> to vector<1x1xf32>
    %cst_32 = arith.constant 2.000000e+00 : f32
    %79 = vector.broadcast %cst_32 : f32 to vector<1x1xf32>
    %80 = arith.divf %78, %79 : vector<1x1xf32>
    %81 = arith.addf %61, %80 : vector<1x1xf32>
    %cst_33 = arith.constant 5.000000e-01 : f32
    %82 = vector.broadcast %cst_33 : f32 to vector<1x1xf32>
    %83 = arith.mulf %82, %81 : vector<1x1xf32>
    %c0_34 = arith.constant 0 : index
    %c0_35 = arith.constant 0 : index
    %84 = vector.load %arg7[%c0_34, %c0_35] : memref<1x1xf32, #tpu.memory_space<vmem>>, vector<1x1xf32>
    tpu.vector_store %arg7[%c0_34, %c0_35], %83 {strides = array<i32>} : memref<1x1xf32, #tpu.memory_space<vmem>>, vector<1x1xf32>,
    return
  }
}

module attributes {stable_mosaic.version = 11 : i64} {
  func.func @_vit_tower_kernel(%arg0: i32, %arg1: memref<1x16x48xf32, #tpu.memory_space<vmem>>, %arg2: memref<48x32xf32, #tpu.memory_space<vmem>>, %arg3: memref<1x32xf32, #tpu.memory_space<vmem>>, %arg4: memref<1x32xf32, #tpu.memory_space<vmem>>, %arg5: memref<17x32xf32, #tpu.memory_space<vmem>>, %arg6: memref<2x1x32xf32, #tpu.memory_space<vmem>>, %arg7: memref<2x1x32xf32, #tpu.memory_space<vmem>>, %arg8: memref<12x32x16xf32, #tpu.memory_space<vmem>>, %arg9: memref<12x1x16xf32, #tpu.memory_space<vmem>>, %arg10: memref<4x16x32xf32, #tpu.memory_space<vmem>>, %arg11: memref<2x1x32xf32, #tpu.memory_space<vmem>>, %arg12: memref<2x1x32xf32, #tpu.memory_space<vmem>>, %arg13: memref<2x1x32xf32, #tpu.memory_space<vmem>>, %arg14: memref<2x32x128xf32, #tpu.memory_space<vmem>>, %arg15: memref<2x1x128xf32, #tpu.memory_space<vmem>>, %arg16: memref<2x128x32xf32, #tpu.memory_space<vmem>>, %arg17: memref<2x1x32xf32, #tpu.memory_space<vmem>>, %arg18: memref<1x32xf32, #tpu.memory_space<vmem>>, %arg19: memref<1x32xf32, #tpu.memory_space<vmem>>, %arg20: memref<1x1x32xf32, #tpu.memory_space<vmem>>) attributes {dimension_semantics = [#tpu.dimension_semantics<parallel>], iteration_bounds = array<i64: 2>, scalar_prefetch = 0 : i64, scratch_operands = 0 : i64, tpu.core_type = #tpu.core_type<tc>, window_params = [{transform_indices = @transform_0, window_bounds = array<i64: 1, 16, 48>}, {pipeline_mode = #tpu.pipeline_mode<synchronous>, transform_indices = @transform_1, window_bounds = array<i64: 48, 32>}, {pipeline_mode = #tpu.pipeline_mode<synchronous>, transform_indices = @transform_2, window_bounds = array<i64: 1, 32>}, {pipeline_mode = #tpu.pipeline_mode<synchronous>, transform_indices = @transform_3, window_bounds = array<i64: 1, 32>}, {pipeline_mode = #tpu.pipeline_mode<synchronous>, transform_indices = @transform_4, window_bounds = array<i64: 17, 32>}, {pipeline_mode = #tpu.pipeline_mode<synchronous>, transform_indices = @transform_5, window_bounds = array<i64: 2, 1, 32>}, {pipeline_mode = #tpu.pipeline_mode<synchronous>, transform_indices = @transform_6, window_bounds = array<i64: 2, 1, 32>}, {pipeline_mode = #tpu.pipeline_mode<synchronous>, transform_indices = @transform_7, window_bounds = array<i64: 12, 32, 16>}, {pipeline_mode = #tpu.pipeline_mode<synchronous>, transform_indices = @transform_8, window_bounds = array<i64: 12, 1, 16>}, {pipeline_mode = #tpu.pipeline_mode<synchronous>, transform_indices = @transform_9, window_bounds = array<i64: 4, 16, 32>}, {pipeline_mode = #tpu.pipeline_mode<synchronous>, transform_indices = @transform_10, window_bounds = array<i64: 2, 1, 32>}, {pipeline_mode = #tpu.pipeline_mode<synchronous>, transform_indices = @transform_11, window_bounds = array<i64: 2, 1, 32>}, {pipeline_mode = #tpu.pipeline_mode<synchronous>, transform_indices = @transform_12, window_bounds = array<i64: 2, 1, 32>}, {pipeline_mode = #tpu.pipeline_mode<synchronous>, transform_indices = @transform_13, window_bounds = array<i64: 2, 32, 128>}, {pipeline_mode = #tpu.pipeline_mode<synchronous>, transform_indices = @transform_14, window_bounds = array<i64: 2, 1, 128>}, {pipeline_mode = #tpu.pipeline_mode<synchronous>, transform_indices = @transform_15, window_bounds = array<i64: 2, 128, 32>}, {pipeline_mode = #tpu.pipeline_mode<synchronous>, transform_indices = @transform_16, window_bounds = array<i64: 2, 1, 32>}, {pipeline_mode = #tpu.pipeline_mode<synchronous>, transform_indices = @transform_17, window_bounds = array<i64: 1, 32>}, {pipeline_mode = #tpu.pipeline_mode<synchronous>, transform_indices = @transform_18, window_bounds = array<i64: 1, 32>}, {transform_indices = @transform_19, window_bounds = array<i64: 1, 1, 32>}]} {
    %c0 = arith.constant 0 : index
    %c0_0 = arith.constant 0 : index
    %c0_1 = arith.constant 0 : index
    %0 = vector.load %arg1[%c0, %c0_0, %c0_1] : memref<1x16x48xf32, #tpu.memory_space<vmem>>, vector<1x16x48xf32>
    %1 = vector.shape_cast %0 : vector<1x16x48xf32> to vector<16x48xf32>
    %c0_2 = arith.constant 0 : index
    %c0_3 = arith.constant 0 : index
    %2 = vector.load %arg2[%c0_2, %c0_3] : memref<48x32xf32, #tpu.memory_space<vmem>>, vector<48x32xf32>
    %c0_4 = arith.constant 0 : index
    %c0_5 = arith.constant 0 : index
    %3 = vector.load %arg3[%c0_4, %c0_5] : memref<1x32xf32, #tpu.memory_space<vmem>>, vector<1x32xf32>
    %4 = arith.truncf %1 : vector<16x48xf32> to vector<16x48xbf16>
    %5 = arith.truncf %2 : vector<48x32xf32> to vector<48x32xbf16>
    %cst = arith.constant dense<0.000000e+00> : vector<16x32xf32>
    %6 = tpu.matmul %4, %5, %cst {dimension_numbers = #tpu.dot_dimension_numbers<[1], [0], [0], [1], [0, 0, 1, 1], [], []>} : vector<16x48xbf16>, vector<48x32xbf16>, vector<16x32xf32> -> vector<16x32xf32>
    %7 = vector.broadcast %3 : vector<1x32xf32> to vector<16x32xf32>
    %8 = arith.addf %6, %7 : vector<16x32xf32>
    %c0_6 = arith.constant 0 : index
    %c0_7 = arith.constant 0 : index
    %9 = vector.load %arg4[%c0_6, %c0_7] : memref<1x32xf32, #tpu.memory_space<vmem>>, vector<1x32xf32>
    %10 = tpu.concatenate %9, %8 in 0 : vector<1x32xf32>, vector<16x32xf32> -> vector<17x32xf32>
    %c0_8 = arith.constant 0 : index
    %c0_9 = arith.constant 0 : index
    %11 = vector.load %arg5[%c0_8, %c0_9] : memref<17x32xf32, #tpu.memory_space<vmem>>, vector<17x32xf32>
    %12 = arith.addf %10, %11 : vector<17x32xf32>
    %c0_10 = arith.constant 0 : index
    %c0_11 = arith.constant 0 : index
    %c0_12 = arith.constant 0 : index
    %13 = vector.load %arg6[%c0_10, %c0_11, %c0_12] : memref<2x1x32xf32, #tpu.memory_space<vmem>>, vector<1x1x32xf32>
    %14 = vector.shape_cast %13 : vector<1x1x32xf32> to vector<1x32xf32>
    %c0_13 = arith.constant 0 : index
    %c0_14 = arith.constant 0 : index
    %c0_15 = arith.constant 0 : index
    %15 = vector.load %arg7[%c0_13, %c0_14, %c0_15] : memref<2x1x32xf32, #tpu.memory_space<vmem>>, vector<1x1x32xf32>
    %16 = vector.shape_cast %15 : vector<1x1x32xf32> to vector<1x32xf32>
    %cst_16 = arith.constant dense<0.000000e+00> : vector<17xf32>
    %17 = vector.multi_reduction <add>, %12, %cst_16 [1] : vector<17x32xf32> to vector<17xf32>
    %18 = vector.shape_cast %17 : vector<17xf32> to vector<17x1xf32>
    %cst_17 = arith.constant 3.200000e+01 : f32
    %19 = vector.broadcast %cst_17 : f32 to vector<17x1xf32>
    %20 = arith.divf %18, %19 : vector<17x1xf32>
    %21 = vector.broadcast %20 : vector<17x1xf32> to vector<17x32xf32>
    %22 = arith.subf %12, %21 : vector<17x32xf32>
    %23 = arith.mulf %22, %22 : vector<17x32xf32>
    %cst_18 = arith.constant dense<0.000000e+00> : vector<17xf32>
    %24 = vector.multi_reduction <add>, %23, %cst_18 [1] : vector<17x32xf32> to vector<17xf32>
    %25 = vector.shape_cast %24 : vector<17xf32> to vector<17x1xf32>
    %cst_19 = arith.constant 3.200000e+01 : f32
    %26 = vector.broadcast %cst_19 : f32 to vector<17x1xf32>
    %27 = arith.divf %25, %26 : vector<17x1xf32>
    %28 = vector.broadcast %20 : vector<17x1xf32> to vector<17x32xf32>
    %29 = arith.subf %12, %28 : vector<17x32xf32>
    %cst_20 = arith.constant 9.99999997E-7 : f32
    %30 = vector.broadcast %cst_20 : f32 to vector<17x1xf32>
    %31 = arith.addf %27, %30 : vector<17x1xf32>
    %32 = math.rsqrt %31 : vector<17x1xf32>
    %33 = vector.broadcast %32 : vector<17x1xf32> to vector<17x32xf32>
    %34 = arith.mulf %29, %33 : vector<17x32xf32>
    %35 = vector.broadcast %14 : vector<1x32xf32> to vector<17x32xf32>
    %36 = arith.mulf %34, %35 : vector<17x32xf32>
    %37 = vector.broadcast %16 : vector<1x32xf32> to vector<17x32xf32>
    %38 = arith.addf %36, %37 : vector<17x32xf32>
    %c0_21 = arith.constant 0 : index
    %c0_22 = arith.constant 0 : index
    %c0_23 = arith.constant 0 : index
    %39 = vector.load %arg8[%c0_21, %c0_22, %c0_23] : memref<12x32x16xf32, #tpu.memory_space<vmem>>, vector<1x32x16xf32>
    %40 = vector.shape_cast %39 : vector<1x32x16xf32> to vector<32x16xf32>
    %c0_24 = arith.constant 0 : index
    %c0_25 = arith.constant 0 : index
    %c0_26 = arith.constant 0 : index
    %41 = vector.load %arg9[%c0_24, %c0_25, %c0_26] : memref<12x1x16xf32, #tpu.memory_space<vmem>>, vector<1x1x16xf32>
    %42 = vector.shape_cast %41 : vector<1x1x16xf32> to vector<1x16xf32>
    %43 = arith.truncf %38 : vector<17x32xf32> to vector<17x32xbf16>
    %44 = arith.truncf %40 : vector<32x16xf32> to vector<32x16xbf16>
    %cst_27 = arith.constant dense<0.000000e+00> : vector<17x16xf32>
    %45 = tpu.matmul %43, %44, %cst_27 {dimension_numbers = #tpu.dot_dimension_numbers<[1], [0], [0], [1], [0, 0, 1, 1], [], []>} : vector<17x32xbf16>, vector<32x16xbf16>, vector<17x16xf32> -> vector<17x16xf32>
    %46 = vector.broadcast %42 : vector<1x16xf32> to vector<17x16xf32>
    %47 = arith.addf %45, %46 : vector<17x16xf32>
    %c2 = arith.constant 2 : index
    %c0_28 = arith.constant 0 : index
    %c0_29 = arith.constant 0 : index
    %48 = vector.load %arg8[%c2, %c0_28, %c0_29] : memref<12x32x16xf32, #tpu.memory_space<vmem>>, vector<1x32x16xf32>
    %49 = vector.shape_cast %48 : vector<1x32x16xf32> to vector<32x16xf32>
    %c2_30 = arith.constant 2 : index
    %c0_31 = arith.constant 0 : index
    %c0_32 = arith.constant 0 : index
    %50 = vector.load %arg9[%c2_30, %c0_31, %c0_32] : memref<12x1x16xf32, #tpu.memory_space<vmem>>, vector<1x1x16xf32>
    %51 = vector.shape_cast %50 : vector<1x1x16xf32> to vector<1x16xf32>
    %52 = arith.truncf %38 : vector<17x32xf32> to vector<17x32xbf16>
    %53 = arith.truncf %49 : vector<32x16xf32> to vector<32x16xbf16>
    %cst_33 = arith.constant dense<0.000000e+00> : vector<17x16xf32>
    %54 = tpu.matmul %52, %53, %cst_33 {dimension_numbers = #tpu.dot_dimension_numbers<[1], [0], [0], [1], [0, 0, 1, 1], [], []>} : vector<17x32xbf16>, vector<32x16xbf16>, vector<17x16xf32> -> vector<17x16xf32>
    %55 = vector.broadcast %51 : vector<1x16xf32> to vector<17x16xf32>
    %56 = arith.addf %54, %55 : vector<17x16xf32>
    %c4 = arith.constant 4 : index
    %c0_34 = arith.constant 0 : index
    %c0_35 = arith.constant 0 : index
    %57 = vector.load %arg8[%c4, %c0_34, %c0_35] : memref<12x32x16xf32, #tpu.memory_space<vmem>>, vector<1x32x16xf32>
    %58 = vector.shape_cast %57 : vector<1x32x16xf32> to vector<32x16xf32>
    %c4_36 = arith.constant 4 : index
    %c0_37 = arith.constant 0 : index
    %c0_38 = arith.constant 0 : index
    %59 = vector.load %arg9[%c4_36, %c0_37, %c0_38] : memref<12x1x16xf32, #tpu.memory_space<vmem>>, vector<1x1x16xf32>
    %60 = vector.shape_cast %59 : vector<1x1x16xf32> to vector<1x16xf32>
    %61 = arith.truncf %38 : vector<17x32xf32> to vector<17x32xbf16>
    %62 = arith.truncf %58 : vector<32x16xf32> to vector<32x16xbf16>
    %cst_39 = arith.constant dense<0.000000e+00> : vector<17x16xf32>
    %63 = tpu.matmul %61, %62, %cst_39 {dimension_numbers = #tpu.dot_dimension_numbers<[1], [0], [0], [1], [0, 0, 1, 1], [], []>} : vector<17x32xbf16>, vector<32x16xbf16>, vector<17x16xf32> -> vector<17x16xf32>
    %64 = vector.broadcast %60 : vector<1x16xf32> to vector<17x16xf32>
    %65 = arith.addf %63, %64 : vector<17x16xf32>
    %66 = arith.truncf %47 : vector<17x16xf32> to vector<17x16xbf16>
    %67 = arith.truncf %56 : vector<17x16xf32> to vector<17x16xbf16>
    %cst_40 = arith.constant dense<0.000000e+00> : vector<17x17xf32>
    %68 = tpu.matmul %66, %67, %cst_40 {dimension_numbers = #tpu.dot_dimension_numbers<[1], [1], [0], [0], [0, 0, 1, 0], [], []>} : vector<17x16xbf16>, vector<17x16xbf16>, vector<17x17xf32> -> vector<17x17xf32>
    %cst_41 = arith.constant 2.500000e-01 : f32
    %69 = vector.broadcast %cst_41 : f32 to vector<17x17xf32>
    %70 = arith.mulf %68, %69 : vector<17x17xf32>
    %cst_42 = arith.constant dense<0xFF800000> : vector<17xf32>
    %71 = vector.multi_reduction <maximumf>, %70, %cst_42 [1] : vector<17x17xf32> to vector<17xf32>
    %72 = vector.shape_cast %71 : vector<17xf32> to vector<17x1xf32>
    %73 = vector.broadcast %72 : vector<17x1xf32> to vector<17x17xf32>
    %74 = arith.subf %70, %73 : vector<17x17xf32>
    %75 = math.exp %74 : vector<17x17xf32>
    %cst_43 = arith.constant dense<0.000000e+00> : vector<17xf32>
    %76 = vector.multi_reduction <add>, %75, %cst_43 [1] : vector<17x17xf32> to vector<17xf32>
    %77 = vector.shape_cast %76 : vector<17xf32> to vector<17x1xf32>
    %78 = tpu.reciprocal %77 {approx = true} : vector<17x1xf32> -> vector<17x1xf32>
    %79 = vector.broadcast %78 : vector<17x1xf32> to vector<17x17xf32>
    %80 = arith.mulf %75, %79 : vector<17x17xf32>
    %81 = arith.truncf %80 : vector<17x17xf32> to vector<17x17xbf16>
    %82 = arith.truncf %65 : vector<17x16xf32> to vector<17x16xbf16>
    %cst_44 = arith.constant dense<0.000000e+00> : vector<17x16xf32>
    %83 = tpu.matmul %81, %82, %cst_44 {dimension_numbers = #tpu.dot_dimension_numbers<[1], [0], [0], [1], [0, 0, 1, 1], [], []>} : vector<17x17xbf16>, vector<17x16xbf16>, vector<17x16xf32> -> vector<17x16xf32>
    %c0_45 = arith.constant 0 : index
    %c0_46 = arith.constant 0 : index
    %c0_47 = arith.constant 0 : index
    %84 = vector.load %arg10[%c0_45, %c0_46, %c0_47] : memref<4x16x32xf32, #tpu.memory_space<vmem>>, vector<1x16x32xf32>
    %85 = vector.shape_cast %84 : vector<1x16x32xf32> to vector<16x32xf32>
    %86 = arith.truncf %83 : vector<17x16xf32> to vector<17x16xbf16>
    %87 = arith.truncf %85 : vector<16x32xf32> to vector<16x32xbf16>
    %cst_48 = arith.constant dense<0.000000e+00> : vector<17x32xf32>
    %88 = tpu.matmul %86, %87, %cst_48 {dimension_numbers = #tpu.dot_dimension_numbers<[1], [0], [0], [1], [0, 0, 1, 1], [], []>} : vector<17x16xbf16>, vector<16x32xbf16>, vector<17x32xf32> -> vector<17x32xf32>
    %c1 = arith.constant 1 : index
    %c0_49 = arith.constant 0 : index
    %c0_50 = arith.constant 0 : index
    %89 = vector.load %arg8[%c1, %c0_49, %c0_50] : memref<12x32x16xf32, #tpu.memory_space<vmem>>, vector<1x32x16xf32>
    %90 = vector.shape_cast %89 : vector<1x32x16xf32> to vector<32x16xf32>
    %c1_51 = arith.constant 1 : index
    %c0_52 = arith.constant 0 : index
    %c0_53 = arith.constant 0 : index
    %91 = vector.load %arg9[%c1_51, %c0_52, %c0_53] : memref<12x1x16xf32, #tpu.memory_space<vmem>>, vector<1x1x16xf32>
    %92 = vector.shape_cast %91 : vector<1x1x16xf32> to vector<1x16xf32>
    %93 = arith.truncf %38 : vector<17x32xf32> to vector<17x32xbf16>
    %94 = arith.truncf %90 : vector<32x16xf32> to vector<32x16xbf16>
    %cst_54 = arith.constant dense<0.000000e+00> : vector<17x16xf32>
    %95 = tpu.matmul %93, %94, %cst_54 {dimension_numbers = #tpu.dot_dimension_numbers<[1], [0], [0], [1], [0, 0, 1, 1], [], []>} : vector<17x32xbf16>, vector<32x16xbf16>, vector<17x16xf32> -> vector<17x16xf32>
    %96 = vector.broadcast %92 : vector<1x16xf32> to vector<17x16xf32>
    %97 = arith.addf %95, %96 : vector<17x16xf32>
    %c3 = arith.constant 3 : index
    %c0_55 = arith.constant 0 : index
    %c0_56 = arith.constant 0 : index
    %98 = vector.load %arg8[%c3, %c0_55, %c0_56] : memref<12x32x16xf32, #tpu.memory_space<vmem>>, vector<1x32x16xf32>
    %99 = vector.shape_cast %98 : vector<1x32x16xf32> to vector<32x16xf32>
    %c3_57 = arith.constant 3 : index
    %c0_58 = arith.constant 0 : index
    %c0_59 = arith.constant 0 : index
    %100 = vector.load %arg9[%c3_57, %c0_58, %c0_59] : memref<12x1x16xf32, #tpu.memory_space<vmem>>, vector<1x1x16xf32>
    %101 = vector.shape_cast %100 : vector<1x1x16xf32> to vector<1x16xf32>
    %102 = arith.truncf %38 : vector<17x32xf32> to vector<17x32xbf16>
    %103 = arith.truncf %99 : vector<32x16xf32> to vector<32x16xbf16>
    %cst_60 = arith.constant dense<0.000000e+00> : vector<17x16xf32>
    %104 = tpu.matmul %102, %103, %cst_60 {dimension_numbers = #tpu.dot_dimension_numbers<[1], [0], [0], [1], [0, 0, 1, 1], [], []>} : vector<17x32xbf16>, vector<32x16xbf16>, vector<17x16xf32> -> vector<17x16xf32>
    %105 = vector.broadcast %101 : vector<1x16xf32> to vector<17x16xf32>
    %106 = arith.addf %104, %105 : vector<17x16xf32>
    %c5 = arith.constant 5 : index
    %c0_61 = arith.constant 0 : index
    %c0_62 = arith.constant 0 : index
    %107 = vector.load %arg8[%c5, %c0_61, %c0_62] : memref<12x32x16xf32, #tpu.memory_space<vmem>>, vector<1x32x16xf32>
    %108 = vector.shape_cast %107 : vector<1x32x16xf32> to vector<32x16xf32>
    %c5_63 = arith.constant 5 : index
    %c0_64 = arith.constant 0 : index
    %c0_65 = arith.constant 0 : index
    %109 = vector.load %arg9[%c5_63, %c0_64, %c0_65] : memref<12x1x16xf32, #tpu.memory_space<vmem>>, vector<1x1x16xf32>
    %110 = vector.shape_cast %109 : vector<1x1x16xf32> to vector<1x16xf32>
    %111 = arith.truncf %38 : vector<17x32xf32> to vector<17x32xbf16>
    %112 = arith.truncf %108 : vector<32x16xf32> to vector<32x16xbf16>
    %cst_66 = arith.constant dense<0.000000e+00> : vector<17x16xf32>
    %113 = tpu.matmul %111, %112, %cst_66 {dimension_numbers = #tpu.dot_dimension_numbers<[1], [0], [0], [1], [0, 0, 1, 1], [], []>} : vector<17x32xbf16>, vector<32x16xbf16>, vector<17x16xf32> -> vector<17x16xf32>
    %114 = vector.broadcast %110 : vector<1x16xf32> to vector<17x16xf32>
    %115 = arith.addf %113, %114 : vector<17x16xf32>
    %116 = arith.truncf %97 : vector<17x16xf32> to vector<17x16xbf16>
    %117 = arith.truncf %106 : vector<17x16xf32> to vector<17x16xbf16>
    %cst_67 = arith.constant dense<0.000000e+00> : vector<17x17xf32>
    %118 = tpu.matmul %116, %117, %cst_67 {dimension_numbers = #tpu.dot_dimension_numbers<[1], [1], [0], [0], [0, 0, 1, 0], [], []>} : vector<17x16xbf16>, vector<17x16xbf16>, vector<17x17xf32> -> vector<17x17xf32>
    %cst_68 = arith.constant 2.500000e-01 : f32
    %119 = vector.broadcast %cst_68 : f32 to vector<17x17xf32>
    %120 = arith.mulf %118, %119 : vector<17x17xf32>
    %cst_69 = arith.constant dense<0xFF800000> : vector<17xf32>
    %121 = vector.multi_reduction <maximumf>, %120, %cst_69 [1] : vector<17x17xf32> to vector<17xf32>
    %122 = vector.shape_cast %121 : vector<17xf32> to vector<17x1xf32>
    %123 = vector.broadcast %122 : vector<17x1xf32> to vector<17x17xf32>
    %124 = arith.subf %120, %123 : vector<17x17xf32>
    %125 = math.exp %124 : vector<17x17xf32>
    %cst_70 = arith.constant dense<0.000000e+00> : vector<17xf32>
    %126 = vector.multi_reduction <add>, %125, %cst_70 [1] : vector<17x17xf32> to vector<17xf32>
    %127 = vector.shape_cast %126 : vector<17xf32> to vector<17x1xf32>
    %128 = tpu.reciprocal %127 {approx = true} : vector<17x1xf32> -> vector<17x1xf32>
    %129 = vector.broadcast %128 : vector<17x1xf32> to vector<17x17xf32>
    %130 = arith.mulf %125, %129 : vector<17x17xf32>
    %131 = arith.truncf %130 : vector<17x17xf32> to vector<17x17xbf16>
    %132 = arith.truncf %115 : vector<17x16xf32> to vector<17x16xbf16>
    %cst_71 = arith.constant dense<0.000000e+00> : vector<17x16xf32>
    %133 = tpu.matmul %131, %132, %cst_71 {dimension_numbers = #tpu.dot_dimension_numbers<[1], [0], [0], [1], [0, 0, 1, 1], [], []>} : vector<17x17xbf16>, vector<17x16xbf16>, vector<17x16xf32> -> vector<17x16xf32>
    %c1_72 = arith.constant 1 : index
    %c0_73 = arith.constant 0 : index
    %c0_74 = arith.constant 0 : index
    %134 = vector.load %arg10[%c1_72, %c0_73, %c0_74] : memref<4x16x32xf32, #tpu.memory_space<vmem>>, vector<1x16x32xf32>
    %135 = vector.shape_cast %134 : vector<1x16x32xf32> to vector<16x32xf32>
    %136 = arith.truncf %133 : vector<17x16xf32> to vector<17x16xbf16>
    %137 = arith.truncf %135 : vector<16x32xf32> to vector<16x32xbf16>
    %cst_75 = arith.constant dense<0.000000e+00> : vector<17x32xf32>
    %138 = tpu.matmul %136, %137, %cst_75 {dimension_numbers = #tpu.dot_dimension_numbers<[1], [0], [0], [1], [0, 0, 1, 1], [], []>} : vector<17x16xbf16>, vector<16x32xbf16>, vector<17x32xf32> -> vector<17x32xf32>
    %139 = arith.addf %88, %138 : vector<17x32xf32>
    %140 = arith.addf %12, %139 : vector<17x32xf32>
    %c0_76 = arith.constant 0 : index
    %c0_77 = arith.constant 0 : index
    %c0_78 = arith.constant 0 : index
    %141 = vector.load %arg11[%c0_76, %c0_77, %c0_78] : memref<2x1x32xf32, #tpu.memory_space<vmem>>, vector<1x1x32xf32>
    %142 = vector.shape_cast %141 : vector<1x1x32xf32> to vector<1x32xf32>
    %143 = vector.broadcast %142 : vector<1x32xf32> to vector<17x32xf32>
    %144 = arith.addf %140, %143 : vector<17x32xf32>
    %c0_79 = arith.constant 0 : index
    %c0_80 = arith.constant 0 : index
    %c0_81 = arith.constant 0 : index
    %145 = vector.load %arg12[%c0_79, %c0_80, %c0_81] : memref<2x1x32xf32, #tpu.memory_space<vmem>>, vector<1x1x32xf32>
    %146 = vector.shape_cast %145 : vector<1x1x32xf32> to vector<1x32xf32>
    %c0_82 = arith.constant 0 : index
    %c0_83 = arith.constant 0 : index
    %c0_84 = arith.constant 0 : index
    %147 = vector.load %arg13[%c0_82, %c0_83, %c0_84] : memref<2x1x32xf32, #tpu.memory_space<vmem>>, vector<1x1x32xf32>
    %148 = vector.shape_cast %147 : vector<1x1x32xf32> to vector<1x32xf32>
    %cst_85 = arith.constant dense<0.000000e+00> : vector<17xf32>
    %149 = vector.multi_reduction <add>, %144, %cst_85 [1] : vector<17x32xf32> to vector<17xf32>
    %150 = vector.shape_cast %149 : vector<17xf32> to vector<17x1xf32>
    %cst_86 = arith.constant 3.200000e+01 : f32
    %151 = vector.broadcast %cst_86 : f32 to vector<17x1xf32>
    %152 = arith.divf %150, %151 : vector<17x1xf32>
    %153 = vector.broadcast %152 : vector<17x1xf32> to vector<17x32xf32>
    %154 = arith.subf %144, %153 : vector<17x32xf32>
    %155 = arith.mulf %154, %154 : vector<17x32xf32>
    %cst_87 = arith.constant dense<0.000000e+00> : vector<17xf32>
    %156 = vector.multi_reduction <add>, %155, %cst_87 [1] : vector<17x32xf32> to vector<17xf32>
    %157 = vector.shape_cast %156 : vector<17xf32> to vector<17x1xf32>
    %cst_88 = arith.constant 3.200000e+01 : f32
    %158 = vector.broadcast %cst_88 : f32 to vector<17x1xf32>
    %159 = arith.divf %157, %158 : vector<17x1xf32>
    %160 = vector.broadcast %152 : vector<17x1xf32> to vector<17x32xf32>
    %161 = arith.subf %144, %160 : vector<17x32xf32>
    %cst_89 = arith.constant 9.99999997E-7 : f32
    %162 = vector.broadcast %cst_89 : f32 to vector<17x1xf32>
    %163 = arith.addf %159, %162 : vector<17x1xf32>
    %164 = math.rsqrt %163 : vector<17x1xf32>
    %165 = vector.broadcast %164 : vector<17x1xf32> to vector<17x32xf32>
    %166 = arith.mulf %161, %165 : vector<17x32xf32>
    %167 = vector.broadcast %146 : vector<1x32xf32> to vector<17x32xf32>
    %168 = arith.mulf %166, %167 : vector<17x32xf32>
    %169 = vector.broadcast %148 : vector<1x32xf32> to vector<17x32xf32>
    %170 = arith.addf %168, %169 : vector<17x32xf32>
    %c0_90 = arith.constant 0 : index
    %c0_91 = arith.constant 0 : index
    %c0_92 = arith.constant 0 : index
    %171 = vector.load %arg14[%c0_90, %c0_91, %c0_92] : memref<2x32x128xf32, #tpu.memory_space<vmem>>, vector<1x32x128xf32>
    %172 = vector.shape_cast %171 : vector<1x32x128xf32> to vector<32x128xf32>
    %c0_93 = arith.constant 0 : index
    %c0_94 = arith.constant 0 : index
    %c0_95 = arith.constant 0 : index
    %173 = vector.load %arg15[%c0_93, %c0_94, %c0_95] : memref<2x1x128xf32, #tpu.memory_space<vmem>>, vector<1x1x128xf32>
    %174 = vector.shape_cast %173 : vector<1x1x128xf32> to vector<1x128xf32>
    %175 = arith.truncf %170 : vector<17x32xf32> to vector<17x32xbf16>
    %176 = arith.truncf %172 : vector<32x128xf32> to vector<32x128xbf16>
    %cst_96 = arith.constant dense<0.000000e+00> : vector<17x128xf32>
    %177 = tpu.matmul %175, %176, %cst_96 {dimension_numbers = #tpu.dot_dimension_numbers<[1], [0], [0], [1], [0, 0, 1, 1], [], []>} : vector<17x32xbf16>, vector<32x128xbf16>, vector<17x128xf32> -> vector<17x128xf32>
    %178 = vector.broadcast %174 : vector<1x128xf32> to vector<17x128xf32>
    %179 = arith.addf %177, %178 : vector<17x128xf32>
    %180 = arith.mulf %179, %179 : vector<17x128xf32>
    %181 = arith.mulf %179, %180 : vector<17x128xf32>
    %cst_97 = arith.constant 4.471500e-02 : f32
    %182 = vector.broadcast %cst_97 : f32 to vector<17x128xf32>
    %183 = arith.mulf %182, %181 : vector<17x128xf32>
    %184 = arith.addf %179, %183 : vector<17x128xf32>
    %cst_98 = arith.constant 0.797884583 : f32
    %185 = vector.broadcast %cst_98 : f32 to vector<17x128xf32>
    %186 = arith.mulf %185, %184 : vector<17x128xf32>
    %187 = math.tanh %186 : vector<17x128xf32>
    %cst_99 = arith.constant 1.000000e+00 : f32
    %188 = vector.broadcast %cst_99 : f32 to vector<17x128xf32>
    %189 = arith.addf %188, %187 : vector<17x128xf32>
    %cst_100 = arith.constant 5.000000e-01 : f32
    %190 = vector.broadcast %cst_100 : f32 to vector<17x128xf32>
    %191 = arith.mulf %190, %189 : vector<17x128xf32>
    %192 = arith.mulf %179, %191 : vector<17x128xf32>
    %c0_101 = arith.constant 0 : index
    %c0_102 = arith.constant 0 : index
    %c0_103 = arith.constant 0 : index
    %193 = vector.load %arg16[%c0_101, %c0_102, %c0_103] : memref<2x128x32xf32, #tpu.memory_space<vmem>>, vector<1x128x32xf32>
    %194 = vector.shape_cast %193 : vector<1x128x32xf32> to vector<128x32xf32>
    %c0_104 = arith.constant 0 : index
    %c0_105 = arith.constant 0 : index
    %c0_106 = arith.constant 0 : index
    %195 = vector.load %arg17[%c0_104, %c0_105, %c0_106] : memref<2x1x32xf32, #tpu.memory_space<vmem>>, vector<1x1x32xf32>
    %196 = vector.shape_cast %195 : vector<1x1x32xf32> to vector<1x32xf32>
    %197 = arith.truncf %192 : vector<17x128xf32> to vector<17x128xbf16>
    %198 = arith.truncf %194 : vector<128x32xf32> to vector<128x32xbf16>
    %cst_107 = arith.constant dense<0.000000e+00> : vector<17x32xf32>
    %199 = tpu.matmul %197, %198, %cst_107 {dimension_numbers = #tpu.dot_dimension_numbers<[1], [0], [0], [1], [0, 0, 1, 1], [], []>} : vector<17x128xbf16>, vector<128x32xbf16>, vector<17x32xf32> -> vector<17x32xf32>
    %200 = vector.broadcast %196 : vector<1x32xf32> to vector<17x32xf32>
    %201 = arith.addf %199, %200 : vector<17x32xf32>
    %202 = arith.addf %144, %201 : vector<17x32xf32>
    %c1_108 = arith.constant 1 : index
    %c0_109 = arith.constant 0 : index
    %c0_110 = arith.constant 0 : index
    %203 = vector.load %arg6[%c1_108, %c0_109, %c0_110] : memref<2x1x32xf32, #tpu.memory_space<vmem>>, vector<1x1x32xf32>
    %204 = vector.shape_cast %203 : vector<1x1x32xf32> to vector<1x32xf32>
    %c1_111 = arith.constant 1 : index
    %c0_112 = arith.constant 0 : index
    %c0_113 = arith.constant 0 : index
    %205 = vector.load %arg7[%c1_111, %c0_112, %c0_113] : memref<2x1x32xf32, #tpu.memory_space<vmem>>, vector<1x1x32xf32>
    %206 = vector.shape_cast %205 : vector<1x1x32xf32> to vector<1x32xf32>
    %cst_114 = arith.constant dense<0.000000e+00> : vector<17xf32>
    %207 = vector.multi_reduction <add>, %202, %cst_114 [1] : vector<17x32xf32> to vector<17xf32>
    %208 = vector.shape_cast %207 : vector<17xf32> to vector<17x1xf32>
    %cst_115 = arith.constant 3.200000e+01 : f32
    %209 = vector.broadcast %cst_115 : f32 to vector<17x1xf32>
    %210 = arith.divf %208, %209 : vector<17x1xf32>
    %211 = vector.broadcast %210 : vector<17x1xf32> to vector<17x32xf32>
    %212 = arith.subf %202, %211 : vector<17x32xf32>
    %213 = arith.mulf %212, %212 : vector<17x32xf32>
    %cst_116 = arith.constant dense<0.000000e+00> : vector<17xf32>
    %214 = vector.multi_reduction <add>, %213, %cst_116 [1] : vector<17x32xf32> to vector<17xf32>
    %215 = vector.shape_cast %214 : vector<17xf32> to vector<17x1xf32>
    %cst_117 = arith.constant 3.200000e+01 : f32
    %216 = vector.broadcast %cst_117 : f32 to vector<17x1xf32>
    %217 = arith.divf %215, %216 : vector<17x1xf32>
    %218 = vector.broadcast %210 : vector<17x1xf32> to vector<17x32xf32>
    %219 = arith.subf %202, %218 : vector<17x32xf32>
    %cst_118 = arith.constant 9.99999997E-7 : f32
    %220 = vector.broadcast %cst_118 : f32 to vector<17x1xf32>
    %221 = arith.addf %217, %220 : vector<17x1xf32>
    %222 = math.rsqrt %221 : vector<17x1xf32>
    %223 = vector.broadcast %222 : vector<17x1xf32> to vector<17x32xf32>
    %224 = arith.mulf %219, %223 : vector<17x32xf32>
    %225 = vector.broadcast %204 : vector<1x32xf32> to vector<17x32xf32>
    %226 = arith.mulf %224, %225 : vector<17x32xf32>
    %227 = vector.broadcast %206 : vector<1x32xf32> to vector<17x32xf32>
    %228 = arith.addf %226, %227 : vector<17x32xf32>
    %c6 = arith.constant 6 : index
    %c0_119 = arith.constant 0 : index
    %c0_120 = arith.constant 0 : index
    %229 = vector.load %arg8[%c6, %c0_119, %c0_120] : memref<12x32x16xf32, #tpu.memory_space<vmem>>, vector<1x32x16xf32>
    %230 = vector.shape_cast %229 : vector<1x32x16xf32> to vector<32x16xf32>
    %c6_121 = arith.constant 6 : index
    %c0_122 = arith.constant 0 : index
    %c0_123 = arith.constant 0 : index
    %231 = vector.load %arg9[%c6_121, %c0_122, %c0_123] : memref<12x1x16xf32, #tpu.memory_space<vmem>>, vector<1x1x16xf32>
    %232 = vector.shape_cast %231 : vector<1x1x16xf32> to vector<1x16xf32>
    %233 = arith.truncf %228 : vector<17x32xf32> to vector<17x32xbf16>
    %234 = arith.truncf %230 : vector<32x16xf32> to vector<32x16xbf16>
    %cst_124 = arith.constant dense<0.000000e+00> : vector<17x16xf32>
    %235 = tpu.matmul %233, %234, %cst_124 {dimension_numbers = #tpu.dot_dimension_numbers<[1], [0], [0], [1], [0, 0, 1, 1], [], []>} : vector<17x32xbf16>, vector<32x16xbf16>, vector<17x16xf32> -> vector<17x16xf32>
    %236 = vector.broadcast %232 : vector<1x16xf32> to vector<17x16xf32>
    %237 = arith.addf %235, %236 : vector<17x16xf32>
    %c8 = arith.constant 8 : index
    %c0_125 = arith.constant 0 : index
    %c0_126 = arith.constant 0 : index
    %238 = vector.load %arg8[%c8, %c0_125, %c0_126] : memref<12x32x16xf32, #tpu.memory_space<vmem>>, vector<1x32x16xf32>
    %239 = vector.shape_cast %238 : vector<1x32x16xf32> to vector<32x16xf32>
    %c8_127 = arith.constant 8 : index
    %c0_128 = arith.constant 0 : index
    %c0_129 = arith.constant 0 : index
    %240 = vector.load %arg9[%c8_127, %c0_128, %c0_129] : memref<12x1x16xf32, #tpu.memory_space<vmem>>, vector<1x1x16xf32>
    %241 = vector.shape_cast %240 : vector<1x1x16xf32> to vector<1x16xf32>
    %242 = arith.truncf %228 : vector<17x32xf32> to vector<17x32xbf16>
    %243 = arith.truncf %239 : vector<32x16xf32> to vector<32x16xbf16>
    %cst_130 = arith.constant dense<0.000000e+00> : vector<17x16xf32>
    %244 = tpu.matmul %242, %243, %cst_130 {dimension_numbers = #tpu.dot_dimension_numbers<[1], [0], [0], [1], [0, 0, 1, 1], [], []>} : vector<17x32xbf16>, vector<32x16xbf16>, vector<17x16xf32> -> vector<17x16xf32>
    %245 = vector.broadcast %241 : vector<1x16xf32> to vector<17x16xf32>
    %246 = arith.addf %244, %245 : vector<17x16xf32>
    %c10 = arith.constant 10 : index
    %c0_131 = arith.constant 0 : index
    %c0_132 = arith.constant 0 : index
    %247 = vector.load %arg8[%c10, %c0_131, %c0_132] : memref<12x32x16xf32, #tpu.memory_space<vmem>>, vector<1x32x16xf32>
    %248 = vector.shape_cast %247 : vector<1x32x16xf32> to vector<32x16xf32>
    %c10_133 = arith.constant 10 : index
    %c0_134 = arith.constant 0 : index
    %c0_135 = arith.constant 0 : index
    %249 = vector.load %arg9[%c10_133, %c0_134, %c0_135] : memref<12x1x16xf32, #tpu.memory_space<vmem>>, vector<1x1x16xf32>
    %250 = vector.shape_cast %249 : vector<1x1x16xf32> to vector<1x16xf32>
    %251 = arith.truncf %228 : vector<17x32xf32> to vector<17x32xbf16>
    %252 = arith.truncf %248 : vector<32x16xf32> to vector<32x16xbf16>
    %cst_136 = arith.constant dense<0.000000e+00> : vector<17x16xf32>
    %253 = tpu.matmul %251, %252, %cst_136 {dimension_numbers = #tpu.dot_dimension_numbers<[1], [0], [0], [1], [0, 0, 1, 1], [], []>} : vector<17x32xbf16>, vector<32x16xbf16>, vector<17x16xf32> -> vector<17x16xf32>
    %254 = vector.broadcast %250 : vector<1x16xf32> to vector<17x16xf32>
    %255 = arith.addf %253, %254 : vector<17x16xf32>
    %256 = arith.truncf %237 : vector<17x16xf32> to vector<17x16xbf16>
    %257 = arith.truncf %246 : vector<17x16xf32> to vector<17x16xbf16>
    %cst_137 = arith.constant dense<0.000000e+00> : vector<17x17xf32>
    %258 = tpu.matmul %256, %257, %cst_137 {dimension_numbers = #tpu.dot_dimension_numbers<[1], [1], [0], [0], [0, 0, 1, 0], [], []>} : vector<17x16xbf16>, vector<17x16xbf16>, vector<17x17xf32> -> vector<17x17xf32>
    %cst_138 = arith.constant 2.500000e-01 : f32
    %259 = vector.broadcast %cst_138 : f32 to vector<17x17xf32>
    %260 = arith.mulf %258, %259 : vector<17x17xf32>
    %cst_139 = arith.constant dense<0xFF800000> : vector<17xf32>
    %261 = vector.multi_reduction <maximumf>, %260, %cst_139 [1] : vector<17x17xf32> to vector<17xf32>
    %262 = vector.shape_cast %261 : vector<17xf32> to vector<17x1xf32>
    %263 = vector.broadcast %262 : vector<17x1xf32> to vector<17x17xf32>
    %264 = arith.subf %260, %263 : vector<17x17xf32>
    %265 = math.exp %264 : vector<17x17xf32>
    %cst_140 = arith.constant dense<0.000000e+00> : vector<17xf32>
    %266 = vector.multi_reduction <add>, %265, %cst_140 [1] : vector<17x17xf32> to vector<17xf32>
    %267 = vector.shape_cast %266 : vector<17xf32> to vector<17x1xf32>
    %268 = tpu.reciprocal %267 {approx = true} : vector<17x1xf32> -> vector<17x1xf32>
    %269 = vector.broadcast %268 : vector<17x1xf32> to vector<17x17xf32>
    %270 = arith.mulf %265, %269 : vector<17x17xf32>
    %271 = arith.truncf %270 : vector<17x17xf32> to vector<17x17xbf16>
    %272 = arith.truncf %255 : vector<17x16xf32> to vector<17x16xbf16>
    %cst_141 = arith.constant dense<0.000000e+00> : vector<17x16xf32>
    %273 = tpu.matmul %271, %272, %cst_141 {dimension_numbers = #tpu.dot_dimension_numbers<[1], [0], [0], [1], [0, 0, 1, 1], [], []>} : vector<17x17xbf16>, vector<17x16xbf16>, vector<17x16xf32> -> vector<17x16xf32>
    %c2_142 = arith.constant 2 : index
    %c0_143 = arith.constant 0 : index
    %c0_144 = arith.constant 0 : index
    %274 = vector.load %arg10[%c2_142, %c0_143, %c0_144] : memref<4x16x32xf32, #tpu.memory_space<vmem>>, vector<1x16x32xf32>
    %275 = vector.shape_cast %274 : vector<1x16x32xf32> to vector<16x32xf32>
    %276 = arith.truncf %273 : vector<17x16xf32> to vector<17x16xbf16>
    %277 = arith.truncf %275 : vector<16x32xf32> to vector<16x32xbf16>
    %cst_145 = arith.constant dense<0.000000e+00> : vector<17x32xf32>
    %278 = tpu.matmul %276, %277, %cst_145 {dimension_numbers = #tpu.dot_dimension_numbers<[1], [0], [0], [1], [0, 0, 1, 1], [], []>} : vector<17x16xbf16>, vector<16x32xbf16>, vector<17x32xf32> -> vector<17x32xf32>
    %c7 = arith.constant 7 : index
    %c0_146 = arith.constant 0 : index
    %c0_147 = arith.constant 0 : index
    %279 = vector.load %arg8[%c7, %c0_146, %c0_147] : memref<12x32x16xf32, #tpu.memory_space<vmem>>, vector<1x32x16xf32>
    %280 = vector.shape_cast %279 : vector<1x32x16xf32> to vector<32x16xf32>
    %c7_148 = arith.constant 7 : index
    %c0_149 = arith.constant 0 : index
    %c0_150 = arith.constant 0 : index
    %281 = vector.load %arg9[%c7_148, %c0_149, %c0_150] : memref<12x1x16xf32, #tpu.memory_space<vmem>>, vector<1x1x16xf32>
    %282 = vector.shape_cast %281 : vector<1x1x16xf32> to vector<1x16xf32>
    %283 = arith.truncf %228 : vector<17x32xf32> to vector<17x32xbf16>
    %284 = arith.truncf %280 : vector<32x16xf32> to vector<32x16xbf16>
    %cst_151 = arith.constant dense<0.000000e+00> : vector<17x16xf32>
    %285 = tpu.matmul %283, %284, %cst_151 {dimension_numbers = #tpu.dot_dimension_numbers<[1], [0], [0], [1], [0, 0, 1, 1], [], []>} : vector<17x32xbf16>, vector<32x16xbf16>, vector<17x16xf32> -> vector<17x16xf32>
    %286 = vector.broadcast %282 : vector<1x16xf32> to vector<17x16xf32>
    %287 = arith.addf %285, %286 : vector<17x16xf32>
    %c9 = arith.constant 9 : index
    %c0_152 = arith.constant 0 : index
    %c0_153 = arith.constant 0 : index
    %288 = vector.load %arg8[%c9, %c0_152, %c0_153] : memref<12x32x16xf32, #tpu.memory_space<vmem>>, vector<1x32x16xf32>
    %289 = vector.shape_cast %288 : vector<1x32x16xf32> to vector<32x16xf32>
    %c9_154 = arith.constant 9 : index
    %c0_155 = arith.constant 0 : index
    %c0_156 = arith.constant 0 : index
    %290 = vector.load %arg9[%c9_154, %c0_155, %c0_156] : memref<12x1x16xf32, #tpu.memory_space<vmem>>, vector<1x1x16xf32>
    %291 = vector.shape_cast %290 : vector<1x1x16xf32> to vector<1x16xf32>
    %292 = arith.truncf %228 : vector<17x32xf32> to vector<17x32xbf16>
    %293 = arith.truncf %289 : vector<32x16xf32> to vector<32x16xbf16>
    %cst_157 = arith.constant dense<0.000000e+00> : vector<17x16xf32>
    %294 = tpu.matmul %292, %293, %cst_157 {dimension_numbers = #tpu.dot_dimension_numbers<[1], [0], [0], [1], [0, 0, 1, 1], [], []>} : vector<17x32xbf16>, vector<32x16xbf16>, vector<17x16xf32> -> vector<17x16xf32>
    %295 = vector.broadcast %291 : vector<1x16xf32> to vector<17x16xf32>
    %296 = arith.addf %294, %295 : vector<17x16xf32>
    %c11 = arith.constant 11 : index
    %c0_158 = arith.constant 0 : index
    %c0_159 = arith.constant 0 : index
    %297 = vector.load %arg8[%c11, %c0_158, %c0_159] : memref<12x32x16xf32, #tpu.memory_space<vmem>>, vector<1x32x16xf32>
    %298 = vector.shape_cast %297 : vector<1x32x16xf32> to vector<32x16xf32>
    %c11_160 = arith.constant 11 : index
    %c0_161 = arith.constant 0 : index
    %c0_162 = arith.constant 0 : index
    %299 = vector.load %arg9[%c11_160, %c0_161, %c0_162] : memref<12x1x16xf32, #tpu.memory_space<vmem>>, vector<1x1x16xf32>
    %300 = vector.shape_cast %299 : vector<1x1x16xf32> to vector<1x16xf32>
    %301 = arith.truncf %228 : vector<17x32xf32> to vector<17x32xbf16>
    %302 = arith.truncf %298 : vector<32x16xf32> to vector<32x16xbf16>
    %cst_163 = arith.constant dense<0.000000e+00> : vector<17x16xf32>
    %303 = tpu.matmul %301, %302, %cst_163 {dimension_numbers = #tpu.dot_dimension_numbers<[1], [0], [0], [1], [0, 0, 1, 1], [], []>} : vector<17x32xbf16>, vector<32x16xbf16>, vector<17x16xf32> -> vector<17x16xf32>
    %304 = vector.broadcast %300 : vector<1x16xf32> to vector<17x16xf32>
    %305 = arith.addf %303, %304 : vector<17x16xf32>
    %306 = arith.truncf %287 : vector<17x16xf32> to vector<17x16xbf16>
    %307 = arith.truncf %296 : vector<17x16xf32> to vector<17x16xbf16>
    %cst_164 = arith.constant dense<0.000000e+00> : vector<17x17xf32>
    %308 = tpu.matmul %306, %307, %cst_164 {dimension_numbers = #tpu.dot_dimension_numbers<[1], [1], [0], [0], [0, 0, 1, 0], [], []>} : vector<17x16xbf16>, vector<17x16xbf16>, vector<17x17xf32> -> vector<17x17xf32>
    %cst_165 = arith.constant 2.500000e-01 : f32
    %309 = vector.broadcast %cst_165 : f32 to vector<17x17xf32>
    %310 = arith.mulf %308, %309 : vector<17x17xf32>
    %cst_166 = arith.constant dense<0xFF800000> : vector<17xf32>
    %311 = vector.multi_reduction <maximumf>, %310, %cst_166 [1] : vector<17x17xf32> to vector<17xf32>
    %312 = vector.shape_cast %311 : vector<17xf32> to vector<17x1xf32>
    %313 = vector.broadcast %312 : vector<17x1xf32> to vector<17x17xf32>
    %314 = arith.subf %310, %313 : vector<17x17xf32>
    %315 = math.exp %314 : vector<17x17xf32>
    %cst_167 = arith.constant dense<0.000000e+00> : vector<17xf32>
    %316 = vector.multi_reduction <add>, %315, %cst_167 [1] : vector<17x17xf32> to vector<17xf32>
    %317 = vector.shape_cast %316 : vector<17xf32> to vector<17x1xf32>
    %318 = tpu.reciprocal %317 {approx = true} : vector<17x1xf32> -> vector<17x1xf32>
    %319 = vector.broadcast %318 : vector<17x1xf32> to vector<17x17xf32>
    %320 = arith.mulf %315, %319 : vector<17x17xf32>
    %321 = arith.truncf %320 : vector<17x17xf32> to vector<17x17xbf16>
    %322 = arith.truncf %305 : vector<17x16xf32> to vector<17x16xbf16>
    %cst_168 = arith.constant dense<0.000000e+00> : vector<17x16xf32>
    %323 = tpu.matmul %321, %322, %cst_168 {dimension_numbers = #tpu.dot_dimension_numbers<[1], [0], [0], [1], [0, 0, 1, 1], [], []>} : vector<17x17xbf16>, vector<17x16xbf16>, vector<17x16xf32> -> vector<17x16xf32>
    %c3_169 = arith.constant 3 : index
    %c0_170 = arith.constant 0 : index
    %c0_171 = arith.constant 0 : index
    %324 = vector.load %arg10[%c3_169, %c0_170, %c0_171] : memref<4x16x32xf32, #tpu.memory_space<vmem>>, vector<1x16x32xf32>
    %325 = vector.shape_cast %324 : vector<1x16x32xf32> to vector<16x32xf32>
    %326 = arith.truncf %323 : vector<17x16xf32> to vector<17x16xbf16>
    %327 = arith.truncf %325 : vector<16x32xf32> to vector<16x32xbf16>
    %cst_172 = arith.constant dense<0.000000e+00> : vector<17x32xf32>
    %328 = tpu.matmul %326, %327, %cst_172 {dimension_numbers = #tpu.dot_dimension_numbers<[1], [0], [0], [1], [0, 0, 1, 1], [], []>} : vector<17x16xbf16>, vector<16x32xbf16>, vector<17x32xf32> -> vector<17x32xf32>
    %329 = arith.addf %278, %328 : vector<17x32xf32>
    %330 = arith.addf %202, %329 : vector<17x32xf32>
    %c1_173 = arith.constant 1 : index
    %c0_174 = arith.constant 0 : index
    %c0_175 = arith.constant 0 : index
    %331 = vector.load %arg11[%c1_173, %c0_174, %c0_175] : memref<2x1x32xf32, #tpu.memory_space<vmem>>, vector<1x1x32xf32>
    %332 = vector.shape_cast %331 : vector<1x1x32xf32> to vector<1x32xf32>
    %333 = vector.broadcast %332 : vector<1x32xf32> to vector<17x32xf32>
    %334 = arith.addf %330, %333 : vector<17x32xf32>
    %c1_176 = arith.constant 1 : index
    %c0_177 = arith.constant 0 : index
    %c0_178 = arith.constant 0 : index
    %335 = vector.load %arg12[%c1_176, %c0_177, %c0_178] : memref<2x1x32xf32, #tpu.memory_space<vmem>>, vector<1x1x32xf32>
    %336 = vector.shape_cast %335 : vector<1x1x32xf32> to vector<1x32xf32>
    %c1_179 = arith.constant 1 : index
    %c0_180 = arith.constant 0 : index
    %c0_181 = arith.constant 0 : index
    %337 = vector.load %arg13[%c1_179, %c0_180, %c0_181] : memref<2x1x32xf32, #tpu.memory_space<vmem>>, vector<1x1x32xf32>
    %338 = vector.shape_cast %337 : vector<1x1x32xf32> to vector<1x32xf32>
    %cst_182 = arith.constant dense<0.000000e+00> : vector<17xf32>
    %339 = vector.multi_reduction <add>, %334, %cst_182 [1] : vector<17x32xf32> to vector<17xf32>
    %340 = vector.shape_cast %339 : vector<17xf32> to vector<17x1xf32>
    %cst_183 = arith.constant 3.200000e+01 : f32
    %341 = vector.broadcast %cst_183 : f32 to vector<17x1xf32>
    %342 = arith.divf %340, %341 : vector<17x1xf32>
    %343 = vector.broadcast %342 : vector<17x1xf32> to vector<17x32xf32>
    %344 = arith.subf %334, %343 : vector<17x32xf32>
    %345 = arith.mulf %344, %344 : vector<17x32xf32>
    %cst_184 = arith.constant dense<0.000000e+00> : vector<17xf32>
    %346 = vector.multi_reduction <add>, %345, %cst_184 [1] : vector<17x32xf32> to vector<17xf32>
    %347 = vector.shape_cast %346 : vector<17xf32> to vector<17x1xf32>
    %cst_185 = arith.constant 3.200000e+01 : f32
    %348 = vector.broadcast %cst_185 : f32 to vector<17x1xf32>
    %349 = arith.divf %347, %348 : vector<17x1xf32>
    %350 = vector.broadcast %342 : vector<17x1xf32> to vector<17x32xf32>
    %351 = arith.subf %334, %350 : vector<17x32xf32>
    %cst_186 = arith.constant 9.99999997E-7 : f32
    %352 = vector.broadcast %cst_186 : f32 to vector<17x1xf32>
    %353 = arith.addf %349, %352 : vector<17x1xf32>
    %354 = math.rsqrt %353 : vector<17x1xf32>
    %355 = vector.broadcast %354 : vector<17x1xf32> to vector<17x32xf32>
    %356 = arith.mulf %351, %355 : vector<17x32xf32>
    %357 = vector.broadcast %336 : vector<1x32xf32> to vector<17x32xf32>
    %358 = arith.mulf %356, %357 : vector<17x32xf32>
    %359 = vector.broadcast %338 : vector<1x32xf32> to vector<17x32xf32>
    %360 = arith.addf %358, %359 : vector<17x32xf32>
    %c1_187 = arith.constant 1 : index
    %c0_188 = arith.constant 0 : index
    %c0_189 = arith.constant 0 : index
    %361 = vector.load %arg14[%c1_187, %c0_188, %c0_189] : memref<2x32x128xf32, #tpu.memory_space<vmem>>, vector<1x32x128xf32>
    %362 = vector.shape_cast %361 : vector<1x32x128xf32> to vector<32x128xf32>
    %c1_190 = arith.constant 1 : index
    %c0_191 = arith.constant 0 : index
    %c0_192 = arith.constant 0 : index
    %363 = vector.load %arg15[%c1_190, %c0_191, %c0_192] : memref<2x1x128xf32, #tpu.memory_space<vmem>>, vector<1x1x128xf32>
    %364 = vector.shape_cast %363 : vector<1x1x128xf32> to vector<1x128xf32>
    %365 = arith.truncf %360 : vector<17x32xf32> to vector<17x32xbf16>
    %366 = arith.truncf %362 : vector<32x128xf32> to vector<32x128xbf16>
    %cst_193 = arith.constant dense<0.000000e+00> : vector<17x128xf32>
    %367 = tpu.matmul %365, %366, %cst_193 {dimension_numbers = #tpu.dot_dimension_numbers<[1], [0], [0], [1], [0, 0, 1, 1], [], []>} : vector<17x32xbf16>, vector<32x128xbf16>, vector<17x128xf32> -> vector<17x128xf32>
    %368 = vector.broadcast %364 : vector<1x128xf32> to vector<17x128xf32>
    %369 = arith.addf %367, %368 : vector<17x128xf32>
    %370 = arith.mulf %369, %369 : vector<17x128xf32>
    %371 = arith.mulf %369, %370 : vector<17x128xf32>
    %cst_194 = arith.constant 4.471500e-02 : f32
    %372 = vector.broadcast %cst_194 : f32 to vector<17x128xf32>
    %373 = arith.mulf %372, %371 : vector<17x128xf32>
    %374 = arith.addf %369, %373 : vector<17x128xf32>
    %cst_195 = arith.constant 0.797884583 : f32
    %375 = vector.broadcast %cst_195 : f32 to vector<17x128xf32>
    %376 = arith.mulf %375, %374 : vector<17x128xf32>
    %377 = math.tanh %376 : vector<17x128xf32>
    %cst_196 = arith.constant 1.000000e+00 : f32
    %378 = vector.broadcast %cst_196 : f32 to vector<17x128xf32>
    %379 = arith.addf %378, %377 : vector<17x128xf32>
    %cst_197 = arith.constant 5.000000e-01 : f32
    %380 = vector.broadcast %cst_197 : f32 to vector<17x128xf32>
    %381 = arith.mulf %380, %379 : vector<17x128xf32>
    %382 = arith.mulf %369, %381 : vector<17x128xf32>
    %c1_198 = arith.constant 1 : index
    %c0_199 = arith.constant 0 : index
    %c0_200 = arith.constant 0 : index
    %383 = vector.load %arg16[%c1_198, %c0_199, %c0_200] : memref<2x128x32xf32, #tpu.memory_space<vmem>>, vector<1x128x32xf32>
    %384 = vector.shape_cast %383 : vector<1x128x32xf32> to vector<128x32xf32>
    %c1_201 = arith.constant 1 : index
    %c0_202 = arith.constant 0 : index
    %c0_203 = arith.constant 0 : index
    %385 = vector.load %arg17[%c1_201, %c0_202, %c0_203] : memref<2x1x32xf32, #tpu.memory_space<vmem>>, vector<1x1x32xf32>
    %386 = vector.shape_cast %385 : vector<1x1x32xf32> to vector<1x32xf32>
    %387 = arith.truncf %382 : vector<17x128xf32> to vector<17x128xbf16>
    %388 = arith.truncf %384 : vector<128x32xf32> to vector<128x32xbf16>
    %cst_204 = arith.constant dense<0.000000e+00> : vector<17x32xf32>
    %389 = tpu.matmul %387, %388, %cst_204 {dimension_numbers = #tpu.dot_dimension_numbers<[1], [0], [0], [1], [0, 0, 1, 1], [], []>} : vector<17x128xbf16>, vector<128x32xbf16>, vector<17x32xf32> -> vector<17x32xf32>
    %390 = vector.broadcast %386 : vector<1x32xf32> to vector<17x32xf32>
    %391 = arith.addf %389, %390 : vector<17x32xf32>
    %392 = arith.addf %334, %391 : vector<17x32xf32>
    %393 = vector.extract_strided_slice %392 {offsets = [0, 0], sizes = [1, 32], strides = [1, 1]} : vector<17x32xf32> to vector<1x32xf32>
    %c0_205 = arith.constant 0 : index
    %c0_206 = arith.constant 0 : index
    %394 = vector.load %arg18[%c0_205, %c0_206] : memref<1x32xf32, #tpu.memory_space<vmem>>, vector<1x32xf32>
    %c0_207 = arith.constant 0 : index
    %c0_208 = arith.constant 0 : index
    %395 = vector.load %arg19[%c0_207, %c0_208] : memref<1x32xf32, #tpu.memory_space<vmem>>, vector<1x32xf32>
    %cst_209 = arith.constant dense<0.000000e+00> : vector<1xf32>
    %396 = vector.multi_reduction <add>, %393, %cst_209 [1] : vector<1x32xf32> to vector<1xf32>
    %397 = vector.shape_cast %396 : vector<1xf32> to vector<1x1xf32>
    %cst_210 = arith.constant 3.200000e+01 : f32
    %398 = vector.broadcast %cst_210 : f32 to vector<1x1xf32>
    %399 = arith.divf %397, %398 : vector<1x1xf32>
    %400 = vector.broadcast %399 : vector<1x1xf32> to vector<1x32xf32>
    %401 = arith.subf %393, %400 : vector<1x32xf32>
    %402 = arith.mulf %401, %401 : vector<1x32xf32>
    %cst_211 = arith.constant dense<0.000000e+00> : vector<1xf32>
    %403 = vector.multi_reduction <add>, %402, %cst_211 [1] : vector<1x32xf32> to vector<1xf32>
    %404 = vector.shape_cast %403 : vector<1xf32> to vector<1x1xf32>
    %cst_212 = arith.constant 3.200000e+01 : f32
    %405 = vector.broadcast %cst_212 : f32 to vector<1x1xf32>
    %406 = arith.divf %404, %405 : vector<1x1xf32>
    %407 = vector.broadcast %399 : vector<1x1xf32> to vector<1x32xf32>
    %408 = arith.subf %393, %407 : vector<1x32xf32>
    %cst_213 = arith.constant 9.99999997E-7 : f32
    %409 = vector.broadcast %cst_213 : f32 to vector<1x1xf32>
    %410 = arith.addf %406, %409 : vector<1x1xf32>
    %411 = math.rsqrt %410 : vector<1x1xf32>
    %412 = vector.broadcast %411 : vector<1x1xf32> to vector<1x32xf32>
    %413 = arith.mulf %408, %412 : vector<1x32xf32>
    %414 = arith.mulf %413, %394 : vector<1x32xf32>
    %415 = arith.addf %414, %395 : vector<1x32xf32>
    %c0_214 = arith.constant 0 : index
    %c0_215 = arith.constant 0 : index
    %c0_216 = arith.constant 0 : index
    %416 = vector.load %arg20[%c0_214, %c0_215, %c0_216] : memref<1x1x32xf32, #tpu.memory_space<vmem>>, vector<1x1x32xf32>
    %417 = vector.shape_cast %416 : vector<1x1x32xf32> to vector<1x32xf32>
    %418 = vector.shape_cast %415 : vector<1x32xf32> to vector<1x1x32xf32>
    tpu.vector_store %arg20[%c0_214, %c0_215, %c0_216], %418 {strides = array<i32>} : memref<1x1x32xf32, #tpu.memory_space<vmem>>, vector<1x1x32xf32>,
    return
  }
  func.func @transform_0(%arg0: i32) -> (i32, i32, i32) {
    %c0_i32 = arith.constant 0 : i32
    %c0_i32_0 = arith.constant 0 : i32
    %c0_i32_1 = arith.constant 0 : i32
    return %arg0, %c0_i32, %c0_i32_0 : i32, i32, i32
  }
  func.func @transform_1(%arg0: i32) -> (i32, i32) {
    %c0_i32 = arith.constant 0 : i32
    %c0_i32_0 = arith.constant 0 : i32
    %c0_i32_1 = arith.constant 0 : i32
    return %c0_i32, %c0_i32_0 : i32, i32
  }
  func.func @transform_2(%arg0: i32) -> (i32, i32) {
    %c0_i32 = arith.constant 0 : i32
    %c0_i32_0 = arith.constant 0 : i32
    %c0_i32_1 = arith.constant 0 : i32
    return %c0_i32, %c0_i32_0 : i32, i32
  }
  func.func @transform_3(%arg0: i32) -> (i32, i32) {
    %c0_i32 = arith.constant 0 : i32
    %c0_i32_0 = arith.constant 0 : i32
    %c0_i32_1 = arith.constant 0 : i32
    return %c0_i32, %c0_i32_0 : i32, i32
  }
  func.func @transform_4(%arg0: i32) -> (i32, i32) {
    %c0_i32 = arith.constant 0 : i32
    %c0_i32_0 = arith.constant 0 : i32
    %c0_i32_1 = arith.constant 0 : i32
    return %c0_i32, %c0_i32_0 : i32, i32
  }
  func.func @transform_5(%arg0: i32) -> (i32, i32, i32) {
    %c0_i32 = arith.constant 0 : i32
    %c0_i32_0 = arith.constant 0 : i32
    %c0_i32_1 = arith.constant 0 : i32
    %c0_i32_2 = arith.constant 0 : i32
    return %c0_i32, %c0_i32_0, %c0_i32_1 : i32, i32, i32
  }
  func.func @transform_6(%arg0: i32) -> (i32, i32, i32) {
    %c0_i32 = arith.constant 0 : i32
    %c0_i32_0 = arith.constant 0 : i32
    %c0_i32_1 = arith.constant 0 : i32
    %c0_i32_2 = arith.constant 0 : i32
    return %c0_i32, %c0_i32_0, %c0_i32_1 : i32, i32, i32
  }
  func.func @transform_7(%arg0: i32) -> (i32, i32, i32) {
    %c0_i32 = arith.constant 0 : i32
    %c0_i32_0 = arith.constant 0 : i32
    %c0_i32_1 = arith.constant 0 : i32
    %c0_i32_2 = arith.constant 0 : i32
    return %c0_i32, %c0_i32_0, %c0_i32_1 : i32, i32, i32
  }
  func.func @transform_8(%arg0: i32) -> (i32, i32, i32) {
    %c0_i32 = arith.constant 0 : i32
    %c0_i32_0 = arith.constant 0 : i32
    %c0_i32_1 = arith.constant 0 : i32
    %c0_i32_2 = arith.constant 0 : i32
    return %c0_i32, %c0_i32_0, %c0_i32_1 : i32, i32, i32
  }
  func.func @transform_9(%arg0: i32) -> (i32, i32, i32) {
    %c0_i32 = arith.constant 0 : i32
    %c0_i32_0 = arith.constant 0 : i32
    %c0_i32_1 = arith.constant 0 : i32
    %c0_i32_2 = arith.constant 0 : i32
    return %c0_i32, %c0_i32_0, %c0_i32_1 : i32, i32, i32
  }
  func.func @transform_10(%arg0: i32) -> (i32, i32, i32) {
    %c0_i32 = arith.constant 0 : i32
    %c0_i32_0 = arith.constant 0 : i32
    %c0_i32_1 = arith.constant 0 : i32
    %c0_i32_2 = arith.constant 0 : i32
    return %c0_i32, %c0_i32_0, %c0_i32_1 : i32, i32, i32
  }
  func.func @transform_11(%arg0: i32) -> (i32, i32, i32) {
    %c0_i32 = arith.constant 0 : i32
    %c0_i32_0 = arith.constant 0 : i32
    %c0_i32_1 = arith.constant 0 : i32
    %c0_i32_2 = arith.constant 0 : i32
    return %c0_i32, %c0_i32_0, %c0_i32_1 : i32, i32, i32
  }
  func.func @transform_12(%arg0: i32) -> (i32, i32, i32) {
    %c0_i32 = arith.constant 0 : i32
    %c0_i32_0 = arith.constant 0 : i32
    %c0_i32_1 = arith.constant 0 : i32
    %c0_i32_2 = arith.constant 0 : i32
    return %c0_i32, %c0_i32_0, %c0_i32_1 : i32, i32, i32
  }
  func.func @transform_13(%arg0: i32) -> (i32, i32, i32) {
    %c0_i32 = arith.constant 0 : i32
    %c0_i32_0 = arith.constant 0 : i32
    %c0_i32_1 = arith.constant 0 : i32
    %c0_i32_2 = arith.constant 0 : i32
    return %c0_i32, %c0_i32_0, %c0_i32_1 : i32, i32, i32
  }
  func.func @transform_14(%arg0: i32) -> (i32, i32, i32) {
    %c0_i32 = arith.constant 0 : i32
    %c0_i32_0 = arith.constant 0 : i32
    %c0_i32_1 = arith.constant 0 : i32
    %c0_i32_2 = arith.constant 0 : i32
    return %c0_i32, %c0_i32_0, %c0_i32_1 : i32, i32, i32
  }
  func.func @transform_15(%arg0: i32) -> (i32, i32, i32) {
    %c0_i32 = arith.constant 0 : i32
    %c0_i32_0 = arith.constant 0 : i32
    %c0_i32_1 = arith.constant 0 : i32
    %c0_i32_2 = arith.constant 0 : i32
    return %c0_i32, %c0_i32_0, %c0_i32_1 : i32, i32, i32
  }
  func.func @transform_16(%arg0: i32) -> (i32, i32, i32) {
    %c0_i32 = arith.constant 0 : i32
    %c0_i32_0 = arith.constant 0 : i32
    %c0_i32_1 = arith.constant 0 : i32
    %c0_i32_2 = arith.constant 0 : i32
    return %c0_i32, %c0_i32_0, %c0_i32_1 : i32, i32, i32
  }
  func.func @transform_17(%arg0: i32) -> (i32, i32) {
    %c0_i32 = arith.constant 0 : i32
    %c0_i32_0 = arith.constant 0 : i32
    %c0_i32_1 = arith.constant 0 : i32
    return %c0_i32, %c0_i32_0 : i32, i32
  }
  func.func @transform_18(%arg0: i32) -> (i32, i32) {
    %c0_i32 = arith.constant 0 : i32
    %c0_i32_0 = arith.constant 0 : i32
    %c0_i32_1 = arith.constant 0 : i32
    return %c0_i32, %c0_i32_0 : i32, i32
  }
  func.func @transform_19(%arg0: i32) -> (i32, i32, i32) {
    %c0_i32 = arith.constant 0 : i32
    %c0_i32_0 = arith.constant 0 : i32
    %c0_i32_1 = arith.constant 0 : i32
    return %arg0, %c0_i32, %c0_i32_0 : i32, i32, i32
  }
}

module attributes {stable_mosaic.version = 11 : i64} {
  func.func @_bert_tower_kernel(%arg0: i32, %arg1: memref<1x8x32xf32, #tpu.memory_space<vmem>>, %arg2: memref<1x1x8xf32, #tpu.memory_space<vmem>>, %arg3: memref<8x32xf32, #tpu.memory_space<vmem>>, %arg4: memref<1x32xf32, #tpu.memory_space<vmem>>, %arg5: memref<1x32xf32, #tpu.memory_space<vmem>>, %arg6: memref<1x32xf32, #tpu.memory_space<vmem>>, %arg7: memref<12x32x16xf32, #tpu.memory_space<vmem>>, %arg8: memref<12x1x16xf32, #tpu.memory_space<vmem>>, %arg9: memref<4x16x32xf32, #tpu.memory_space<vmem>>, %arg10: memref<2x1x32xf32, #tpu.memory_space<vmem>>, %arg11: memref<2x1x32xf32, #tpu.memory_space<vmem>>, %arg12: memref<2x1x32xf32, #tpu.memory_space<vmem>>, %arg13: memref<2x32x128xf32, #tpu.memory_space<vmem>>, %arg14: memref<2x1x128xf32, #tpu.memory_space<vmem>>, %arg15: memref<2x128x32xf32, #tpu.memory_space<vmem>>, %arg16: memref<2x1x32xf32, #tpu.memory_space<vmem>>, %arg17: memref<2x1x32xf32, #tpu.memory_space<vmem>>, %arg18: memref<2x1x32xf32, #tpu.memory_space<vmem>>, %arg19: memref<1x1x32xf32, #tpu.memory_space<vmem>>) attributes {dimension_semantics = [#tpu.dimension_semantics<parallel>], iteration_bounds = array<i64: 2>, scalar_prefetch = 0 : i64, scratch_operands = 0 : i64, tpu.core_type = #tpu.core_type<tc>, window_params = [{transform_indices = @transform_0, window_bounds = array<i64: 1, 8, 32>}, {transform_indices = @transform_1, window_bounds = array<i64: 1, 1, 8>}, {pipeline_mode = #tpu.pipeline_mode<synchronous>, transform_indices = @transform_2, window_bounds = array<i64: 8, 32>}, {pipeline_mode = #tpu.pipeline_mode<synchronous>, transform_indices = @transform_3, window_bounds = array<i64: 1, 32>}, {pipeline_mode = #tpu.pipeline_mode<synchronous>, transform_indices = @transform_4, window_bounds = array<i64: 1, 32>}, {pipeline_mode = #tpu.pipeline_mode<synchronous>, transform_indices = @transform_5, window_bounds = array<i64: 1, 32>}, {pipeline_mode = #tpu.pipeline_mode<synchronous>, transform_indices = @transform_6, window_bounds = array<i64: 12, 32, 16>}, {pipeline_mode = #tpu.pipeline_mode<synchronous>, transform_indices = @transform_7, window_bounds = array<i64: 12, 1, 16>}, {pipeline_mode = #tpu.pipeline_mode<synchronous>, transform_indices = @transform_8, window_bounds = array<i64: 4, 16, 32>}, {pipeline_mode = #tpu.pipeline_mode<synchronous>, transform_indices = @transform_9, window_bounds = array<i64: 2, 1, 32>}, {pipeline_mode = #tpu.pipeline_mode<synchronous>, transform_indices = @transform_10, window_bounds = array<i64: 2, 1, 32>}, {pipeline_mode = #tpu.pipeline_mode<synchronous>, transform_indices = @transform_11, window_bounds = array<i64: 2, 1, 32>}, {pipeline_mode = #tpu.pipeline_mode<synchronous>, transform_indices = @transform_12, window_bounds = array<i64: 2, 32, 128>}, {pipeline_mode = #tpu.pipeline_mode<synchronous>, transform_indices = @transform_13, window_bounds = array<i64: 2, 1, 128>}, {pipeline_mode = #tpu.pipeline_mode<synchronous>, transform_indices = @transform_14, window_bounds = array<i64: 2, 128, 32>}, {pipeline_mode = #tpu.pipeline_mode<synchronous>, transform_indices = @transform_15, window_bounds = array<i64: 2, 1, 32>}, {pipeline_mode = #tpu.pipeline_mode<synchronous>, transform_indices = @transform_16, window_bounds = array<i64: 2, 1, 32>}, {pipeline_mode = #tpu.pipeline_mode<synchronous>, transform_indices = @transform_17, window_bounds = array<i64: 2, 1, 32>}, {transform_indices = @transform_18, window_bounds = array<i64: 1, 1, 32>}]} {
    %c0 = arith.constant 0 : index
    %c0_0 = arith.constant 0 : index
    %c0_1 = arith.constant 0 : index
    %0 = vector.load %arg1[%c0, %c0_0, %c0_1] : memref<1x8x32xf32, #tpu.memory_space<vmem>>, vector<1x8x32xf32>
    %1 = vector.shape_cast %0 : vector<1x8x32xf32> to vector<8x32xf32>
    %c0_2 = arith.constant 0 : index
    %c0_3 = arith.constant 0 : index
    %2 = vector.load %arg3[%c0_2, %c0_3] : memref<8x32xf32, #tpu.memory_space<vmem>>, vector<8x32xf32>
    %3 = arith.addf %1, %2 : vector<8x32xf32>
    %c0_4 = arith.constant 0 : index
    %c0_5 = arith.constant 0 : index
    %4 = vector.load %arg4[%c0_4, %c0_5] : memref<1x32xf32, #tpu.memory_space<vmem>>, vector<1x32xf32>
    %5 = vector.broadcast %4 : vector<1x32xf32> to vector<8x32xf32>
    %6 = arith.addf %3, %5 : vector<8x32xf32>
    %c0_6 = arith.constant 0 : index
    %c0_7 = arith.constant 0 : index
    %7 = vector.load %arg5[%c0_6, %c0_7] : memref<1x32xf32, #tpu.memory_space<vmem>>, vector<1x32xf32>
    %c0_8 = arith.constant 0 : index
    %c0_9 = arith.constant 0 : index
    %8 = vector.load %arg6[%c0_8, %c0_9] : memref<1x32xf32, #tpu.memory_space<vmem>>, vector<1x32xf32>
    %cst = arith.constant dense<0.000000e+00> : vector<8xf32>
    %9 = vector.multi_reduction <add>, %6, %cst [1] : vector<8x32xf32> to vector<8xf32>
    %10 = vector.shape_cast %9 : vector<8xf32> to vector<8x1xf32>
    %cst_10 = arith.constant 3.200000e+01 : f32
    %11 = vector.broadcast %cst_10 : f32 to vector<8x1xf32>
    %12 = arith.divf %10, %11 : vector<8x1xf32>
    %13 = vector.broadcast %12 : vector<8x1xf32> to vector<8x32xf32>
    %14 = arith.subf %6, %13 : vector<8x32xf32>
    %15 = arith.mulf %14, %14 : vector<8x32xf32>
    %cst_11 = arith.constant dense<0.000000e+00> : vector<8xf32>
    %16 = vector.multi_reduction <add>, %15, %cst_11 [1] : vector<8x32xf32> to vector<8xf32>
    %17 = vector.shape_cast %16 : vector<8xf32> to vector<8x1xf32>
    %cst_12 = arith.constant 3.200000e+01 : f32
    %18 = vector.broadcast %cst_12 : f32 to vector<8x1xf32>
    %19 = arith.divf %17, %18 : vector<8x1xf32>
    %20 = vector.broadcast %12 : vector<8x1xf32> to vector<8x32xf32>
    %21 = arith.subf %6, %20 : vector<8x32xf32>
    %cst_13 = arith.constant 9.99999996E-13 : f32
    %22 = vector.broadcast %cst_13 : f32 to vector<8x1xf32>
    %23 = arith.addf %19, %22 : vector<8x1xf32>
    %24 = math.rsqrt %23 : vector<8x1xf32>
    %25 = vector.broadcast %24 : vector<8x1xf32> to vector<8x32xf32>
    %26 = arith.mulf %21, %25 : vector<8x32xf32>
    %27 = vector.broadcast %7 : vector<1x32xf32> to vector<8x32xf32>
    %28 = arith.mulf %26, %27 : vector<8x32xf32>
    %29 = vector.broadcast %8 : vector<1x32xf32> to vector<8x32xf32>
    %30 = arith.addf %28, %29 : vector<8x32xf32>
    %c0_14 = arith.constant 0 : index
    %c0_15 = arith.constant 0 : index
    %c0_16 = arith.constant 0 : index
    %31 = vector.load %arg2[%c0_14, %c0_15, %c0_16] : memref<1x1x8xf32, #tpu.memory_space<vmem>>, vector<1x1x8xf32>
    %32 = vector.shape_cast %31 : vector<1x1x8xf32> to vector<1x8xf32>
    %c0_17 = arith.constant 0 : index
    %c0_18 = arith.constant 0 : index
    %c0_19 = arith.constant 0 : index
    %33 = vector.load %arg7[%c0_17, %c0_18, %c0_19] : memref<12x32x16xf32, #tpu.memory_space<vmem>>, vector<1x32x16xf32>
    %34 = vector.shape_cast %33 : vector<1x32x16xf32> to vector<32x16xf32>
    %c0_20 = arith.constant 0 : index
    %c0_21 = arith.constant 0 : index
    %c0_22 = arith.constant 0 : index
    %35 = vector.load %arg8[%c0_20, %c0_21, %c0_22] : memref<12x1x16xf32, #tpu.memory_space<vmem>>, vector<1x1x16xf32>
    %36 = vector.shape_cast %35 : vector<1x1x16xf32> to vector<1x16xf32>
    %37 = arith.truncf %30 : vector<8x32xf32> to vector<8x32xbf16>
    %38 = arith.truncf %34 : vector<32x16xf32> to vector<32x16xbf16>
    %cst_23 = arith.constant dense<0.000000e+00> : vector<8x16xf32>
    %39 = tpu.matmul %37, %38, %cst_23 {dimension_numbers = #tpu.dot_dimension_numbers<[1], [0], [0], [1], [0, 0, 1, 1], [], []>} : vector<8x32xbf16>, vector<32x16xbf16>, vector<8x16xf32> -> vector<8x16xf32>
    %40 = vector.broadcast %36 : vector<1x16xf32> to vector<8x16xf32>
    %41 = arith.addf %39, %40 : vector<8x16xf32>
    %c2 = arith.constant 2 : index
    %c0_24 = arith.constant 0 : index
    %c0_25 = arith.constant 0 : index
    %42 = vector.load %arg7[%c2, %c0_24, %c0_25] : memref<12x32x16xf32, #tpu.memory_space<vmem>>, vector<1x32x16xf32>
    %43 = vector.shape_cast %42 : vector<1x32x16xf32> to vector<32x16xf32>
    %c2_26 = arith.constant 2 : index
    %c0_27 = arith.constant 0 : index
    %c0_28 = arith.constant 0 : index
    %44 = vector.load %arg8[%c2_26, %c0_27, %c0_28] : memref<12x1x16xf32, #tpu.memory_space<vmem>>, vector<1x1x16xf32>
    %45 = vector.shape_cast %44 : vector<1x1x16xf32> to vector<1x16xf32>
    %46 = arith.truncf %30 : vector<8x32xf32> to vector<8x32xbf16>
    %47 = arith.truncf %43 : vector<32x16xf32> to vector<32x16xbf16>
    %cst_29 = arith.constant dense<0.000000e+00> : vector<8x16xf32>
    %48 = tpu.matmul %46, %47, %cst_29 {dimension_numbers = #tpu.dot_dimension_numbers<[1], [0], [0], [1], [0, 0, 1, 1], [], []>} : vector<8x32xbf16>, vector<32x16xbf16>, vector<8x16xf32> -> vector<8x16xf32>
    %49 = vector.broadcast %45 : vector<1x16xf32> to vector<8x16xf32>
    %50 = arith.addf %48, %49 : vector<8x16xf32>
    %c4 = arith.constant 4 : index
    %c0_30 = arith.constant 0 : index
    %c0_31 = arith.constant 0 : index
    %51 = vector.load %arg7[%c4, %c0_30, %c0_31] : memref<12x32x16xf32, #tpu.memory_space<vmem>>, vector<1x32x16xf32>
    %52 = vector.shape_cast %51 : vector<1x32x16xf32> to vector<32x16xf32>
    %c4_32 = arith.constant 4 : index
    %c0_33 = arith.constant 0 : index
    %c0_34 = arith.constant 0 : index
    %53 = vector.load %arg8[%c4_32, %c0_33, %c0_34] : memref<12x1x16xf32, #tpu.memory_space<vmem>>, vector<1x1x16xf32>
    %54 = vector.shape_cast %53 : vector<1x1x16xf32> to vector<1x16xf32>
    %55 = arith.truncf %30 : vector<8x32xf32> to vector<8x32xbf16>
    %56 = arith.truncf %52 : vector<32x16xf32> to vector<32x16xbf16>
    %cst_35 = arith.constant dense<0.000000e+00> : vector<8x16xf32>
    %57 = tpu.matmul %55, %56, %cst_35 {dimension_numbers = #tpu.dot_dimension_numbers<[1], [0], [0], [1], [0, 0, 1, 1], [], []>} : vector<8x32xbf16>, vector<32x16xbf16>, vector<8x16xf32> -> vector<8x16xf32>
    %58 = vector.broadcast %54 : vector<1x16xf32> to vector<8x16xf32>
    %59 = arith.addf %57, %58 : vector<8x16xf32>
    %60 = arith.truncf %41 : vector<8x16xf32> to vector<8x16xbf16>
    %61 = arith.truncf %50 : vector<8x16xf32> to vector<8x16xbf16>
    %cst_36 = arith.constant dense<0.000000e+00> : vector<8x8xf32>
    %62 = tpu.matmul %60, %61, %cst_36 {dimension_numbers = #tpu.dot_dimension_numbers<[1], [1], [0], [0], [0, 0, 1, 0], [], []>} : vector<8x16xbf16>, vector<8x16xbf16>, vector<8x8xf32> -> vector<8x8xf32>
    %cst_37 = arith.constant 2.500000e-01 : f32
    %63 = vector.broadcast %cst_37 : f32 to vector<8x8xf32>
    %64 = arith.mulf %62, %63 : vector<8x8xf32>
    %65 = vector.broadcast %32 : vector<1x8xf32> to vector<8x8xf32>
    %66 = arith.addf %64, %65 : vector<8x8xf32>
    %cst_38 = arith.constant dense<0xFF800000> : vector<8xf32>
    %67 = vector.multi_reduction <maximumf>, %66, %cst_38 [1] : vector<8x8xf32> to vector<8xf32>
    %68 = vector.shape_cast %67 : vector<8xf32> to vector<8x1xf32>
    %69 = vector.broadcast %68 : vector<8x1xf32> to vector<8x8xf32>
    %70 = arith.subf %66, %69 : vector<8x8xf32>
    %71 = math.exp %70 : vector<8x8xf32>
    %cst_39 = arith.constant dense<0.000000e+00> : vector<8xf32>
    %72 = vector.multi_reduction <add>, %71, %cst_39 [1] : vector<8x8xf32> to vector<8xf32>
    %73 = vector.shape_cast %72 : vector<8xf32> to vector<8x1xf32>
    %74 = tpu.reciprocal %73 {approx = true} : vector<8x1xf32> -> vector<8x1xf32>
    %75 = vector.broadcast %74 : vector<8x1xf32> to vector<8x8xf32>
    %76 = arith.mulf %71, %75 : vector<8x8xf32>
    %77 = arith.truncf %76 : vector<8x8xf32> to vector<8x8xbf16>
    %78 = arith.truncf %59 : vector<8x16xf32> to vector<8x16xbf16>
    %cst_40 = arith.constant dense<0.000000e+00> : vector<8x16xf32>
    %79 = tpu.matmul %77, %78, %cst_40 {dimension_numbers = #tpu.dot_dimension_numbers<[1], [0], [0], [1], [0, 0, 1, 1], [], []>} : vector<8x8xbf16>, vector<8x16xbf16>, vector<8x16xf32> -> vector<8x16xf32>
    %c0_41 = arith.constant 0 : index
    %c0_42 = arith.constant 0 : index
    %c0_43 = arith.constant 0 : index
    %80 = vector.load %arg9[%c0_41, %c0_42, %c0_43] : memref<4x16x32xf32, #tpu.memory_space<vmem>>, vector<1x16x32xf32>
    %81 = vector.shape_cast %80 : vector<1x16x32xf32> to vector<16x32xf32>
    %82 = arith.truncf %79 : vector<8x16xf32> to vector<8x16xbf16>
    %83 = arith.truncf %81 : vector<16x32xf32> to vector<16x32xbf16>
    %cst_44 = arith.constant dense<0.000000e+00> : vector<8x32xf32>
    %84 = tpu.matmul %82, %83, %cst_44 {dimension_numbers = #tpu.dot_dimension_numbers<[1], [0], [0], [1], [0, 0, 1, 1], [], []>} : vector<8x16xbf16>, vector<16x32xbf16>, vector<8x32xf32> -> vector<8x32xf32>
    %c1 = arith.constant 1 : index
    %c0_45 = arith.constant 0 : index
    %c0_46 = arith.constant 0 : index
    %85 = vector.load %arg7[%c1, %c0_45, %c0_46] : memref<12x32x16xf32, #tpu.memory_space<vmem>>, vector<1x32x16xf32>
    %86 = vector.shape_cast %85 : vector<1x32x16xf32> to vector<32x16xf32>
    %c1_47 = arith.constant 1 : index
    %c0_48 = arith.constant 0 : index
    %c0_49 = arith.constant 0 : index
    %87 = vector.load %arg8[%c1_47, %c0_48, %c0_49] : memref<12x1x16xf32, #tpu.memory_space<vmem>>, vector<1x1x16xf32>
    %88 = vector.shape_cast %87 : vector<1x1x16xf32> to vector<1x16xf32>
    %89 = arith.truncf %30 : vector<8x32xf32> to vector<8x32xbf16>
    %90 = arith.truncf %86 : vector<32x16xf32> to vector<32x16xbf16>
    %cst_50 = arith.constant dense<0.000000e+00> : vector<8x16xf32>
    %91 = tpu.matmul %89, %90, %cst_50 {dimension_numbers = #tpu.dot_dimension_numbers<[1], [0], [0], [1], [0, 0, 1, 1], [], []>} : vector<8x32xbf16>, vector<32x16xbf16>, vector<8x16xf32> -> vector<8x16xf32>
    %92 = vector.broadcast %88 : vector<1x16xf32> to vector<8x16xf32>
    %93 = arith.addf %91, %92 : vector<8x16xf32>
    %c3 = arith.constant 3 : index
    %c0_51 = arith.constant 0 : index
    %c0_52 = arith.constant 0 : index
    %94 = vector.load %arg7[%c3, %c0_51, %c0_52] : memref<12x32x16xf32, #tpu.memory_space<vmem>>, vector<1x32x16xf32>
    %95 = vector.shape_cast %94 : vector<1x32x16xf32> to vector<32x16xf32>
    %c3_53 = arith.constant 3 : index
    %c0_54 = arith.constant 0 : index
    %c0_55 = arith.constant 0 : index
    %96 = vector.load %arg8[%c3_53, %c0_54, %c0_55] : memref<12x1x16xf32, #tpu.memory_space<vmem>>, vector<1x1x16xf32>
    %97 = vector.shape_cast %96 : vector<1x1x16xf32> to vector<1x16xf32>
    %98 = arith.truncf %30 : vector<8x32xf32> to vector<8x32xbf16>
    %99 = arith.truncf %95 : vector<32x16xf32> to vector<32x16xbf16>
    %cst_56 = arith.constant dense<0.000000e+00> : vector<8x16xf32>
    %100 = tpu.matmul %98, %99, %cst_56 {dimension_numbers = #tpu.dot_dimension_numbers<[1], [0], [0], [1], [0, 0, 1, 1], [], []>} : vector<8x32xbf16>, vector<32x16xbf16>, vector<8x16xf32> -> vector<8x16xf32>
    %101 = vector.broadcast %97 : vector<1x16xf32> to vector<8x16xf32>
    %102 = arith.addf %100, %101 : vector<8x16xf32>
    %c5 = arith.constant 5 : index
    %c0_57 = arith.constant 0 : index
    %c0_58 = arith.constant 0 : index
    %103 = vector.load %arg7[%c5, %c0_57, %c0_58] : memref<12x32x16xf32, #tpu.memory_space<vmem>>, vector<1x32x16xf32>
    %104 = vector.shape_cast %103 : vector<1x32x16xf32> to vector<32x16xf32>
    %c5_59 = arith.constant 5 : index
    %c0_60 = arith.constant 0 : index
    %c0_61 = arith.constant 0 : index
    %105 = vector.load %arg8[%c5_59, %c0_60, %c0_61] : memref<12x1x16xf32, #tpu.memory_space<vmem>>, vector<1x1x16xf32>
    %106 = vector.shape_cast %105 : vector<1x1x16xf32> to vector<1x16xf32>
    %107 = arith.truncf %30 : vector<8x32xf32> to vector<8x32xbf16>
    %108 = arith.truncf %104 : vector<32x16xf32> to vector<32x16xbf16>
    %cst_62 = arith.constant dense<0.000000e+00> : vector<8x16xf32>
    %109 = tpu.matmul %107, %108, %cst_62 {dimension_numbers = #tpu.dot_dimension_numbers<[1], [0], [0], [1], [0, 0, 1, 1], [], []>} : vector<8x32xbf16>, vector<32x16xbf16>, vector<8x16xf32> -> vector<8x16xf32>
    %110 = vector.broadcast %106 : vector<1x16xf32> to vector<8x16xf32>
    %111 = arith.addf %109, %110 : vector<8x16xf32>
    %112 = arith.truncf %93 : vector<8x16xf32> to vector<8x16xbf16>
    %113 = arith.truncf %102 : vector<8x16xf32> to vector<8x16xbf16>
    %cst_63 = arith.constant dense<0.000000e+00> : vector<8x8xf32>
    %114 = tpu.matmul %112, %113, %cst_63 {dimension_numbers = #tpu.dot_dimension_numbers<[1], [1], [0], [0], [0, 0, 1, 0], [], []>} : vector<8x16xbf16>, vector<8x16xbf16>, vector<8x8xf32> -> vector<8x8xf32>
    %cst_64 = arith.constant 2.500000e-01 : f32
    %115 = vector.broadcast %cst_64 : f32 to vector<8x8xf32>
    %116 = arith.mulf %114, %115 : vector<8x8xf32>
    %117 = vector.broadcast %32 : vector<1x8xf32> to vector<8x8xf32>
    %118 = arith.addf %116, %117 : vector<8x8xf32>
    %cst_65 = arith.constant dense<0xFF800000> : vector<8xf32>
    %119 = vector.multi_reduction <maximumf>, %118, %cst_65 [1] : vector<8x8xf32> to vector<8xf32>
    %120 = vector.shape_cast %119 : vector<8xf32> to vector<8x1xf32>
    %121 = vector.broadcast %120 : vector<8x1xf32> to vector<8x8xf32>
    %122 = arith.subf %118, %121 : vector<8x8xf32>
    %123 = math.exp %122 : vector<8x8xf32>
    %cst_66 = arith.constant dense<0.000000e+00> : vector<8xf32>
    %124 = vector.multi_reduction <add>, %123, %cst_66 [1] : vector<8x8xf32> to vector<8xf32>
    %125 = vector.shape_cast %124 : vector<8xf32> to vector<8x1xf32>
    %126 = tpu.reciprocal %125 {approx = true} : vector<8x1xf32> -> vector<8x1xf32>
    %127 = vector.broadcast %126 : vector<8x1xf32> to vector<8x8xf32>
    %128 = arith.mulf %123, %127 : vector<8x8xf32>
    %129 = arith.truncf %128 : vector<8x8xf32> to vector<8x8xbf16>
    %130 = arith.truncf %111 : vector<8x16xf32> to vector<8x16xbf16>
    %cst_67 = arith.constant dense<0.000000e+00> : vector<8x16xf32>
    %131 = tpu.matmul %129, %130, %cst_67 {dimension_numbers = #tpu.dot_dimension_numbers<[1], [0], [0], [1], [0, 0, 1, 1], [], []>} : vector<8x8xbf16>, vector<8x16xbf16>, vector<8x16xf32> -> vector<8x16xf32>
    %c1_68 = arith.constant 1 : index
    %c0_69 = arith.constant 0 : index
    %c0_70 = arith.constant 0 : index
    %132 = vector.load %arg9[%c1_68, %c0_69, %c0_70] : memref<4x16x32xf32, #tpu.memory_space<vmem>>, vector<1x16x32xf32>
    %133 = vector.shape_cast %132 : vector<1x16x32xf32> to vector<16x32xf32>
    %134 = arith.truncf %131 : vector<8x16xf32> to vector<8x16xbf16>
    %135 = arith.truncf %133 : vector<16x32xf32> to vector<16x32xbf16>
    %cst_71 = arith.constant dense<0.000000e+00> : vector<8x32xf32>
    %136 = tpu.matmul %134, %135, %cst_71 {dimension_numbers = #tpu.dot_dimension_numbers<[1], [0], [0], [1], [0, 0, 1, 1], [], []>} : vector<8x16xbf16>, vector<16x32xbf16>, vector<8x32xf32> -> vector<8x32xf32>
    %137 = arith.addf %84, %136 : vector<8x32xf32>
    %c0_72 = arith.constant 0 : index
    %c0_73 = arith.constant 0 : index
    %c0_74 = arith.constant 0 : index
    %138 = vector.load %arg10[%c0_72, %c0_73, %c0_74] : memref<2x1x32xf32, #tpu.memory_space<vmem>>, vector<1x1x32xf32>
    %139 = vector.shape_cast %138 : vector<1x1x32xf32> to vector<1x32xf32>
    %140 = vector.broadcast %139 : vector<1x32xf32> to vector<8x32xf32>
    %141 = arith.addf %137, %140 : vector<8x32xf32>
    %142 = arith.addf %30, %141 : vector<8x32xf32>
    %c0_75 = arith.constant 0 : index
    %c0_76 = arith.constant 0 : index
    %c0_77 = arith.constant 0 : index
    %143 = vector.load %arg11[%c0_75, %c0_76, %c0_77] : memref<2x1x32xf32, #tpu.memory_space<vmem>>, vector<1x1x32xf32>
    %144 = vector.shape_cast %143 : vector<1x1x32xf32> to vector<1x32xf32>
    %c0_78 = arith.constant 0 : index
    %c0_79 = arith.constant 0 : index
    %c0_80 = arith.constant 0 : index
    %145 = vector.load %arg12[%c0_78, %c0_79, %c0_80] : memref<2x1x32xf32, #tpu.memory_space<vmem>>, vector<1x1x32xf32>
    %146 = vector.shape_cast %145 : vector<1x1x32xf32> to vector<1x32xf32>
    %cst_81 = arith.constant dense<0.000000e+00> : vector<8xf32>
    %147 = vector.multi_reduction <add>, %142, %cst_81 [1] : vector<8x32xf32> to vector<8xf32>
    %148 = vector.shape_cast %147 : vector<8xf32> to vector<8x1xf32>
    %cst_82 = arith.constant 3.200000e+01 : f32
    %149 = vector.broadcast %cst_82 : f32 to vector<8x1xf32>
    %150 = arith.divf %148, %149 : vector<8x1xf32>
    %151 = vector.broadcast %150 : vector<8x1xf32> to vector<8x32xf32>
    %152 = arith.subf %142, %151 : vector<8x32xf32>
    %153 = arith.mulf %152, %152 : vector<8x32xf32>
    %cst_83 = arith.constant dense<0.000000e+00> : vector<8xf32>
    %154 = vector.multi_reduction <add>, %153, %cst_83 [1] : vector<8x32xf32> to vector<8xf32>
    %155 = vector.shape_cast %154 : vector<8xf32> to vector<8x1xf32>
    %cst_84 = arith.constant 3.200000e+01 : f32
    %156 = vector.broadcast %cst_84 : f32 to vector<8x1xf32>
    %157 = arith.divf %155, %156 : vector<8x1xf32>
    %158 = vector.broadcast %150 : vector<8x1xf32> to vector<8x32xf32>
    %159 = arith.subf %142, %158 : vector<8x32xf32>
    %cst_85 = arith.constant 9.99999996E-13 : f32
    %160 = vector.broadcast %cst_85 : f32 to vector<8x1xf32>
    %161 = arith.addf %157, %160 : vector<8x1xf32>
    %162 = math.rsqrt %161 : vector<8x1xf32>
    %163 = vector.broadcast %162 : vector<8x1xf32> to vector<8x32xf32>
    %164 = arith.mulf %159, %163 : vector<8x32xf32>
    %165 = vector.broadcast %144 : vector<1x32xf32> to vector<8x32xf32>
    %166 = arith.mulf %164, %165 : vector<8x32xf32>
    %167 = vector.broadcast %146 : vector<1x32xf32> to vector<8x32xf32>
    %168 = arith.addf %166, %167 : vector<8x32xf32>
    %c0_86 = arith.constant 0 : index
    %c0_87 = arith.constant 0 : index
    %c0_88 = arith.constant 0 : index
    %169 = vector.load %arg13[%c0_86, %c0_87, %c0_88] : memref<2x32x128xf32, #tpu.memory_space<vmem>>, vector<1x32x128xf32>
    %170 = vector.shape_cast %169 : vector<1x32x128xf32> to vector<32x128xf32>
    %c0_89 = arith.constant 0 : index
    %c0_90 = arith.constant 0 : index
    %c0_91 = arith.constant 0 : index
    %171 = vector.load %arg14[%c0_89, %c0_90, %c0_91] : memref<2x1x128xf32, #tpu.memory_space<vmem>>, vector<1x1x128xf32>
    %172 = vector.shape_cast %171 : vector<1x1x128xf32> to vector<1x128xf32>
    %173 = arith.truncf %168 : vector<8x32xf32> to vector<8x32xbf16>
    %174 = arith.truncf %170 : vector<32x128xf32> to vector<32x128xbf16>
    %cst_92 = arith.constant dense<0.000000e+00> : vector<8x128xf32>
    %175 = tpu.matmul %173, %174, %cst_92 {dimension_numbers = #tpu.dot_dimension_numbers<[1], [0], [0], [1], [0, 0, 1, 1], [], []>} : vector<8x32xbf16>, vector<32x128xbf16>, vector<8x128xf32> -> vector<8x128xf32>
    %176 = vector.broadcast %172 : vector<1x128xf32> to vector<8x128xf32>
    %177 = arith.addf %175, %176 : vector<8x128xf32>
    %178 = arith.mulf %177, %177 : vector<8x128xf32>
    %179 = arith.mulf %177, %178 : vector<8x128xf32>
    %cst_93 = arith.constant 4.471500e-02 : f32
    %180 = vector.broadcast %cst_93 : f32 to vector<8x128xf32>
    %181 = arith.mulf %180, %179 : vector<8x128xf32>
    %182 = arith.addf %177, %181 : vector<8x128xf32>
    %cst_94 = arith.constant 0.797884583 : f32
    %183 = vector.broadcast %cst_94 : f32 to vector<8x128xf32>
    %184 = arith.mulf %183, %182 : vector<8x128xf32>
    %185 = math.tanh %184 : vector<8x128xf32>
    %cst_95 = arith.constant 1.000000e+00 : f32
    %186 = vector.broadcast %cst_95 : f32 to vector<8x128xf32>
    %187 = arith.addf %186, %185 : vector<8x128xf32>
    %cst_96 = arith.constant 5.000000e-01 : f32
    %188 = vector.broadcast %cst_96 : f32 to vector<8x128xf32>
    %189 = arith.mulf %188, %187 : vector<8x128xf32>
    %190 = arith.mulf %177, %189 : vector<8x128xf32>
    %c0_97 = arith.constant 0 : index
    %c0_98 = arith.constant 0 : index
    %c0_99 = arith.constant 0 : index
    %191 = vector.load %arg15[%c0_97, %c0_98, %c0_99] : memref<2x128x32xf32, #tpu.memory_space<vmem>>, vector<1x128x32xf32>
    %192 = vector.shape_cast %191 : vector<1x128x32xf32> to vector<128x32xf32>
    %c0_100 = arith.constant 0 : index
    %c0_101 = arith.constant 0 : index
    %c0_102 = arith.constant 0 : index
    %193 = vector.load %arg16[%c0_100, %c0_101, %c0_102] : memref<2x1x32xf32, #tpu.memory_space<vmem>>, vector<1x1x32xf32>
    %194 = vector.shape_cast %193 : vector<1x1x32xf32> to vector<1x32xf32>
    %195 = arith.truncf %190 : vector<8x128xf32> to vector<8x128xbf16>
    %196 = arith.truncf %192 : vector<128x32xf32> to vector<128x32xbf16>
    %cst_103 = arith.constant dense<0.000000e+00> : vector<8x32xf32>
    %197 = tpu.matmul %195, %196, %cst_103 {dimension_numbers = #tpu.dot_dimension_numbers<[1], [0], [0], [1], [0, 0, 1, 1], [], []>} : vector<8x128xbf16>, vector<128x32xbf16>, vector<8x32xf32> -> vector<8x32xf32>
    %198 = vector.broadcast %194 : vector<1x32xf32> to vector<8x32xf32>
    %199 = arith.addf %197, %198 : vector<8x32xf32>
    %200 = arith.addf %168, %199 : vector<8x32xf32>
    %c0_104 = arith.constant 0 : index
    %c0_105 = arith.constant 0 : index
    %c0_106 = arith.constant 0 : index
    %201 = vector.load %arg17[%c0_104, %c0_105, %c0_106] : memref<2x1x32xf32, #tpu.memory_space<vmem>>, vector<1x1x32xf32>
    %202 = vector.shape_cast %201 : vector<1x1x32xf32> to vector<1x32xf32>
    %c0_107 = arith.constant 0 : index
    %c0_108 = arith.constant 0 : index
    %c0_109 = arith.constant 0 : index
    %203 = vector.load %arg18[%c0_107, %c0_108, %c0_109] : memref<2x1x32xf32, #tpu.memory_space<vmem>>, vector<1x1x32xf32>
    %204 = vector.shape_cast %203 : vector<1x1x32xf32> to vector<1x32xf32>
    %cst_110 = arith.constant dense<0.000000e+00> : vector<8xf32>
    %205 = vector.multi_reduction <add>, %200, %cst_110 [1] : vector<8x32xf32> to vector<8xf32>
    %206 = vector.shape_cast %205 : vector<8xf32> to vector<8x1xf32>
    %cst_111 = arith.constant 3.200000e+01 : f32
    %207 = vector.broadcast %cst_111 : f32 to vector<8x1xf32>
    %208 = arith.divf %206, %207 : vector<8x1xf32>
    %209 = vector.broadcast %208 : vector<8x1xf32> to vector<8x32xf32>
    %210 = arith.subf %200, %209 : vector<8x32xf32>
    %211 = arith.mulf %210, %210 : vector<8x32xf32>
    %cst_112 = arith.constant dense<0.000000e+00> : vector<8xf32>
    %212 = vector.multi_reduction <add>, %211, %cst_112 [1] : vector<8x32xf32> to vector<8xf32>
    %213 = vector.shape_cast %212 : vector<8xf32> to vector<8x1xf32>
    %cst_113 = arith.constant 3.200000e+01 : f32
    %214 = vector.broadcast %cst_113 : f32 to vector<8x1xf32>
    %215 = arith.divf %213, %214 : vector<8x1xf32>
    %216 = vector.broadcast %208 : vector<8x1xf32> to vector<8x32xf32>
    %217 = arith.subf %200, %216 : vector<8x32xf32>
    %cst_114 = arith.constant 9.99999996E-13 : f32
    %218 = vector.broadcast %cst_114 : f32 to vector<8x1xf32>
    %219 = arith.addf %215, %218 : vector<8x1xf32>
    %220 = math.rsqrt %219 : vector<8x1xf32>
    %221 = vector.broadcast %220 : vector<8x1xf32> to vector<8x32xf32>
    %222 = arith.mulf %217, %221 : vector<8x32xf32>
    %223 = vector.broadcast %202 : vector<1x32xf32> to vector<8x32xf32>
    %224 = arith.mulf %222, %223 : vector<8x32xf32>
    %225 = vector.broadcast %204 : vector<1x32xf32> to vector<8x32xf32>
    %226 = arith.addf %224, %225 : vector<8x32xf32>
    %c6 = arith.constant 6 : index
    %c0_115 = arith.constant 0 : index
    %c0_116 = arith.constant 0 : index
    %227 = vector.load %arg7[%c6, %c0_115, %c0_116] : memref<12x32x16xf32, #tpu.memory_space<vmem>>, vector<1x32x16xf32>
    %228 = vector.shape_cast %227 : vector<1x32x16xf32> to vector<32x16xf32>
    %c6_117 = arith.constant 6 : index
    %c0_118 = arith.constant 0 : index
    %c0_119 = arith.constant 0 : index
    %229 = vector.load %arg8[%c6_117, %c0_118, %c0_119] : memref<12x1x16xf32, #tpu.memory_space<vmem>>, vector<1x1x16xf32>
    %230 = vector.shape_cast %229 : vector<1x1x16xf32> to vector<1x16xf32>
    %231 = arith.truncf %226 : vector<8x32xf32> to vector<8x32xbf16>
    %232 = arith.truncf %228 : vector<32x16xf32> to vector<32x16xbf16>
    %cst_120 = arith.constant dense<0.000000e+00> : vector<8x16xf32>
    %233 = tpu.matmul %231, %232, %cst_120 {dimension_numbers = #tpu.dot_dimension_numbers<[1], [0], [0], [1], [0, 0, 1, 1], [], []>} : vector<8x32xbf16>, vector<32x16xbf16>, vector<8x16xf32> -> vector<8x16xf32>
    %234 = vector.broadcast %230 : vector<1x16xf32> to vector<8x16xf32>
    %235 = arith.addf %233, %234 : vector<8x16xf32>
    %c8 = arith.constant 8 : index
    %c0_121 = arith.constant 0 : index
    %c0_122 = arith.constant 0 : index
    %236 = vector.load %arg7[%c8, %c0_121, %c0_122] : memref<12x32x16xf32, #tpu.memory_space<vmem>>, vector<1x32x16xf32>
    %237 = vector.shape_cast %236 : vector<1x32x16xf32> to vector<32x16xf32>
    %c8_123 = arith.constant 8 : index
    %c0_124 = arith.constant 0 : index
    %c0_125 = arith.constant 0 : index
    %238 = vector.load %arg8[%c8_123, %c0_124, %c0_125] : memref<12x1x16xf32, #tpu.memory_space<vmem>>, vector<1x1x16xf32>
    %239 = vector.shape_cast %238 : vector<1x1x16xf32> to vector<1x16xf32>
    %240 = arith.truncf %226 : vector<8x32xf32> to vector<8x32xbf16>
    %241 = arith.truncf %237 : vector<32x16xf32> to vector<32x16xbf16>
    %cst_126 = arith.constant dense<0.000000e+00> : vector<8x16xf32>
    %242 = tpu.matmul %240, %241, %cst_126 {dimension_numbers = #tpu.dot_dimension_numbers<[1], [0], [0], [1], [0, 0, 1, 1], [], []>} : vector<8x32xbf16>, vector<32x16xbf16>, vector<8x16xf32> -> vector<8x16xf32>
    %243 = vector.broadcast %239 : vector<1x16xf32> to vector<8x16xf32>
    %244 = arith.addf %242, %243 : vector<8x16xf32>
    %c10 = arith.constant 10 : index
    %c0_127 = arith.constant 0 : index
    %c0_128 = arith.constant 0 : index
    %245 = vector.load %arg7[%c10, %c0_127, %c0_128] : memref<12x32x16xf32, #tpu.memory_space<vmem>>, vector<1x32x16xf32>
    %246 = vector.shape_cast %245 : vector<1x32x16xf32> to vector<32x16xf32>
    %c10_129 = arith.constant 10 : index
    %c0_130 = arith.constant 0 : index
    %c0_131 = arith.constant 0 : index
    %247 = vector.load %arg8[%c10_129, %c0_130, %c0_131] : memref<12x1x16xf32, #tpu.memory_space<vmem>>, vector<1x1x16xf32>
    %248 = vector.shape_cast %247 : vector<1x1x16xf32> to vector<1x16xf32>
    %249 = arith.truncf %226 : vector<8x32xf32> to vector<8x32xbf16>
    %250 = arith.truncf %246 : vector<32x16xf32> to vector<32x16xbf16>
    %cst_132 = arith.constant dense<0.000000e+00> : vector<8x16xf32>
    %251 = tpu.matmul %249, %250, %cst_132 {dimension_numbers = #tpu.dot_dimension_numbers<[1], [0], [0], [1], [0, 0, 1, 1], [], []>} : vector<8x32xbf16>, vector<32x16xbf16>, vector<8x16xf32> -> vector<8x16xf32>
    %252 = vector.broadcast %248 : vector<1x16xf32> to vector<8x16xf32>
    %253 = arith.addf %251, %252 : vector<8x16xf32>
    %254 = arith.truncf %235 : vector<8x16xf32> to vector<8x16xbf16>
    %255 = arith.truncf %244 : vector<8x16xf32> to vector<8x16xbf16>
    %cst_133 = arith.constant dense<0.000000e+00> : vector<8x8xf32>
    %256 = tpu.matmul %254, %255, %cst_133 {dimension_numbers = #tpu.dot_dimension_numbers<[1], [1], [0], [0], [0, 0, 1, 0], [], []>} : vector<8x16xbf16>, vector<8x16xbf16>, vector<8x8xf32> -> vector<8x8xf32>
    %cst_134 = arith.constant 2.500000e-01 : f32
    %257 = vector.broadcast %cst_134 : f32 to vector<8x8xf32>
    %258 = arith.mulf %256, %257 : vector<8x8xf32>
    %259 = vector.broadcast %32 : vector<1x8xf32> to vector<8x8xf32>
    %260 = arith.addf %258, %259 : vector<8x8xf32>
    %cst_135 = arith.constant dense<0xFF800000> : vector<8xf32>
    %261 = vector.multi_reduction <maximumf>, %260, %cst_135 [1] : vector<8x8xf32> to vector<8xf32>
    %262 = vector.shape_cast %261 : vector<8xf32> to vector<8x1xf32>
    %263 = vector.broadcast %262 : vector<8x1xf32> to vector<8x8xf32>
    %264 = arith.subf %260, %263 : vector<8x8xf32>
    %265 = math.exp %264 : vector<8x8xf32>
    %cst_136 = arith.constant dense<0.000000e+00> : vector<8xf32>
    %266 = vector.multi_reduction <add>, %265, %cst_136 [1] : vector<8x8xf32> to vector<8xf32>
    %267 = vector.shape_cast %266 : vector<8xf32> to vector<8x1xf32>
    %268 = tpu.reciprocal %267 {approx = true} : vector<8x1xf32> -> vector<8x1xf32>
    %269 = vector.broadcast %268 : vector<8x1xf32> to vector<8x8xf32>
    %270 = arith.mulf %265, %269 : vector<8x8xf32>
    %271 = arith.truncf %270 : vector<8x8xf32> to vector<8x8xbf16>
    %272 = arith.truncf %253 : vector<8x16xf32> to vector<8x16xbf16>
    %cst_137 = arith.constant dense<0.000000e+00> : vector<8x16xf32>
    %273 = tpu.matmul %271, %272, %cst_137 {dimension_numbers = #tpu.dot_dimension_numbers<[1], [0], [0], [1], [0, 0, 1, 1], [], []>} : vector<8x8xbf16>, vector<8x16xbf16>, vector<8x16xf32> -> vector<8x16xf32>
    %c2_138 = arith.constant 2 : index
    %c0_139 = arith.constant 0 : index
    %c0_140 = arith.constant 0 : index
    %274 = vector.load %arg9[%c2_138, %c0_139, %c0_140] : memref<4x16x32xf32, #tpu.memory_space<vmem>>, vector<1x16x32xf32>
    %275 = vector.shape_cast %274 : vector<1x16x32xf32> to vector<16x32xf32>
    %276 = arith.truncf %273 : vector<8x16xf32> to vector<8x16xbf16>
    %277 = arith.truncf %275 : vector<16x32xf32> to vector<16x32xbf16>
    %cst_141 = arith.constant dense<0.000000e+00> : vector<8x32xf32>
    %278 = tpu.matmul %276, %277, %cst_141 {dimension_numbers = #tpu.dot_dimension_numbers<[1], [0], [0], [1], [0, 0, 1, 1], [], []>} : vector<8x16xbf16>, vector<16x32xbf16>, vector<8x32xf32> -> vector<8x32xf32>
    %c7 = arith.constant 7 : index
    %c0_142 = arith.constant 0 : index
    %c0_143 = arith.constant 0 : index
    %279 = vector.load %arg7[%c7, %c0_142, %c0_143] : memref<12x32x16xf32, #tpu.memory_space<vmem>>, vector<1x32x16xf32>
    %280 = vector.shape_cast %279 : vector<1x32x16xf32> to vector<32x16xf32>
    %c7_144 = arith.constant 7 : index
    %c0_145 = arith.constant 0 : index
    %c0_146 = arith.constant 0 : index
    %281 = vector.load %arg8[%c7_144, %c0_145, %c0_146] : memref<12x1x16xf32, #tpu.memory_space<vmem>>, vector<1x1x16xf32>
    %282 = vector.shape_cast %281 : vector<1x1x16xf32> to vector<1x16xf32>
    %283 = arith.truncf %226 : vector<8x32xf32> to vector<8x32xbf16>
    %284 = arith.truncf %280 : vector<32x16xf32> to vector<32x16xbf16>
    %cst_147 = arith.constant dense<0.000000e+00> : vector<8x16xf32>
    %285 = tpu.matmul %283, %284, %cst_147 {dimension_numbers = #tpu.dot_dimension_numbers<[1], [0], [0], [1], [0, 0, 1, 1], [], []>} : vector<8x32xbf16>, vector<32x16xbf16>, vector<8x16xf32> -> vector<8x16xf32>
    %286 = vector.broadcast %282 : vector<1x16xf32> to vector<8x16xf32>
    %287 = arith.addf %285, %286 : vector<8x16xf32>
    %c9 = arith.constant 9 : index
    %c0_148 = arith.constant 0 : index
    %c0_149 = arith.constant 0 : index
    %288 = vector.load %arg7[%c9, %c0_148, %c0_149] : memref<12x32x16xf32, #tpu.memory_space<vmem>>, vector<1x32x16xf32>
    %289 = vector.shape_cast %288 : vector<1x32x16xf32> to vector<32x16xf32>
    %c9_150 = arith.constant 9 : index
    %c0_151 = arith.constant 0 : index
    %c0_152 = arith.constant 0 : index
    %290 = vector.load %arg8[%c9_150, %c0_151, %c0_152] : memref<12x1x16xf32, #tpu.memory_space<vmem>>, vector<1x1x16xf32>
    %291 = vector.shape_cast %290 : vector<1x1x16xf32> to vector<1x16xf32>
    %292 = arith.truncf %226 : vector<8x32xf32> to vector<8x32xbf16>
    %293 = arith.truncf %289 : vector<32x16xf32> to vector<32x16xbf16>
    %cst_153 = arith.constant dense<0.000000e+00> : vector<8x16xf32>
    %294 = tpu.matmul %292, %293, %cst_153 {dimension_numbers = #tpu.dot_dimension_numbers<[1], [0], [0], [1], [0, 0, 1, 1], [], []>} : vector<8x32xbf16>, vector<32x16xbf16>, vector<8x16xf32> -> vector<8x16xf32>
    %295 = vector.broadcast %291 : vector<1x16xf32> to vector<8x16xf32>
    %296 = arith.addf %294, %295 : vector<8x16xf32>
    %c11 = arith.constant 11 : index
    %c0_154 = arith.constant 0 : index
    %c0_155 = arith.constant 0 : index
    %297 = vector.load %arg7[%c11, %c0_154, %c0_155] : memref<12x32x16xf32, #tpu.memory_space<vmem>>, vector<1x32x16xf32>
    %298 = vector.shape_cast %297 : vector<1x32x16xf32> to vector<32x16xf32>
    %c11_156 = arith.constant 11 : index
    %c0_157 = arith.constant 0 : index
    %c0_158 = arith.constant 0 : index
    %299 = vector.load %arg8[%c11_156, %c0_157, %c0_158] : memref<12x1x16xf32, #tpu.memory_space<vmem>>, vector<1x1x16xf32>
    %300 = vector.shape_cast %299 : vector<1x1x16xf32> to vector<1x16xf32>
    %301 = arith.truncf %226 : vector<8x32xf32> to vector<8x32xbf16>
    %302 = arith.truncf %298 : vector<32x16xf32> to vector<32x16xbf16>
    %cst_159 = arith.constant dense<0.000000e+00> : vector<8x16xf32>
    %303 = tpu.matmul %301, %302, %cst_159 {dimension_numbers = #tpu.dot_dimension_numbers<[1], [0], [0], [1], [0, 0, 1, 1], [], []>} : vector<8x32xbf16>, vector<32x16xbf16>, vector<8x16xf32> -> vector<8x16xf32>
    %304 = vector.broadcast %300 : vector<1x16xf32> to vector<8x16xf32>
    %305 = arith.addf %303, %304 : vector<8x16xf32>
    %306 = arith.truncf %287 : vector<8x16xf32> to vector<8x16xbf16>
    %307 = arith.truncf %296 : vector<8x16xf32> to vector<8x16xbf16>
    %cst_160 = arith.constant dense<0.000000e+00> : vector<8x8xf32>
    %308 = tpu.matmul %306, %307, %cst_160 {dimension_numbers = #tpu.dot_dimension_numbers<[1], [1], [0], [0], [0, 0, 1, 0], [], []>} : vector<8x16xbf16>, vector<8x16xbf16>, vector<8x8xf32> -> vector<8x8xf32>
    %cst_161 = arith.constant 2.500000e-01 : f32
    %309 = vector.broadcast %cst_161 : f32 to vector<8x8xf32>
    %310 = arith.mulf %308, %309 : vector<8x8xf32>
    %311 = vector.broadcast %32 : vector<1x8xf32> to vector<8x8xf32>
    %312 = arith.addf %310, %311 : vector<8x8xf32>
    %cst_162 = arith.constant dense<0xFF800000> : vector<8xf32>
    %313 = vector.multi_reduction <maximumf>, %312, %cst_162 [1] : vector<8x8xf32> to vector<8xf32>
    %314 = vector.shape_cast %313 : vector<8xf32> to vector<8x1xf32>
    %315 = vector.broadcast %314 : vector<8x1xf32> to vector<8x8xf32>
    %316 = arith.subf %312, %315 : vector<8x8xf32>
    %317 = math.exp %316 : vector<8x8xf32>
    %cst_163 = arith.constant dense<0.000000e+00> : vector<8xf32>
    %318 = vector.multi_reduction <add>, %317, %cst_163 [1] : vector<8x8xf32> to vector<8xf32>
    %319 = vector.shape_cast %318 : vector<8xf32> to vector<8x1xf32>
    %320 = tpu.reciprocal %319 {approx = true} : vector<8x1xf32> -> vector<8x1xf32>
    %321 = vector.broadcast %320 : vector<8x1xf32> to vector<8x8xf32>
    %322 = arith.mulf %317, %321 : vector<8x8xf32>
    %323 = arith.truncf %322 : vector<8x8xf32> to vector<8x8xbf16>
    %324 = arith.truncf %305 : vector<8x16xf32> to vector<8x16xbf16>
    %cst_164 = arith.constant dense<0.000000e+00> : vector<8x16xf32>
    %325 = tpu.matmul %323, %324, %cst_164 {dimension_numbers = #tpu.dot_dimension_numbers<[1], [0], [0], [1], [0, 0, 1, 1], [], []>} : vector<8x8xbf16>, vector<8x16xbf16>, vector<8x16xf32> -> vector<8x16xf32>
    %c3_165 = arith.constant 3 : index
    %c0_166 = arith.constant 0 : index
    %c0_167 = arith.constant 0 : index
    %326 = vector.load %arg9[%c3_165, %c0_166, %c0_167] : memref<4x16x32xf32, #tpu.memory_space<vmem>>, vector<1x16x32xf32>
    %327 = vector.shape_cast %326 : vector<1x16x32xf32> to vector<16x32xf32>
    %328 = arith.truncf %325 : vector<8x16xf32> to vector<8x16xbf16>
    %329 = arith.truncf %327 : vector<16x32xf32> to vector<16x32xbf16>
    %cst_168 = arith.constant dense<0.000000e+00> : vector<8x32xf32>
    %330 = tpu.matmul %328, %329, %cst_168 {dimension_numbers = #tpu.dot_dimension_numbers<[1], [0], [0], [1], [0, 0, 1, 1], [], []>} : vector<8x16xbf16>, vector<16x32xbf16>, vector<8x32xf32> -> vector<8x32xf32>
    %331 = arith.addf %278, %330 : vector<8x32xf32>
    %c1_169 = arith.constant 1 : index
    %c0_170 = arith.constant 0 : index
    %c0_171 = arith.constant 0 : index
    %332 = vector.load %arg10[%c1_169, %c0_170, %c0_171] : memref<2x1x32xf32, #tpu.memory_space<vmem>>, vector<1x1x32xf32>
    %333 = vector.shape_cast %332 : vector<1x1x32xf32> to vector<1x32xf32>
    %334 = vector.broadcast %333 : vector<1x32xf32> to vector<8x32xf32>
    %335 = arith.addf %331, %334 : vector<8x32xf32>
    %336 = arith.addf %226, %335 : vector<8x32xf32>
    %c1_172 = arith.constant 1 : index
    %c0_173 = arith.constant 0 : index
    %c0_174 = arith.constant 0 : index
    %337 = vector.load %arg11[%c1_172, %c0_173, %c0_174] : memref<2x1x32xf32, #tpu.memory_space<vmem>>, vector<1x1x32xf32>
    %338 = vector.shape_cast %337 : vector<1x1x32xf32> to vector<1x32xf32>
    %c1_175 = arith.constant 1 : index
    %c0_176 = arith.constant 0 : index
    %c0_177 = arith.constant 0 : index
    %339 = vector.load %arg12[%c1_175, %c0_176, %c0_177] : memref<2x1x32xf32, #tpu.memory_space<vmem>>, vector<1x1x32xf32>
    %340 = vector.shape_cast %339 : vector<1x1x32xf32> to vector<1x32xf32>
    %cst_178 = arith.constant dense<0.000000e+00> : vector<8xf32>
    %341 = vector.multi_reduction <add>, %336, %cst_178 [1] : vector<8x32xf32> to vector<8xf32>
    %342 = vector.shape_cast %341 : vector<8xf32> to vector<8x1xf32>
    %cst_179 = arith.constant 3.200000e+01 : f32
    %343 = vector.broadcast %cst_179 : f32 to vector<8x1xf32>
    %344 = arith.divf %342, %343 : vector<8x1xf32>
    %345 = vector.broadcast %344 : vector<8x1xf32> to vector<8x32xf32>
    %346 = arith.subf %336, %345 : vector<8x32xf32>
    %347 = arith.mulf %346, %346 : vector<8x32xf32>
    %cst_180 = arith.constant dense<0.000000e+00> : vector<8xf32>
    %348 = vector.multi_reduction <add>, %347, %cst_180 [1] : vector<8x32xf32> to vector<8xf32>
    %349 = vector.shape_cast %348 : vector<8xf32> to vector<8x1xf32>
    %cst_181 = arith.constant 3.200000e+01 : f32
    %350 = vector.broadcast %cst_181 : f32 to vector<8x1xf32>
    %351 = arith.divf %349, %350 : vector<8x1xf32>
    %352 = vector.broadcast %344 : vector<8x1xf32> to vector<8x32xf32>
    %353 = arith.subf %336, %352 : vector<8x32xf32>
    %cst_182 = arith.constant 9.99999996E-13 : f32
    %354 = vector.broadcast %cst_182 : f32 to vector<8x1xf32>
    %355 = arith.addf %351, %354 : vector<8x1xf32>
    %356 = math.rsqrt %355 : vector<8x1xf32>
    %357 = vector.broadcast %356 : vector<8x1xf32> to vector<8x32xf32>
    %358 = arith.mulf %353, %357 : vector<8x32xf32>
    %359 = vector.broadcast %338 : vector<1x32xf32> to vector<8x32xf32>
    %360 = arith.mulf %358, %359 : vector<8x32xf32>
    %361 = vector.broadcast %340 : vector<1x32xf32> to vector<8x32xf32>
    %362 = arith.addf %360, %361 : vector<8x32xf32>
    %c1_183 = arith.constant 1 : index
    %c0_184 = arith.constant 0 : index
    %c0_185 = arith.constant 0 : index
    %363 = vector.load %arg13[%c1_183, %c0_184, %c0_185] : memref<2x32x128xf32, #tpu.memory_space<vmem>>, vector<1x32x128xf32>
    %364 = vector.shape_cast %363 : vector<1x32x128xf32> to vector<32x128xf32>
    %c1_186 = arith.constant 1 : index
    %c0_187 = arith.constant 0 : index
    %c0_188 = arith.constant 0 : index
    %365 = vector.load %arg14[%c1_186, %c0_187, %c0_188] : memref<2x1x128xf32, #tpu.memory_space<vmem>>, vector<1x1x128xf32>
    %366 = vector.shape_cast %365 : vector<1x1x128xf32> to vector<1x128xf32>
    %367 = arith.truncf %362 : vector<8x32xf32> to vector<8x32xbf16>
    %368 = arith.truncf %364 : vector<32x128xf32> to vector<32x128xbf16>
    %cst_189 = arith.constant dense<0.000000e+00> : vector<8x128xf32>
    %369 = tpu.matmul %367, %368, %cst_189 {dimension_numbers = #tpu.dot_dimension_numbers<[1], [0], [0], [1], [0, 0, 1, 1], [], []>} : vector<8x32xbf16>, vector<32x128xbf16>, vector<8x128xf32> -> vector<8x128xf32>
    %370 = vector.broadcast %366 : vector<1x128xf32> to vector<8x128xf32>
    %371 = arith.addf %369, %370 : vector<8x128xf32>
    %372 = arith.mulf %371, %371 : vector<8x128xf32>
    %373 = arith.mulf %371, %372 : vector<8x128xf32>
    %cst_190 = arith.constant 4.471500e-02 : f32
    %374 = vector.broadcast %cst_190 : f32 to vector<8x128xf32>
    %375 = arith.mulf %374, %373 : vector<8x128xf32>
    %376 = arith.addf %371, %375 : vector<8x128xf32>
    %cst_191 = arith.constant 0.797884583 : f32
    %377 = vector.broadcast %cst_191 : f32 to vector<8x128xf32>
    %378 = arith.mulf %377, %376 : vector<8x128xf32>
    %379 = math.tanh %378 : vector<8x128xf32>
    %cst_192 = arith.constant 1.000000e+00 : f32
    %380 = vector.broadcast %cst_192 : f32 to vector<8x128xf32>
    %381 = arith.addf %380, %379 : vector<8x128xf32>
    %cst_193 = arith.constant 5.000000e-01 : f32
    %382 = vector.broadcast %cst_193 : f32 to vector<8x128xf32>
    %383 = arith.mulf %382, %381 : vector<8x128xf32>
    %384 = arith.mulf %371, %383 : vector<8x128xf32>
    %c1_194 = arith.constant 1 : index
    %c0_195 = arith.constant 0 : index
    %c0_196 = arith.constant 0 : index
    %385 = vector.load %arg15[%c1_194, %c0_195, %c0_196] : memref<2x128x32xf32, #tpu.memory_space<vmem>>, vector<1x128x32xf32>
    %386 = vector.shape_cast %385 : vector<1x128x32xf32> to vector<128x32xf32>
    %c1_197 = arith.constant 1 : index
    %c0_198 = arith.constant 0 : index
    %c0_199 = arith.constant 0 : index
    %387 = vector.load %arg16[%c1_197, %c0_198, %c0_199] : memref<2x1x32xf32, #tpu.memory_space<vmem>>, vector<1x1x32xf32>
    %388 = vector.shape_cast %387 : vector<1x1x32xf32> to vector<1x32xf32>
    %389 = arith.truncf %384 : vector<8x128xf32> to vector<8x128xbf16>
    %390 = arith.truncf %386 : vector<128x32xf32> to vector<128x32xbf16>
    %cst_200 = arith.constant dense<0.000000e+00> : vector<8x32xf32>
    %391 = tpu.matmul %389, %390, %cst_200 {dimension_numbers = #tpu.dot_dimension_numbers<[1], [0], [0], [1], [0, 0, 1, 1], [], []>} : vector<8x128xbf16>, vector<128x32xbf16>, vector<8x32xf32> -> vector<8x32xf32>
    %392 = vector.broadcast %388 : vector<1x32xf32> to vector<8x32xf32>
    %393 = arith.addf %391, %392 : vector<8x32xf32>
    %394 = arith.addf %362, %393 : vector<8x32xf32>
    %c1_201 = arith.constant 1 : index
    %c0_202 = arith.constant 0 : index
    %c0_203 = arith.constant 0 : index
    %395 = vector.load %arg17[%c1_201, %c0_202, %c0_203] : memref<2x1x32xf32, #tpu.memory_space<vmem>>, vector<1x1x32xf32>
    %396 = vector.shape_cast %395 : vector<1x1x32xf32> to vector<1x32xf32>
    %c1_204 = arith.constant 1 : index
    %c0_205 = arith.constant 0 : index
    %c0_206 = arith.constant 0 : index
    %397 = vector.load %arg18[%c1_204, %c0_205, %c0_206] : memref<2x1x32xf32, #tpu.memory_space<vmem>>, vector<1x1x32xf32>
    %398 = vector.shape_cast %397 : vector<1x1x32xf32> to vector<1x32xf32>
    %cst_207 = arith.constant dense<0.000000e+00> : vector<8xf32>
    %399 = vector.multi_reduction <add>, %394, %cst_207 [1] : vector<8x32xf32> to vector<8xf32>
    %400 = vector.shape_cast %399 : vector<8xf32> to vector<8x1xf32>
    %cst_208 = arith.constant 3.200000e+01 : f32
    %401 = vector.broadcast %cst_208 : f32 to vector<8x1xf32>
    %402 = arith.divf %400, %401 : vector<8x1xf32>
    %403 = vector.broadcast %402 : vector<8x1xf32> to vector<8x32xf32>
    %404 = arith.subf %394, %403 : vector<8x32xf32>
    %405 = arith.mulf %404, %404 : vector<8x32xf32>
    %cst_209 = arith.constant dense<0.000000e+00> : vector<8xf32>
    %406 = vector.multi_reduction <add>, %405, %cst_209 [1] : vector<8x32xf32> to vector<8xf32>
    %407 = vector.shape_cast %406 : vector<8xf32> to vector<8x1xf32>
    %cst_210 = arith.constant 3.200000e+01 : f32
    %408 = vector.broadcast %cst_210 : f32 to vector<8x1xf32>
    %409 = arith.divf %407, %408 : vector<8x1xf32>
    %410 = vector.broadcast %402 : vector<8x1xf32> to vector<8x32xf32>
    %411 = arith.subf %394, %410 : vector<8x32xf32>
    %cst_211 = arith.constant 9.99999996E-13 : f32
    %412 = vector.broadcast %cst_211 : f32 to vector<8x1xf32>
    %413 = arith.addf %409, %412 : vector<8x1xf32>
    %414 = math.rsqrt %413 : vector<8x1xf32>
    %415 = vector.broadcast %414 : vector<8x1xf32> to vector<8x32xf32>
    %416 = arith.mulf %411, %415 : vector<8x32xf32>
    %417 = vector.broadcast %396 : vector<1x32xf32> to vector<8x32xf32>
    %418 = arith.mulf %416, %417 : vector<8x32xf32>
    %419 = vector.broadcast %398 : vector<1x32xf32> to vector<8x32xf32>
    %420 = arith.addf %418, %419 : vector<8x32xf32>
    %421 = vector.extract_strided_slice %420 {offsets = [0, 0], sizes = [1, 32], strides = [1, 1]} : vector<8x32xf32> to vector<1x32xf32>
    %c0_212 = arith.constant 0 : index
    %c0_213 = arith.constant 0 : index
    %c0_214 = arith.constant 0 : index
    %422 = vector.load %arg19[%c0_212, %c0_213, %c0_214] : memref<1x1x32xf32, #tpu.memory_space<vmem>>, vector<1x1x32xf32>
    %423 = vector.shape_cast %422 : vector<1x1x32xf32> to vector<1x32xf32>
    %424 = vector.shape_cast %421 : vector<1x32xf32> to vector<1x1x32xf32>
    tpu.vector_store %arg19[%c0_212, %c0_213, %c0_214], %424 {strides = array<i32>} : memref<1x1x32xf32, #tpu.memory_space<vmem>>, vector<1x1x32xf32>,
    return
  }
  func.func @transform_0(%arg0: i32) -> (i32, i32, i32) {
    %c0_i32 = arith.constant 0 : i32
    %c0_i32_0 = arith.constant 0 : i32
    %c0_i32_1 = arith.constant 0 : i32
    return %arg0, %c0_i32, %c0_i32_0 : i32, i32, i32
  }
  func.func @transform_1(%arg0: i32) -> (i32, i32, i32) {
    %c0_i32 = arith.constant 0 : i32
    %c0_i32_0 = arith.constant 0 : i32
    %c0_i32_1 = arith.constant 0 : i32
    return %arg0, %c0_i32, %c0_i32_0 : i32, i32, i32
  }
  func.func @transform_2(%arg0: i32) -> (i32, i32) {
    %c0_i32 = arith.constant 0 : i32
    %c0_i32_0 = arith.constant 0 : i32
    %c0_i32_1 = arith.constant 0 : i32
    return %c0_i32, %c0_i32_0 : i32, i32
  }
  func.func @transform_3(%arg0: i32) -> (i32, i32) {
    %c0_i32 = arith.constant 0 : i32
    %c0_i32_0 = arith.constant 0 : i32
    %c0_i32_1 = arith.constant 0 : i32
    return %c0_i32, %c0_i32_0 : i32, i32
  }
  func.func @transform_4(%arg0: i32) -> (i32, i32) {
    %c0_i32 = arith.constant 0 : i32
    %c0_i32_0 = arith.constant 0 : i32
    %c0_i32_1 = arith.constant 0 : i32
    return %c0_i32, %c0_i32_0 : i32, i32
  }
  func.func @transform_5(%arg0: i32) -> (i32, i32) {
    %c0_i32 = arith.constant 0 : i32
    %c0_i32_0 = arith.constant 0 : i32
    %c0_i32_1 = arith.constant 0 : i32
    return %c0_i32, %c0_i32_0 : i32, i32
  }
  func.func @transform_6(%arg0: i32) -> (i32, i32, i32) {
    %c0_i32 = arith.constant 0 : i32
    %c0_i32_0 = arith.constant 0 : i32
    %c0_i32_1 = arith.constant 0 : i32
    %c0_i32_2 = arith.constant 0 : i32
    return %c0_i32, %c0_i32_0, %c0_i32_1 : i32, i32, i32
  }
  func.func @transform_7(%arg0: i32) -> (i32, i32, i32) {
    %c0_i32 = arith.constant 0 : i32
    %c0_i32_0 = arith.constant 0 : i32
    %c0_i32_1 = arith.constant 0 : i32
    %c0_i32_2 = arith.constant 0 : i32
    return %c0_i32, %c0_i32_0, %c0_i32_1 : i32, i32, i32
  }
  func.func @transform_8(%arg0: i32) -> (i32, i32, i32) {
    %c0_i32 = arith.constant 0 : i32
    %c0_i32_0 = arith.constant 0 : i32
    %c0_i32_1 = arith.constant 0 : i32
    %c0_i32_2 = arith.constant 0 : i32
    return %c0_i32, %c0_i32_0, %c0_i32_1 : i32, i32, i32
  }
  func.func @transform_9(%arg0: i32) -> (i32, i32, i32) {
    %c0_i32 = arith.constant 0 : i32
    %c0_i32_0 = arith.constant 0 : i32
    %c0_i32_1 = arith.constant 0 : i32
    %c0_i32_2 = arith.constant 0 : i32
    return %c0_i32, %c0_i32_0, %c0_i32_1 : i32, i32, i32
  }
  func.func @transform_10(%arg0: i32) -> (i32, i32, i32) {
    %c0_i32 = arith.constant 0 : i32
    %c0_i32_0 = arith.constant 0 : i32
    %c0_i32_1 = arith.constant 0 : i32
    %c0_i32_2 = arith.constant 0 : i32
    return %c0_i32, %c0_i32_0, %c0_i32_1 : i32, i32, i32
  }
  func.func @transform_11(%arg0: i32) -> (i32, i32, i32) {
    %c0_i32 = arith.constant 0 : i32
    %c0_i32_0 = arith.constant 0 : i32
    %c0_i32_1 = arith.constant 0 : i32
    %c0_i32_2 = arith.constant 0 : i32
    return %c0_i32, %c0_i32_0, %c0_i32_1 : i32, i32, i32
  }
  func.func @transform_12(%arg0: i32) -> (i32, i32, i32) {
    %c0_i32 = arith.constant 0 : i32
    %c0_i32_0 = arith.constant 0 : i32
    %c0_i32_1 = arith.constant 0 : i32
    %c0_i32_2 = arith.constant 0 : i32
    return %c0_i32, %c0_i32_0, %c0_i32_1 : i32, i32, i32
  }
  func.func @transform_13(%arg0: i32) -> (i32, i32, i32) {
    %c0_i32 = arith.constant 0 : i32
    %c0_i32_0 = arith.constant 0 : i32
    %c0_i32_1 = arith.constant 0 : i32
    %c0_i32_2 = arith.constant 0 : i32
    return %c0_i32, %c0_i32_0, %c0_i32_1 : i32, i32, i32
  }
  func.func @transform_14(%arg0: i32) -> (i32, i32, i32) {
    %c0_i32 = arith.constant 0 : i32
    %c0_i32_0 = arith.constant 0 : i32
    %c0_i32_1 = arith.constant 0 : i32
    %c0_i32_2 = arith.constant 0 : i32
    return %c0_i32, %c0_i32_0, %c0_i32_1 : i32, i32, i32
  }
  func.func @transform_15(%arg0: i32) -> (i32, i32, i32) {
    %c0_i32 = arith.constant 0 : i32
    %c0_i32_0 = arith.constant 0 : i32
    %c0_i32_1 = arith.constant 0 : i32
    %c0_i32_2 = arith.constant 0 : i32
    return %c0_i32, %c0_i32_0, %c0_i32_1 : i32, i32, i32
  }
  func.func @transform_16(%arg0: i32) -> (i32, i32, i32) {
    %c0_i32 = arith.constant 0 : i32
    %c0_i32_0 = arith.constant 0 : i32
    %c0_i32_1 = arith.constant 0 : i32
    %c0_i32_2 = arith.constant 0 : i32
    return %c0_i32, %c0_i32_0, %c0_i32_1 : i32, i32, i32
  }
  func.func @transform_17(%arg0: i32) -> (i32, i32, i32) {
    %c0_i32 = arith.constant 0 : i32
    %c0_i32_0 = arith.constant 0 : i32
    %c0_i32_1 = arith.constant 0 : i32
    %c0_i32_2 = arith.constant 0 : i32
    return %c0_i32, %c0_i32_0, %c0_i32_1 : i32, i32, i32
  }
  func.func @transform_18(%arg0: i32) -> (i32, i32, i32) {
    %c0_i32 = arith.constant 0 : i32
    %c0_i32_0 = arith.constant 0 : i32
    %c0_i32_1 = arith.constant 0 : i32
    return %arg0, %c0_i32, %c0_i32_0 : i32, i32, i32
  }
}

</mosaic_0001>

<llo_original>
// kernel: clip_forward.5
$region0: #{clip_forward.5}
  #allocation0 [shape = 'u32[]', space=smem, size = 0x4, offset = 0x4, fixed_abs, tag = 'smem constant byte address 0x4 - core index']
  #allocation1 [shape = 'u32[72,128]{1,0:T(1,128)}', space=vmem, size = 0x9000, scoped, tag = 'internal scratch']
  #allocation2 [shape = 'f32[1,1]{1,0:T(1,128)S(6)}', space=smem, size = 0x200, scoped, tag = 'scoped memory for clip_forward.5']
  %s0 = inlined_call_operand.vmem [shape: f32[2,32], index: 0, kind: input, shape index: {}]
  %s1 = inlined_call_operand.vmem [shape: f32[32,16], index: 1, kind: input, shape index: {}]
  %s2 = inlined_call_operand.vmem [shape: f32[1,16], index: 2, kind: input, shape index: {}]
  %s3 = inlined_call_operand.vmem [shape: f32[2,32], index: 3, kind: input, shape index: {}]
  %s4 = inlined_call_operand.vmem [shape: f32[32,16], index: 4, kind: input, shape index: {}]
  %s5 = inlined_call_operand.vmem [shape: f32[1,16], index: 5, kind: input, shape index: {}]
  %s6 = inlined_call_operand.<no memory space> [shape: f32[1,1], index: 6, kind: input, shape index: {}]
  %s7 = inlined_call_operand.hbm [shape: f32[1,1], index: 7, kind: output, shape index: {}]
  %s8 = sld [smem:[#allocation0]]
  $region38: #{clip_forward.5} parent=0
    _
  %s10 = ssub.s32 1, %s8
  %s11 = scalar_select 0, %s10, %s8
  %12 = sst [smem:[#allocation2]] %s6
  $region1: #{clip_forward.5} parent=0
    #allocation3 [shape = 'u8[512]{0}', space=vmem, size = 0x400, scoped, tag = 'output window, operand 0, single buffered']
    #allocation4 [shape = 's32[1]{0}', space=sflag, size = 0x4, scoped, tag = 'scoped memory for clip_forward.5']
    %13 = vsyncpa [#allocation4], 0
    // Predicated region
    $region2: #{clip_forward.5} parent=1 // pred_check
      _
    $region3: #{clip_forward.5} parent=1 // pred_check_branch
      %15 = sbr.rel (0) target = $region5
    $region4: #{clip_forward.5} parent=1 // pred_region
      _
    $region5: #{clip_forward.5} parent=1 // pred_fallthru
      _
    // Predicated region
    $region6: #{clip_forward.5} parent=1 // pred_check
      _
    $region7: #{clip_forward.5} parent=1 // pred_check_branch
      %17 = sbr.rel (0) target = $region9
    $region8: #{clip_forward.5} parent=1 // pred_region
      _
    $region9: #{clip_forward.5} parent=1 // pred_fallthru
      _
    // Predicated region
    $region10: #{clip_forward.5} parent=1 // pred_check
      _
    $region11: #{clip_forward.5} parent=1 // pred_check_branch
      %19 = sbr.rel (0) target = $region13
    $region12: #{clip_forward.5} parent=1 // pred_region
      _
    $region13: #{clip_forward.5} parent=1 // pred_fallthru
      _
    // Predicated region
    $region14: #{clip_forward.5} parent=1 // pred_check
      _
    $region15: #{clip_forward.5} parent=1 // pred_check_branch
      %21 = sbr.rel (0) target = $region17
    $region16: #{clip_forward.5} parent=1 // pred_region
      _
    $region17: #{clip_forward.5} parent=1 // pred_fallthru
      _
    // Predicated region
    $region18: #{clip_forward.5} parent=1 // pred_check
      _
    $region19: #{clip_forward.5} parent=1 // pred_check_branch
      %23 = sbr.rel (0) target = $region21
    $region20: #{clip_forward.5} parent=1 // pred_region
      _
    $region21: #{clip_forward.5} parent=1 // pred_fallthru
      _
    // Predicated region
    $region22: #{clip_forward.5} parent=1 // pred_check
      _
    $region23: #{clip_forward.5} parent=1 // pred_check_branch
      %25 = sbr.rel (0) target = $region25
    $region24: #{clip_forward.5} parent=1 // pred_region
      _
    $region25: #{clip_forward.5} parent=1 // pred_fallthru
      _
    // Predicated region
    $region26: #{clip_forward.5} parent=1 // pred_check
      _
    $region27: #{clip_forward.5} parent=1 // pred_check_branch
      %27 = sbr.rel (0) target = $region29
    $region28: #{clip_forward.5} parent=1 // pred_region
      _
    $region29: #{clip_forward.5} parent=1 // pred_fallthru
      _
    %s29 = sld [smem:[#allocation2]]
    %s30 = smax.f32 %s29, 0.001
    %s31 = smin.f32 %s30, 0.5
    %v32 = vld [vmem:[%s0] sm:$0x3]
    %v33 = vld [vmem:[%s1] sm:$0xff]
    %v34 = vld [vmem:[%s1 + $0x8] sm:$0xff]
    %v35 = vld [vmem:[%s1 + $0x10] sm:$0xff]
    %v36 = vld [vmem:[%s1 + $0x18] sm:$0xff]
    %v37 = vld [vmem:[%s2] sm:$0x1]
    %v38 = vpack.c.bf16 %v32, %v32
    %v39 = vpack.c.bf16 %v34, %v33
    %v40 = vpack.c.bf16 %v36, %v35
    %v42 = vperm.slane %v37, 0
    %vm44 = vcmask 261120
    %v46 = vsel %vm44, %v38, 0
    %48 = vmatpush.bf16.msra.mxu0 0
    %49 = vmatpush.bf16.msra.mxu0 0
    %50 = vmatpush.bf16.msra.mxu0 0
    %51 = vmatpush.bf16.msra.mxu0 0
    %52 = vmatpush.bf16.msra.mxu0 0
    %53 = vmatpush.bf16.msra.mxu0 0
    %54 = vmatpush.bf16.msra.mxu0 %v40
    %55 = vmatpush.bf16.msra.mxu0 %v39
    %56 = vmatmul.bf16.gmra.mxu0 %v46
    %v57 = vpop.f32.mrf.mxu0
    %v58 = vadd.f32 %v42, %v57
    %v59 = vpop.f32.mrf.mxu0
    %60 = vdwg.mxu0
    %v61 = vld [vmem:[%s3] sm:$0x3]
    %v62 = vld [vmem:[%s4] sm:$0xff]
    %v63 = vld [vmem:[%s4 + $0x8] sm:$0xff]
    %v64 = vld [vmem:[%s4 + $0x10] sm:$0xff]
    %v65 = vld [vmem:[%s4 + $0x18] sm:$0xff]
    %v66 = vld [vmem:[%s5] sm:$0x1]
    %v67 = vpack.c.bf16 %v61, %v61
    %v68 = vpack.c.bf16 %v63, %v62
    %v69 = vpack.c.bf16 %v65, %v64
    %v71 = vperm.slane %v66, 0
    %v74 = vsel %vm44, %v67, 0
    %76 = vmatpush.bf16.msra.mxu0 0
    %77 = vmatpush.bf16.msra.mxu0 0
    %78 = vmatpush.bf16.msra.mxu0 0
    %79 = vmatpush.bf16.msra.mxu0 0
    %80 = vmatpush.bf16.msra.mxu0 0
    %81 = vmatpush.bf16.msra.mxu0 0
    %82 = vmatpush.bf16.msra.mxu0 %v69
    %83 = vmatpush.bf16.msra.mxu0 %v68
    %84 = vmatmul.bf16.gmra.mxu0 %v74
    %v85 = vpop.f32.mrf.mxu0
    %v86 = vadd.f32 %v71, %v85
    %v87 = vpop.f32.mrf.mxu0
    %88 = vdwg.mxu0
    %v89 = vmul.f32 %v58, %v58
    %vm90 = vcmask 123904
    %v91 = vsel %vm90, %v89, 0.0
    %92 = vadd.xlane.f32.xlu0 %v91
    %v93 = vpop.xlane.xlu0 %92
    %v94 = vmax.f32 %v93, 1e-24
    %v95 = vrsqrt.pop %v94
    %v96 = vmul.f32 %v95, %v94
    %v97 = vmul.f32 %v96, %v95
    %v98 = vmul.f32 0.5, %v97
    %v99 = vsub.f32 1.5, %v98
    %v100 = vmul.f32 %v95, %v99
    %vm101 = vweird.f32 %v94
    %vm102 = vweird.f32 %v95
    %vm103 = vmor %vm101, %vm102
    %v104 = vsel %vm103, %v95, %v100
    %v105 = vmul.f32 %v58, %v104
    %v106 = vmul.f32 %v86, %v86
    %v107 = vsel %vm90, %v106, 0.0
    %108 = vadd.xlane.f32.xlu0 %v107
    %v109 = vpop.xlane.xlu0 %108
    %v110 = vmax.f32 %v109, 1e-24
    %v111 = vrsqrt.pop %v110
    %v112 = vmul.f32 %v111, %v110
    %v113 = vmul.f32 %v112, %v111
    %v114 = vmul.f32 0.5, %v113
    %v115 = vsub.f32 1.5, %v114
    %v116 = vmul.f32 %v111, %v115
    %vm117 = vweird.f32 %v110
    %vm118 = vweird.f32 %v111
    %vm119 = vmor %vm117, %vm118
    %v120 = vsel %vm119, %v111, %v116
    %v121 = vmul.f32 %v86, %v120
    %vm122 = vcmask 130048
    %v124 = vsel %vm122, %v105, 0
    %v127 = vsel %vm122, %v121, 0
    %129 = vmatpush.xpose.msra.mxu0 0.0
    %130 = vmatpush.xpose.msra.mxu0 0.0
    %131 = vmatpush.xpose.msra.mxu0 0.0
    %132 = vmatpush.xpose.msra.mxu0 0.0
    %133 = vmatpush.xpose.msra.mxu0 0.0
    %134 = vmatpush.xpose.msra.mxu0 0.0
    %135 = vmatpush.xpose.msra.mxu0 0.0
    %136 = vmatpush.xpose.msra.mxu0 0.0
    %137 = vmatpush.xpose.msra.mxu0 0.0
    %138 = vmatpush.xpose.msra.mxu0 0.0
    %139 = vmatpush.xpose.msra.mxu0 0.0
    %140 = vmatpush.xpose.msra.mxu0 0.0
    %141 = vmatpush.xpose.msra.mxu0 0.0
    %142 = vmatpush.xpose.msra.mxu0 0.0
    %143 = vmatpush.xpose.msra.mxu0 0.0
    %144 = vmatpush.xpose.msra.mxu0 %v127
    %145 = vmatmul.f32.gmra.mxu0 %v124
    %v146 = vpop.f32.mrf.mxu0
    %v147 = vadd.f32 0.0, %v146
    %148 = vdwg.mxu0
    %v149 = vstv %s31
    %v150 = vrcp.pop %v149
    %v151 = vmul.f32 %v149, %v150
    %v152 = vsub.f32 1.0, %v151
    %v153 = vmul.f32 %v150, %v152
    %v154 = vadd.f32 %v150, %v153
    %vm155 = vweird.f32 %v149
    %vm156 = vweird.f32 %v150
    %vm157 = vmor %vm155, %vm156
    %v158 = vsel %vm157, %v150, %v154
    %v159 = vand.u32 2147483647, %v149
    %vm160 = vcmp.eq.f32.partialorder %v159, 8.507059e+37
    %v161 = vand.u32 %v149, 2147483648
    %v162 = vor.u32 1.1754944e-38, %v161
    %v163 = vsel %vm160, %v162, %v158
    %v164 = vmul.f32 %v147, %v163
    %v165 = vlaneseq
    %v166 = vshrl.u32 %v165, 7
    %v167 = vlaneseq
    %v168 = vand.u32 %v167, 127
    %vm169 = vcmp.eq.s32.totalorder %v166, %v168
    %v170 = vsel %vm169, 1, 0
    %v171 = vcvt.s32.f32 %v170
    %vm172 = vcmask 9216
    %v173 = vsel %vm172, %v164, -inf
    %174 = vmax.xlane.f32.xlu0 %v173
    %v175 = vpop.xlane.xlu0 %174
    %v176 = vsub.f32 %v164, %v175
    %v177 = vmul.f32 %v176, 1.442695
    %v178 = vpow.pop %v177
    %v179 = vsel %vm172, %v178, 0.0
    %180 = vadd.xlane.f32.xlu0 %v179
    %v181 = vpop.xlane.xlu0 %180
    %v182 = vlog2.pop %v181
    %v183 = vmul.f32 %v182, 0.6931472
    %v184 = vsub.f32 %v176, %v183
    %v185 = vmul.f32 %v184, %v171
    %v186 = vsel %vm172, %v185, 0.0
    %187 = vadd.xlane.f32.xlu0 %v186
    %v188 = vpop.xlane.xlu0 %187
    %v189 = vsub.f32 0.0, %v188
    %vm190 = vcmask 1041408
    %v191 = vsel %vm190, %v189, 0.0
    %v192 = vrot.slane %v191, 4
    %v193 = vadd.f32 %v191, %v192
    %v194 = vrot.slane %v193, 2
    %v195 = vadd.f32 %v193, %v194
    %v196 = vrot.slane %v195, 1
    %v197 = vadd.f32 %v195, %v196
    %v198 = vrcp.pop 2.0
    %v199 = vmul.f32 2.0, %v198
    %v200 = vsub.f32 1.0, %v199
    %v201 = vmul.f32 %v198, %v200
    %v202 = vadd.f32 %v198, %v201
    %vm203 = vweird.f32 %v198
    %v204 = vsel %vm203, %v198, %v202
    %v205 = vmul.f32 %v197, %v204
    %v206 = vrot.slane %v173, 4
    %v207 = vmax.f32 %v173, %v206
    %v208 = vrot.slane %v207, 2
    %v209 = vmax.f32 %v207, %v208
    %v210 = vrot.slane %v209, 1
    %v211 = vmax.f32 %v209, %v210
    %v212 = vsub.f32 %v164, %v211
    %v213 = vmul.f32 %v212, 1.442695
    %v214 = vpow.pop %v213
    %v215 = vsel %vm172, %v214, 0.0
    %v216 = vrot.slane %v215, 4
    %v217 = vadd.f32 %v215, %v216
    %v218 = vrot.slane %v217, 2
    %v219 = vadd.f32 %v217, %v218
    %v220 = vrot.slane %v219, 1
    %v221 = vadd.f32 %v219, %v220
    %v222 = vlog2.pop %v221
    %v223 = vmul.f32 %v222, 0.6931472
    %v224 = vsub.f32 %v212, %v223
    %v225 = vmul.f32 %v224, %v171
    %v226 = vsel %vm172, %v225, 0.0
    %v227 = vrot.slane %v226, 4
    %v228 = vadd.f32 %v226, %v227
    %v229 = vrot.slane %v228, 2
    %v230 = vadd.f32 %v228, %v229
    %v231 = vrot.slane %v230, 1
    %v232 = vadd.f32 %v230, %v231
    %v233 = vsub.f32 0.0, %v232
    %vm234 = vcmask 15360
    %v235 = vsel %vm234, %v233, 0.0
    %236 = vadd.xlane.f32.xlu0 %v235
    %v237 = vpop.xlane.xlu0 %236
    %v238 = vmul.f32 %v237, %v204
    %v239 = vadd.f32 %v205, %v238
    %v240 = vmul.f32 %v239, 0.5
    %vm241 = vcmask 0
    %242 = vst.msk [vmem:[#allocation3] sm:$0x1] %vm241, %v240
    // Predicated region
    $region30: #{clip_forward.5} parent=1 // pred_check
      _
    $region31: #{clip_forward.5} parent=1 // pred_check_branch
      %244 = sbr.rel (0) target = $region33
    $region32: #{clip_forward.5} parent=1 // pred_region
      %246 = vsyncadd [#allocation4], 0
      %s248 = sshll.u32 [#allocation3], 4
      %s249 = int_to_ptr.vmem [resolvable:$true] %s248
      %s250 = sshll.u32 %s7, 4
      %s251 = int_to_ptr.hbm [resolvable:$true] %s250
      %253 = dma.vmem_to_hbm [thread:$0]  %s249, 16, %s251, [#allocation4]
    $region33: #{clip_forward.5} parent=1 // pred_fallthru
      _
    // Predicated region
    $region34: #{clip_forward.5} parent=1 // pred_check
      _
    $region35: #{clip_forward.5} parent=1 // pred_check_branch
      %255 = sbr.rel (0) target = $region37
    $region36: #{clip_forward.5} parent=1 // pred_region
      %257 = dma.done [#allocation4], 16
    $region37: #{clip_forward.5} parent=1 // pred_fallthru
      _
    %258 = vsyncpa [#allocation4], 1

// kernel: clip_forward.4
$region0: #{clip_forward.4}
  #allocation0 [shape = 'u32[]', space=smem, size = 0x4, offset = 0x4, fixed_abs, tag = 'smem constant byte address 0x4 - core index']
  #allocation1 [shape = 'u32[72,128]{1,0:T(1,128)}', space=vmem, size = 0x9000, scoped, tag = 'internal scratch']
  %s0 = inlined_call_operand.vmem [shape: f32[2,8,32], index: 0, kind: input, shape index: {}]
  %s1 = inlined_call_operand.vmem [shape: f32[2,1,8], index: 1, kind: input, shape index: {}]
  %s2 = inlined_call_operand.vmem [shape: f32[8,32], index: 2, kind: input, shape index: {}]
  %s3 = inlined_call_operand.vmem [shape: f32[1,32], index: 3, kind: input, shape index: {}]
  %s4 = inlined_call_operand.vmem [shape: f32[1,32], index: 4, kind: input, shape index: {}]
  %s5 = inlined_call_operand.vmem [shape: f32[1,32], index: 5, kind: input, shape index: {}]
  %s6 = inlined_call_operand.vmem [shape: f32[12,32,16], index: 6, kind: input, shape index: {}]
  %s7 = inlined_call_operand.vmem [shape: f32[12,1,16], index: 7, kind: input, shape index: {}]
  %s8 = inlined_call_operand.vmem [shape: f32[4,16,32], index: 8, kind: input, shape index: {}]
  %s9 = inlined_call_operand.vmem [shape: f32[2,1,32], index: 9, kind: input, shape index: {}]
  %s10 = inlined_call_operand.vmem [shape: f32[2,1,32], index: 10, kind: input, shape index: {}]
  %s11 = inlined_call_operand.vmem [shape: f32[2,1,32], index: 11, kind: input, shape index: {}]
  %s12 = inlined_call_operand.vmem [shape: f32[2,32,128], index: 12, kind: input, shape index: {}]
  %s13 = inlined_call_operand.vmem [shape: f32[2,1,128], index: 13, kind: input, shape index: {}]
  %s14 = inlined_call_operand.vmem [shape: f32[2,128,32], index: 14, kind: input, shape index: {}]
  %s15 = inlined_call_operand.vmem [shape: f32[2,1,32], index: 15, kind: input, shape index: {}]
  %s16 = inlined_call_operand.vmem [shape: f32[2,1,32], index: 16, kind: input, shape index: {}]
  %s17 = inlined_call_operand.vmem [shape: f32[2,1,32], index: 17, kind: input, shape index: {}]
  %s18 = inlined_call_operand.vmem [shape: f32[2,1,32], index: 18, kind: output, shape index: {}]
  %s19 = sld [smem:[#allocation0]]
  $region105: #{clip_forward.4} parent=0
    _
  %s21 = ssub.s32 1, %s19
  %s22 = scalar_select 0, %s21, %s19
  loop: start=0, step=1, limit=4
  $region2: #{clip_forward.4} parent=0 // loop_pre_header
    _
  $region3: #{clip_forward.4} parent=0 // loop_header
    %s24 = sphi 0, %s28
    %p25 = scmp.ge.s32.totalorder %s24, 4
    %s34 = sphi 0, %s36
    %s37 = sphi 0, %s34
    %s38 = sphi 0, %s37
    %s54 = sphi 0, %s38
    %s60 = sphi 0, %s62
    %s63 = sphi 0, %s60
    %s64 = sphi 0, %s63
    %s80 = sphi 0, %s64
    %s84 = sphi 0, %s84
    %s86 = sphi 0, %s84
    %s87 = sphi 0, %s86
    %s101 = sphi 0, %s87
    %s105 = sphi 0, %s105
    %s107 = sphi 0, %s105
    %s108 = sphi 0, %s107
    %s122 = sphi 0, %s108
    %s126 = sphi 0, %s126
    %s128 = sphi 0, %s126
    %s129 = sphi 0, %s128
    %s143 = sphi 0, %s129
    %s147 = sphi 0, %s147
    %s149 = sphi 0, %s147
    %s150 = sphi 0, %s149
    %s164 = sphi 0, %s150
    %s168 = sphi 0, %s168
    %s170 = sphi 0, %s168
    %s171 = sphi 0, %s170
    %s185 = sphi 0, %s171
    %s189 = sphi 0, %s189
    %s191 = sphi 0, %s189
    %s192 = sphi 0, %s191
    %s206 = sphi 0, %s192
    %s210 = sphi 0, %s210
    %s212 = sphi 0, %s210
    %s213 = sphi 0, %s212
    %s227 = sphi 0, %s213
    %s231 = sphi 0, %s231
    %s233 = sphi 0, %s231
    %s234 = sphi 0, %s233
    %s248 = sphi 0, %s234
    %s252 = sphi 0, %s252
    %s254 = sphi 0, %s252
    %s255 = sphi 0, %s254
    %s269 = sphi 0, %s255
    %s273 = sphi 0, %s273
    %s275 = sphi 0, %s273
    %s276 = sphi 0, %s275
    %s290 = sphi 0, %s276
    %s294 = sphi 0, %s294
    %s296 = sphi 0, %s294
    %s297 = sphi 0, %s296
    %s311 = sphi 0, %s297
    %s315 = sphi 0, %s315
    %s317 = sphi 0, %s315
    %s318 = sphi 0, %s317
    %s332 = sphi 0, %s318
    %s336 = sphi 0, %s336
    %s338 = sphi 0, %s336
    %s339 = sphi 0, %s338
    %s353 = sphi 0, %s339
    %s357 = sphi 0, %s357
    %s359 = sphi 0, %s357
    %s360 = sphi 0, %s359
    %s374 = sphi 0, %s360
    %s378 = sphi 0, %s378
    %s380 = sphi 0, %s378
    %s381 = sphi 0, %s380
    %s395 = sphi 0, %s381
    %s399 = sphi 0, %s399
    %s401 = sphi 0, %s399
    %s402 = sphi 0, %s401
    %s416 = sphi 0, %s402
    %s422 = sphi 0, %s424
    %s425 = sphi 0, %s422
    %s426 = sphi 0, %s425
    %s442 = sphi 0, %s426
  $region4: #{clip_forward.4} parent=0 // loop_header_branch
    %27 = sbr.rel (%p25) target = $region8
  $region5: #{clip_forward.4} parent=0 // loop_body
    %s29 = ssub.s32 %s24, 1
    %s30 = ssub.s32 %s24, 2
    %s31 = sadd.s32 %s24, 1
    %s32 = ssub.s32 %s24, %s31
    %p33 = scmp.eq.s32.totalorder %s32, 0
    %s35 = sadd.s32 %s34, 1
    %s36 = scalar_select %p33, %s34, %s35
    %p39 = pneg %p33
    %p40 = scmp.eq.s32.totalorder %s24, 1
    %p41 = por %p39, %p40
    %p42 = scmp.ne.s32.totalorder %s34, %s37
    %p43 = scmp.eq.s32.totalorder %s24, 0
    %p44 = por %p42, %p43
    %p45 = scmp.ne.s32.totalorder %s34, %s37
    %p46 = scmp.eq.s32.totalorder %s29, 1
    %p47 = por %p45, %p46
    %p48 = scmp.ne.s32.totalorder %s37, %s38
    %p49 = scmp.eq.s32.totalorder %s29, 0
    %p50 = por %p48, %p49
    %p51 = scmp.ne.s32.totalorder %s37, %s38
    %p52 = scmp.eq.s32.totalorder %s30, 1
    %p53 = por %p51, %p52
    %p55 = scmp.ne.s32.totalorder %s38, %s54
    %p56 = scmp.eq.s32.totalorder %s30, 0
    %p57 = por %p55, %p56
    %s58 = ssub.s32 %s24, %s31
    %p59 = scmp.eq.s32.totalorder %s58, 0
    %s61 = sadd.s32 %s60, 1
    %s62 = scalar_select %p59, %s60, %s61
    %p65 = pneg %p59
    %p66 = scmp.eq.s32.totalorder %s24, 1
    %p67 = por %p65, %p66
    %p68 = scmp.ne.s32.totalorder %s60, %s63
    %p69 = scmp.eq.s32.totalorder %s24, 0
    %p70 = por %p68, %p69
    %p71 = scmp.ne.s32.totalorder %s60, %s63
    %p72 = scmp.eq.s32.totalorder %s29, 1
    %p73 = por %p71, %p72
    %p74 = scmp.ne.s32.totalorder %s63, %s64
    %p75 = scmp.eq.s32.totalorder %s29, 0
    %p76 = por %p74, %p75
    %p77 = scmp.ne.s32.totalorder %s63, %s64
    %p78 = scmp.eq.s32.totalorder %s30, 1
    %p79 = por %p77, %p78
    %p81 = scmp.ne.s32.totalorder %s64, %s80
    %p82 = scmp.eq.s32.totalorder %s30, 0
    %p83 = por %p81, %p82
    %s85 = sadd.s32 %s84, 1
    %p88 = scmp.eq.s32.totalorder %s24, 1
    %p89 = scmp.ne.s32.totalorder %s84, %s86
    %p90 = scmp.eq.s32.totalorder %s24, 0
    %p91 = por %p89, %p90
    %p92 = scmp.ne.s32.totalorder %s84, %s86
    %p93 = scmp.eq.s32.totalorder %s29, 1
    %p94 = por %p92, %p93
    %p95 = scmp.ne.s32.totalorder %s86, %s87
    %p96 = scmp.eq.s32.totalorder %s29, 0
    %p97 = por %p95, %p96
    %p98 = scmp.ne.s32.totalorder %s86, %s87
    %p99 = scmp.eq.s32.totalorder %s30, 1
    %p100 = por %p98, %p99
    %p102 = scmp.ne.s32.totalorder %s87, %s101
    %p103 = scmp.eq.s32.totalorder %s30, 0
    %p104 = por %p102, %p103
    %s106 = sadd.s32 %s105, 1
    %p109 = scmp.eq.s32.totalorder %s24, 1
    %p110 = scmp.ne.s32.totalorder %s105, %s107
    %p111 = scmp.eq.s32.totalorder %s24, 0
    %p112 = por %p110, %p111
    %p113 = scmp.ne.s32.totalorder %s105, %s107
    %p114 = scmp.eq.s32.totalorder %s29, 1
    %p115 = por %p113, %p114
    %p116 = scmp.ne.s32.totalorder %s107, %s108
    %p117 = scmp.eq.s32.totalorder %s29, 0
    %p118 = por %p116, %p117
    %p119 = scmp.ne.s32.totalorder %s107, %s108
    %p120 = scmp.eq.s32.totalorder %s30, 1
    %p121 = por %p119, %p120
    %p123 = scmp.ne.s32.totalorder %s108, %s122
    %p124 = scmp.eq.s32.totalorder %s30, 0
    %p125 = por %p123, %p124
    %s127 = sadd.s32 %s126, 1
    %p130 = scmp.eq.s32.totalorder %s24, 1
    %p131 = scmp.ne.s32.totalorder %s126, %s128
    %p132 = scmp.eq.s32.totalorder %s24, 0
    %p133 = por %p131, %p132
    %p134 = scmp.ne.s32.totalorder %s126, %s128
    %p135 = scmp.eq.s32.totalorder %s29, 1
    %p136 = por %p134, %p135
    %p137 = scmp.ne.s32.totalorder %s128, %s129
    %p138 = scmp.eq.s32.totalorder %s29, 0
    %p139 = por %p137, %p138
    %p140 = scmp.ne.s32.totalorder %s128, %s129
    %p141 = scmp.eq.s32.totalorder %s30, 1
    %p142 = por %p140, %p141
    %p144 = scmp.ne.s32.totalorder %s129, %s143
    %p145 = scmp.eq.s32.totalorder %s30, 0
    %p146 = por %p144, %p145
    %s148 = sadd.s32 %s147, 1
    %p151 = scmp.eq.s32.totalorder %s24, 1
    %p152 = scmp.ne.s32.totalorder %s147, %s149
    %p153 = scmp.eq.s32.totalorder %s24, 0
    %p154 = por %p152, %p153
    %p155 = scmp.ne.s32.totalorder %s147, %s149
    %p156 = scmp.eq.s32.totalorder %s29, 1
    %p157 = por %p155, %p156
    %p158 = scmp.ne.s32.totalorder %s149, %s150
    %p159 = scmp.eq.s32.totalorder %s29, 0
    %p160 = por %p158, %p159
    %p161 = scmp.ne.s32.totalorder %s149, %s150
    %p162 = scmp.eq.s32.totalorder %s30, 1
    %p163 = por %p161, %p162
    %p165 = scmp.ne.s32.totalorder %s150, %s164
    %p166 = scmp.eq.s32.totalorder %s30, 0
    %p167 = por %p165, %p166
    %s169 = sadd.s32 %s168, 1
    %p172 = scmp.eq.s32.totalorder %s24, 1
    %p173 = scmp.ne.s32.totalorder %s168, %s170
    %p174 = scmp.eq.s32.totalorder %s24, 0
    %p175 = por %p173, %p174
    %p176 = scmp.ne.s32.totalorder %s168, %s170
    %p177 = scmp.eq.s32.totalorder %s29, 1
    %p178 = por %p176, %p177
    %p179 = scmp.ne.s32.totalorder %s170, %s171
    %p180 = scmp.eq.s32.totalorder %s29, 0
    %p181 = por %p179, %p180
    %p182 = scmp.ne.s32.totalorder %s170, %s171
    %p183 = scmp.eq.s32.totalorder %s30, 1
    %p184 = por %p182, %p183
    %p186 = scmp.ne.s32.totalorder %s171, %s185
    %p187 = scmp.eq.s32.totalorder %s30, 0
    %p188 = por %p186, %p187
    %s190 = sadd.s32 %s189, 1
    %p193 = scmp.eq.s32.totalorder %s24, 1
    %p194 = scmp.ne.s32.totalorder %s189, %s191
    %p195 = scmp.eq.s32.totalorder %s24, 0
    %p196 = por %p194, %p195
    %p197 = scmp.ne.s32.totalorder %s189, %s191
    %p198 = scmp.eq.s32.totalorder %s29, 1
    %p199 = por %p197, %p198
    %p200 = scmp.ne.s32.totalorder %s191, %s192
    %p201 = scmp.eq.s32.totalorder %s29, 0
    %p202 = por %p200, %p201
    %p203 = scmp.ne.s32.totalorder %s191, %s192
    %p204 = scmp.eq.s32.totalorder %s30, 1
    %p205 = por %p203, %p204
    %p207 = scmp.ne.s32.totalorder %s192, %s206
    %p208 = scmp.eq.s32.totalorder %s30, 0
    %p209 = por %p207, %p208
    %s211 = sadd.s32 %s210, 1
    %p214 = scmp.eq.s32.totalorder %s24, 1
    %p215 = scmp.ne.s32.totalorder %s210, %s212
    %p216 = scmp.eq.s32.totalorder %s24, 0
    %p217 = por %p215, %p216
    %p218 = scmp.ne.s32.totalorder %s210, %s212
    %p219 = scmp.eq.s32.totalorder %s29, 1
    %p220 = por %p218, %p219
    %p221 = scmp.ne.s32.totalorder %s212, %s213
    %p222 = scmp.eq.s32.totalorder %s29, 0
    %p223 = por %p221, %p222
    %p224 = scmp.ne.s32.totalorder %s212, %s213
    %p225 = scmp.eq.s32.totalorder %s30, 1
    %p226 = por %p224, %p225
    %p228 = scmp.ne.s32.totalorder %s213, %s227
    %p229 = scmp.eq.s32.totalorder %s30, 0
    %p230 = por %p228, %p229
    %s232 = sadd.s32 %s231, 1
    %p235 = scmp.eq.s32.totalorder %s24, 1
    %p236 = scmp.ne.s32.totalorder %s231, %s233
    %p237 = scmp.eq.s32.totalorder %s24, 0
    %p238 = por %p236, %p237
    %p239 = scmp.ne.s32.totalorder %s231, %s233
    %p240 = scmp.eq.s32.totalorder %s29, 1
    %p241 = por %p239, %p240
    %p242 = scmp.ne.s32.totalorder %s233, %s234
    %p243 = scmp.eq.s32.totalorder %s29, 0
    %p244 = por %p242, %p243
    %p245 = scmp.ne.s32.totalorder %s233, %s234
    %p246 = scmp.eq.s32.totalorder %s30, 1
    %p247 = por %p245, %p246
    %p249 = scmp.ne.s32.totalorder %s234, %s248
    %p250 = scmp.eq.s32.totalorder %s30, 0
    %p251 = por %p249, %p250
    %s253 = sadd.s32 %s252, 1
    %p256 = scmp.eq.s32.totalorder %s24, 1
    %p257 = scmp.ne.s32.totalorder %s252, %s254
    %p258 = scmp.eq.s32.totalorder %s24, 0
    %p259 = por %p257, %p258
    %p260 = scmp.ne.s32.totalorder %s252, %s254
    %p261 = scmp.eq.s32.totalorder %s29, 1
    %p262 = por %p260, %p261
    %p263 = scmp.ne.s32.totalorder %s254, %s255
    %p264 = scmp.eq.s32.totalorder %s29, 0
    %p265 = por %p263, %p264
    %p266 = scmp.ne.s32.totalorder %s254, %s255
    %p267 = scmp.eq.s32.totalorder %s30, 1
    %p268 = por %p266, %p267
    %p270 = scmp.ne.s32.totalorder %s255, %s269
    %p271 = scmp.eq.s32.totalorder %s30, 0
    %p272 = por %p270, %p271
    %s274 = sadd.s32 %s273, 1
    %p277 = scmp.eq.s32.totalorder %s24, 1
    %p278 = scmp.ne.s32.totalorder %s273, %s275
    %p279 = scmp.eq.s32.totalorder %s24, 0
    %p280 = por %p278, %p279
    %p281 = scmp.ne.s32.totalorder %s273, %s275
    %p282 = scmp.eq.s32.totalorder %s29, 1
    %p283 = por %p281, %p282
    %p284 = scmp.ne.s32.totalorder %s275, %s276
    %p285 = scmp.eq.s32.totalorder %s29, 0
    %p286 = por %p284, %p285
    %p287 = scmp.ne.s32.totalorder %s275, %s276
    %p288 = scmp.eq.s32.totalorder %s30, 1
    %p289 = por %p287, %p288
    %p291 = scmp.ne.s32.totalorder %s276, %s290
    %p292 = scmp.eq.s32.totalorder %s30, 0
    %p293 = por %p291, %p292
    %s295 = sadd.s32 %s294, 1
    %p298 = scmp.eq.s32.totalorder %s24, 1
    %p299 = scmp.ne.s32.totalorder %s294, %s296
    %p300 = scmp.eq.s32.totalorder %s24, 0
    %p301 = por %p299, %p300
    %p302 = scmp.ne.s32.totalorder %s294, %s296
    %p303 = scmp.eq.s32.totalorder %s29, 1
    %p304 = por %p302, %p303
    %p305 = scmp.ne.s32.totalorder %s296, %s297
    %p306 = scmp.eq.s32.totalorder %s29, 0
    %p307 = por %p305, %p306
    %p308 = scmp.ne.s32.totalorder %s296, %s297
    %p309 = scmp.eq.s32.totalorder %s30, 1
    %p310 = por %p308, %p309
    %p312 = scmp.ne.s32.totalorder %s297, %s311
    %p313 = scmp.eq.s32.totalorder %s30, 0
    %p314 = por %p312, %p313
    %s316 = sadd.s32 %s315, 1
    %p319 = scmp.eq.s32.totalorder %s24, 1
    %p320 = scmp.ne.s32.totalorder %s315, %s317
    %p321 = scmp.eq.s32.totalorder %s24, 0
    %p322 = por %p320, %p321
    %p323 = scmp.ne.s32.totalorder %s315, %s317
    %p324 = scmp.eq.s32.totalorder %s29, 1
    %p325 = por %p323, %p324
    %p326 = scmp.ne.s32.totalorder %s317, %s318
    %p327 = scmp.eq.s32.totalorder %s29, 0
    %p328 = por %p326, %p327
    %p329 = scmp.ne.s32.totalorder %s317, %s318
    %p330 = scmp.eq.s32.totalorder %s30, 1
    %p331 = por %p329, %p330
    %p333 = scmp.ne.s32.totalorder %s318, %s332
    %p334 = scmp.eq.s32.totalorder %s30, 0
    %p335 = por %p333, %p334
    %s337 = sadd.s32 %s336, 1
    %p340 = scmp.eq.s32.totalorder %s24, 1
    %p341 = scmp.ne.s32.totalorder %s336, %s338
    %p342 = scmp.eq.s32.totalorder %s24, 0
    %p343 = por %p341, %p342
    %p344 = scmp.ne.s32.totalorder %s336, %s338
    %p345 = scmp.eq.s32.totalorder %s29, 1
    %p346 = por %p344, %p345
    %p347 = scmp.ne.s32.totalorder %s338, %s339
    %p348 = scmp.eq.s32.totalorder %s29, 0
    %p349 = por %p347, %p348
    %p350 = scmp.ne.s32.totalorder %s338, %s339
    %p351 = scmp.eq.s32.totalorder %s30, 1
    %p352 = por %p350, %p351
    %p354 = scmp.ne.s32.totalorder %s339, %s353
    %p355 = scmp.eq.s32.totalorder %s30, 0
    %p356 = por %p354, %p355
    %s358 = sadd.s32 %s357, 1
    %p361 = scmp.eq.s32.totalorder %s24, 1
    %p362 = scmp.ne.s32.totalorder %s357, %s359
    %p363 = scmp.eq.s32.totalorder %s24, 0
    %p364 = por %p362, %p363
    %p365 = scmp.ne.s32.totalorder %s357, %s359
    %p366 = scmp.eq.s32.totalorder %s29, 1
    %p367 = por %p365, %p366
    %p368 = scmp.ne.s32.totalorder %s359, %s360
    %p369 = scmp.eq.s32.totalorder %s29, 0
    %p370 = por %p368, %p369
    %p371 = scmp.ne.s32.totalorder %s359, %s360
    %p372 = scmp.eq.s32.totalorder %s30, 1
    %p373 = por %p371, %p372
    %p375 = scmp.ne.s32.totalorder %s360, %s374
    %p376 = scmp.eq.s32.totalorder %s30, 0
    %p377 = por %p375, %p376
    %s379 = sadd.s32 %s378, 1
    %p382 = scmp.eq.s32.totalorder %s24, 1
    %p383 = scmp.ne.s32.totalorder %s378, %s380
    %p384 = scmp.eq.s32.totalorder %s24, 0
    %p385 = por %p383, %p384
    %p386 = scmp.ne.s32.totalorder %s378, %s380
    %p387 = scmp.eq.s32.totalorder %s29, 1
    %p388 = por %p386, %p387
    %p389 = scmp.ne.s32.totalorder %s380, %s381
    %p390 = scmp.eq.s32.totalorder %s29, 0
    %p391 = por %p389, %p390
    %p392 = scmp.ne.s32.totalorder %s380, %s381
    %p393 = scmp.eq.s32.totalorder %s30, 1
    %p394 = por %p392, %p393
    %p396 = scmp.ne.s32.totalorder %s381, %s395
    %p397 = scmp.eq.s32.totalorder %s30, 0
    %p398 = por %p396, %p397
    %s400 = sadd.s32 %s399, 1
    %p403 = scmp.eq.s32.totalorder %s24, 1
    %p404 = scmp.ne.s32.totalorder %s399, %s401
    %p405 = scmp.eq.s32.totalorder %s24, 0
    %p406 = por %p404, %p405
    %p407 = scmp.ne.s32.totalorder %s399, %s401
    %p408 = scmp.eq.s32.totalorder %s29, 1
    %p409 = por %p407, %p408
    %p410 = scmp.ne.s32.totalorder %s401, %s402
    %p411 = scmp.eq.s32.totalorder %s29, 0
    %p412 = por %p410, %p411
    %p413 = scmp.ne.s32.totalorder %s401, %s402
    %p414 = scmp.eq.s32.totalorder %s30, 1
    %p415 = por %p413, %p414
    %p417 = scmp.ne.s32.totalorder %s402, %s416
    %p418 = scmp.eq.s32.totalorder %s30, 0
    %p419 = por %p417, %p418
    %s420 = ssub.s32 %s24, %s31
    %p421 = scmp.eq.s32.totalorder %s420, 0
    %s423 = sadd.s32 %s422, 1
    %s424 = scalar_select %p421, %s422, %s423
    %p427 = pneg %p421
    %p428 = scmp.eq.s32.totalorder %s24, 1
    %p429 = por %p427, %p428
    %p430 = scmp.ne.s32.totalorder %s422, %s425
    %p431 = scmp.eq.s32.totalorder %s24, 0
    %p432 = por %p430, %p431
    %p433 = scmp.ne.s32.totalorder %s422, %s425
    %p434 = scmp.eq.s32.totalorder %s29, 1
    %p435 = por %p433, %p434
    %p436 = scmp.ne.s32.totalorder %s425, %s426
    %p437 = scmp.eq.s32.totalorder %s29, 0
    %p438 = por %p436, %p437
    %p439 = scmp.ne.s32.totalorder %s425, %s426
    %p440 = scmp.eq.s32.totalorder %s30, 1
    %p441 = por %p439, %p440
    %p443 = scmp.ne.s32.totalorder %s426, %s442
    %p444 = scmp.eq.s32.totalorder %s30, 0
    %p445 = por %p443, %p444
    %p446 = scmp.le.s32.totalorder 1, %s24
    %p447 = scmp.lt.s32.totalorder %s24, 3
    %p448 = pnand %p446, %p447
    %p449 = pneg %p448
    // Predicated region
    $region9: #{clip_forward.4} parent=5 // pred_check
      _
    $region10: #{clip_forward.4} parent=5 // pred_check_branch
      %451 = sbr.rel (%p448) target = $region12
    $region11: #{clip_forward.4} parent=5 // pred_region
      %s452 = ssub.s32 %s24, 1
      // Predicated region
      $region13: #{clip_forward.4} parent=11 // pred_check
        %p453 = pneg %p97
      $region14: #{clip_forward.4} parent=11 // pred_check_branch
        %455 = sbr.rel (%p453) target = $region16
      $region15: #{clip_forward.4} parent=11 // pred_region
        _
      $region16: #{clip_forward.4} parent=11 // pred_fallthru
        _
      // Predicated region
      $region17: #{clip_forward.4} parent=11 // pred_check
        %p456 = pneg %p118
      $region18: #{clip_forward.4} parent=11 // pred_check_branch
        %458 = sbr.rel (%p456) target = $region20
      $region19: #{clip_forward.4} parent=11 // pred_region
        _
      $region20: #{clip_forward.4} parent=11 // pred_fallthru
        _
      // Predicated region
      $region21: #{clip_forward.4} parent=11 // pred_check
        %p459 = pneg %p139
      $region22: #{clip_forward.4} parent=11 // pred_check_branch
        %461 = sbr.rel (%p459) target = $region24
      $region23: #{clip_forward.4} parent=11 // pred_region
        _
      $region24: #{clip_forward.4} parent=11 // pred_fallthru
        _
      // Predicated region
      $region25: #{clip_forward.4} parent=11 // pred_check
        %p462 = pneg %p160
      $region26: #{clip_forward.4} parent=11 // pred_check_branch
        %464 = sbr.rel (%p462) target = $region28
      $region27: #{clip_forward.4} parent=11 // pred_region
        _
      $region28: #{clip_forward.4} parent=11 // pred_fallthru
        _
      // Predicated region
      $region29: #{clip_forward.4} parent=11 // pred_check
        %p465 = pneg %p181
      $region30: #{clip_forward.4} parent=11 // pred_check_branch
        %467 = sbr.rel (%p465) target = $region32
      $region31: #{clip_forward.4} parent=11 // pred_region
        _
      $region32: #{clip_forward.4} parent=11 // pred_fallthru
        _
      // Predicated region
      $region33: #{clip_forward.4} parent=11 // pred_check
        %p468 = pneg %p202
      $region34: #{clip_forward.4} parent=11 // pred_check_branch
        %470 = sbr.rel (%p468) target = $region36
      $region35: #{clip_forward.4} parent=11 // pred_region
        _
      $region36: #{clip_forward.4} parent=11 // pred_fallthru
        _
      // Predicated region
      $region37: #{clip_forward.4} parent=11 // pred_check
        %p471 = pneg %p223
      $region38: #{clip_forward.4} parent=11 // pred_check_branch
        %473 = sbr.rel (%p471) target = $region40
      $region39: #{clip_forward.4} parent=11 // pred_region
        _
      $region40: #{clip_forward.4} parent=11 // pred_fallthru
        _
      // Predicated region
      $region41: #{clip_forward.4} parent=11 // pred_check
        %p474 = pneg %p244
      $region42: #{clip_forward.4} parent=11 // pred_check_branch
        %476 = sbr.rel (%p474) target = $region44
      $region43: #{clip_forward.4} parent=11 // pred_region
        _
      $region44: #{clip_forward.4} parent=11 // pred_fallthru
        _
      // Predicated region
      $region45: #{clip_forward.4} parent=11 // pred_check
        %p477 = pneg %p265
      $region46: #{clip_forward.4} parent=11 // pred_check_branch
        %479 = sbr.rel (%p477) target = $region48
      $region47: #{clip_forward.4} parent=11 // pred_region
        _
      $region48: #{clip_forward.4} parent=11 // pred_fallthru
        _
      // Predicated region
      $region49: #{clip_forward.4} parent=11 // pred_check
        %p480 = pneg %p286
      $region50: #{clip_forward.4} parent=11 // pred_check_branch
        %482 = sbr.rel (%p480) target = $region52
      $region51: #{clip_forward.4} parent=11 // pred_region
        _
      $region52: #{clip_forward.4} parent=11 // pred_fallthru
        _
      // Predicated region
      $region53: #{clip_forward.4} parent=11 // pred_check
        %p483 = pneg %p307
      $region54: #{clip_forward.4} parent=11 // pred_check_branch
        %485 = sbr.rel (%p483) target = $region56
      $region55: #{clip_forward.4} parent=11 // pred_region
        _
      $region56: #{clip_forward.4} parent=11 // pred_fallthru
        _
      // Predicated region
      $region57: #{clip_forward.4} parent=11 // pred_check
        %p486 = pneg %p328
      $region58: #{clip_forward.4} parent=11 // pred_check_branch
        %488 = sbr.rel (%p486) target = $region60
      $region59: #{clip_forward.4} parent=11 // pred_region
        _
      $region60: #{clip_forward.4} parent=11 // pred_fallthru
        _
      // Predicated region
      $region61: #{clip_forward.4} parent=11 // pred_check
        %p489 = pneg %p349
      $region62: #{clip_forward.4} parent=11 // pred_check_branch
        %491 = sbr.rel (%p489) target = $region64
      $region63: #{clip_forward.4} parent=11 // pred_region
        _
      $region64: #{clip_forward.4} parent=11 // pred_fallthru
        _
      // Predicated region
      $region65: #{clip_forward.4} parent=11 // pred_check
        %p492 = pneg %p370
      $region66: #{clip_forward.4} parent=11 // pred_check_branch
        %494 = sbr.rel (%p492) target = $region68
      $region67: #{clip_forward.4} parent=11 // pred_region
        _
      $region68: #{clip_forward.4} parent=11 // pred_fallthru
        _
      // Predicated region
      $region69: #{clip_forward.4} parent=11 // pred_check
        %p495 = pneg %p391
      $region70: #{clip_forward.4} parent=11 // pred_check_branch
        %497 = sbr.rel (%p495) target = $region72
      $region71: #{clip_forward.4} parent=11 // pred_region
        _
      $region72: #{clip_forward.4} parent=11 // pred_fallthru
        _
      // Predicated region
      $region73: #{clip_forward.4} parent=11 // pred_check
        %p498 = pneg %p412
      $region74: #{clip_forward.4} parent=11 // pred_check_branch
        %500 = sbr.rel (%p498) target = $region76
      $region75: #{clip_forward.4} parent=11 // pred_region
        _
      $region76: #{clip_forward.4} parent=11 // pred_fallthru
        _
    $region12: #{clip_forward.4} parent=5 // pred_fallthru
      _
    %p501 = scmp.lt.s32.totalorder %s24, 2
    // Predicated region
    $region77: #{clip_forward.4} parent=5 // pred_check
      %p502 = pneg %p501
    $region78: #{clip_forward.4} parent=5 // pred_check_branch
      %504 = sbr.rel (%p502) target = $region80
    $region79: #{clip_forward.4} parent=5 // pred_region
      // Predicated region
      $region81: #{clip_forward.4} parent=79 // pred_check
        %p505 = pneg %p44
      $region82: #{clip_forward.4} parent=79 // pred_check_branch
        %507 = sbr.rel (%p505) target = $region84
      $region83: #{clip_forward.4} parent=79 // pred_region
        %p508 = scmp.lt.s32.totalorder %s24, 1
        %s509 = scalar_select %p508, %s24, 1
        %s510 = smul.addr %s509, 8
        %s511 = scalar_lea.vmem %s0, %s510
      $region84: #{clip_forward.4} parent=79 // pred_fallthru
        _
      // Predicated region
      $region85: #{clip_forward.4} parent=79 // pred_check
        %p512 = pneg %p70
      $region86: #{clip_forward.4} parent=79 // pred_check_branch
        %514 = sbr.rel (%p512) target = $region88
      $region87: #{clip_forward.4} parent=79 // pred_region
        %p515 = scmp.lt.s32.totalorder %s24, 1
        %s516 = scalar_select %p515, %s24, 1
        %s517 = scalar_lea.vmem %s1, %s516
      $region88: #{clip_forward.4} parent=79 // pred_fallthru
        _
    $region80: #{clip_forward.4} parent=5 // pred_fallthru
      _
    %p518 = scmp.le.s32.totalorder 1, %s24
    %p519 = scmp.lt.s32.totalorder %s24, 3
    %p520 = pnand %p518, %p519
    %p521 = pneg %p520
    // Predicated region
    $region89: #{clip_forward.4} parent=5 // pred_check
      _
    $region90: #{clip_forward.4} parent=5 // pred_check_branch
      %523 = sbr.rel (%p520) target = $region92
    $region91: #{clip_forward.4} parent=5 // pred_region
      %s524 = ssub.s32 %s24, 1
      %p525 = scmp.lt.s32.totalorder %s29, 1
      %s526 = scalar_select %p525, %s29, 1
      %s527 = smul.addr %s526, 8
      %s528 = scalar_lea.vmem %s0, %s527
      %p529 = pneg %p50
      %p530 = pneg %p47
      %p531 = scmp.lt.s32.totalorder %s29, 1
      %s532 = scalar_select %p531, %s29, 1
      %s533 = scalar_lea.vmem %s1, %s532
      %p534 = pneg %p76
      %p535 = pneg %p73
      %p536 = pneg %p97
      %p537 = pneg %p94
      %p538 = pneg %p118
      %p539 = pneg %p115
      %p540 = pneg %p139
      %p541 = pneg %p136
      %p542 = pneg %p160
      %p543 = pneg %p157
      %p544 = pneg %p181
      %p545 = pneg %p178
      %p546 = pneg %p202
      %p547 = pneg %p199
      %p548 = pneg %p223
      %p549 = pneg %p220
      %p550 = pneg %p244
      %p551 = pneg %p241
      %p552 = pneg %p265
      %p553 = pneg %p262
      %p554 = pneg %p286
      %p555 = pneg %p283
      %p556 = pneg %p307
      %p557 = pneg %p304
      %p558 = pneg %p328
      %p559 = pneg %p325
      %p560 = pneg %p349
      %p561 = pneg %p346
      %p562 = pneg %p370
      %p563 = pneg %p367
      %p564 = pneg %p391
      %p565 = pneg %p388
      %p566 = pneg %p412
      %p567 = pneg %p409
      %p568 = pneg %p438
      %p569 = pneg %p435
      %p570 = scmp.lt.s32.totalorder %s29, 1
      %s571 = scalar_select %p570, %s29, 1
      %s572 = scalar_lea.vmem %s18, %s571
      %p573 = scmp.lt.s32.totalorder %s29, 1
      %s574 = scalar_select %p573, %s29, 1
      %s575 = smul.addr %s574, 8
      %s576 = scalar_lea.vmem %s0, %s575
      %p577 = scmp.lt.s32.totalorder %s29, 1
      %s578 = scalar_select %p577, %s29, 1
      %s579 = scalar_lea.vmem %s1, %s578
      %p580 = scmp.lt.s32.totalorder %s29, 1
      %s581 = scalar_select %p580, %s29, 1
      %s582 = scalar_lea.vmem %s18, %s581
      %v584 = vld [vmem:[%s576] sm:$0xff]
      %v585 = vld [vmem:[%s2] sm:$0xff]
      %v586 = vadd.f32 %v584, %v585
      %v587 = vld [vmem:[%s3] sm:$0x1]
      %v589 = vperm.slane %v587, 0
      %v591 = vadd.f32 %v586, %v589
      %v592 = vld [vmem:[%s4] sm:$0x1]
      %v593 = vld [vmem:[%s5] sm:$0x1]
      %vm594 = vcmask 261120
      %v595 = vsel %vm594, %v591, 0.0
      %596 = vadd.xlane.f32.xlu0 %v595
      %v597 = vpop.xlane.xlu0 %596
      %v598 = vrcp.pop 32.0
      %v599 = vmul.f32 32.0, %v598
      %v600 = vsub.f32 1.0, %v599
      %v601 = vmul.f32 %v598, %v600
      %v602 = vadd.f32 %v598, %v601
      %vm603 = vweird.f32 %v598
      %v604 = vsel %vm603, %v598, %v602
      %v605 = vmul.f32 %v597, %v604
      %v606 = vsub.f32 %v591, %v605
      %v607 = vmul.f32 %v606, %v606
      %v608 = vsel %vm594, %v607, 0.0
      %609 = vadd.xlane.f32.xlu0 %v608
      %v610 = vpop.xlane.xlu0 %609
      %v611 = vmul.f32 %v610, %v604
      %v612 = vadd.f32 %v611, 1e-12
      %v613 = vrsqrt.pop %v612
      %v614 = vmul.f32 %v613, %v612
      %v615 = vmul.f32 %v614, %v613
      %v616 = vmul.f32 0.5, %v615
      %v617 = vsub.f32 1.5, %v616
      %v618 = vmul.f32 %v613, %v617
      %vm619 = vweird.f32 %v612
      %vm620 = vweird.f32 %v613
      %vm621 = vmor %vm619, %vm620
      %v622 = vsel %vm621, %v613, %v618
      %v623 = vmul.f32 %v606, %v622
      %v625 = vperm.slane %v592, 0
      %v627 = vmul.f32 %v623, %v625
      %v629 = vperm.slane %v593, 0
      %v631 = vadd.f32 %v627, %v629
      %v632 = vld [vmem:[%s579] sm:$0x1]
      %v633 = vld [vmem:[%s6] sm:$0xff]
      %v634 = vld [vmem:[%s6 + $0x8] sm:$0xff]
      %v635 = vld [vmem:[%s6 + $0x10] sm:$0xff]
      %v636 = vld [vmem:[%s6 + $0x18] sm:$0xff]
      %v637 = vld [vmem:[%s7] sm:$0x1]
      %v638 = vpack.c.bf16 %v631, %v631
      %v639 = vpack.c.bf16 %v634, %v633
      %v640 = vpack.c.bf16 %v636, %v635
      %v642 = vperm.slane %v637, 0
      %v645 = vsel %vm594, %v638, 0
      %647 = vmatpush.bf16.msra.mxu0 0
      %648 = vmatpush.bf16.msra.mxu0 0
      %649 = vmatpush.bf16.msra.mxu0 0
      %650 = vmatpush.bf16.msra.mxu0 0
      %651 = vmatpush.bf16.msra.mxu0 0
      %652 = vmatpush.bf16.msra.mxu0 0
      %653 = vmatpush.bf16.msra.mxu0 %v640
      %654 = vmatpush.bf16.msra.mxu0 %v639
      %655 = vmatmul.bf16.gmra.mxu0 %v645
      %v656 = vpop.f32.mrf.mxu0
      %v657 = vadd.f32 %v642, %v656
      %v658 = vpop.f32.mrf.mxu0
      %659 = vdwg.mxu0
      %s660 = scalar_lea.vmem %s6, 64
      %v661 = vld [vmem:[%s660] sm:$0xff]
      %v662 = vld [vmem:[%s660 + $0x8] sm:$0xff]
      %v663 = vld [vmem:[%s660 + $0x10] sm:$0xff]
      %v664 = vld [vmem:[%s660 + $0x18] sm:$0xff]
      %s665 = scalar_lea.vmem %s7, 2
      %v666 = vld [vmem:[%s665] sm:$0x1]
      %v667 = vpack.c.bf16 %v662, %v661
      %v668 = vpack.c.bf16 %v664, %v663
      %v670 = vperm.slane %v666, 0
      %672 = vmatpush.bf16.msra.mxu0 0
      %673 = vmatpush.bf16.msra.mxu0 0
      %674 = vmatpush.bf16.msra.mxu0 0
      %675 = vmatpush.bf16.msra.mxu0 0
      %676 = vmatpush.bf16.msra.mxu0 0
      %677 = vmatpush.bf16.msra.mxu0 0
      %678 = vmatpush.bf16.msra.mxu0 %v668
      %679 = vmatpush.bf16.msra.mxu0 %v667
      %680 = vmatmul.bf16.gmra.mxu0 %v645
      %v681 = vpop.f32.mrf.mxu0
      %v682 = vadd.f32 %v670, %v681
      %v683 = vpop.f32.mrf.mxu0
      %684 = vdwg.mxu0
      %s685 = scalar_lea.vmem %s6, 128
      %v686 = vld [vmem:[%s685] sm:$0xff]
      %v687 = vld [vmem:[%s685 + $0x8] sm:$0xff]
      %v688 = vld [vmem:[%s685 + $0x10] sm:$0xff]
      %v689 = vld [vmem:[%s685 + $0x18] sm:$0xff]
      %s690 = scalar_lea.vmem %s7, 4
      %v691 = vld [vmem:[%s690] sm:$0x1]
      %v692 = vpack.c.bf16 %v687, %v686
      %v693 = vpack.c.bf16 %v689, %v688
      %v695 = vperm.slane %v691, 0
      %697 = vmatpush.bf16.msra.mxu0 0
      %698 = vmatpush.bf16.msra.mxu0 0
      %699 = vmatpush.bf16.msra.mxu0 0
      %700 = vmatpush.bf16.msra.mxu0 0
      %701 = vmatpush.bf16.msra.mxu0 0
      %702 = vmatpush.bf16.msra.mxu0 0
      %703 = vmatpush.bf16.msra.mxu0 %v693
      %704 = vmatpush.bf16.msra.mxu0 %v692
      %705 = vmatmul.bf16.gmra.mxu0 %v645
      %v706 = vpop.f32.mrf.mxu0
      %v707 = vadd.f32 %v695, %v706
      %v708 = vpop.f32.mrf.mxu0
      %709 = vdwg.mxu0
      %v710 = vpack.c.bf16 %v657, %v657
      %v711 = vpack.c.bf16 %v682, %v682
      %vm712 = vcmask 130048
      %v714 = vsel %vm712, %v710, 0
      %v717 = vsel %vm712, %v711, 0
      %719 = vmatpush.bf16.xpose.msra.mxu0 0
      %720 = vmatpush.bf16.xpose.msra.mxu0 0
      %721 = vmatpush.bf16.xpose.msra.mxu0 0
      %722 = vmatpush.bf16.xpose.msra.mxu0 0
      %723 = vmatpush.bf16.xpose.msra.mxu0 0
      %724 = vmatpush.bf16.xpose.msra.mxu0 0
      %725 = vmatpush.bf16.xpose.msra.mxu0 0
      %726 = vmatpush.bf16.xpose.msra.mxu0 %v717
      %727 = vmatmul.bf16.gmra.mxu0 %v714
      %v728 = vpop.f32.mrf.mxu0
      %v729 = vadd.f32 0.0, %v728
      %v730 = vpop.f32.mrf.mxu0
      %731 = vdwg.mxu0
      %v732 = vmul.f32 %v729, 0.25
      %v734 = vperm.slane %v632, 0
      %v736 = vadd.f32 %v732, %v734
      %vm737 = vcmask 64512
      %v738 = vsel %vm737, %v736, -inf
      %739 = vmax.xlane.f32.xlu0 %v738
      %v740 = vpop.xlane.xlu0 %739
      %v741 = vsub.f32 %v736, %v740
      %v742 = vmul.f32 %v741, 1.442695
      %v743 = vpow.pop %v742
      %v744 = vsel %vm737, %v743, 0.0
      %745 = vadd.xlane.f32.xlu0 %v744
      %v746 = vpop.xlane.xlu0 %745
      %v747 = vrcp.pop %v746
      %v748 = vmul.f32 %v743, %v747
      %v749 = vpack.c.bf16 %v748, %v748
      %v750 = vpack.c.bf16 %v707, %v707
      %v752 = vsel %vm737, %v749, 0
      %vm754 = vcmask 1043456
      %v756 = vsel %vm754, %v750, 0
      %758 = vmatpush.bf16.msra.mxu0 0
      %759 = vmatpush.bf16.msra.mxu0 0
      %760 = vmatpush.bf16.msra.mxu0 0
      %761 = vmatpush.bf16.msra.mxu0 0
      %762 = vmatpush.bf16.msra.mxu0 0
      %763 = vmatpush.bf16.msra.mxu0 0
      %764 = vmatpush.bf16.msra.mxu0 0
      %765 = vmatpush.bf16.msra.mxu0 %v756
      %766 = vmatmul.bf16.gmra.mxu0 %v752
      %v767 = vpop.f32.mrf.mxu0
      %v768 = vadd.f32 0.0, %v767
      %v769 = vpop.f32.mrf.mxu0
      %770 = vdwg.mxu0
      %v771 = vld [vmem:[%s8] sm:$0xff]
      %v772 = vld [vmem:[%s8 + $0x8] sm:$0xff]
      %v773 = vpack.c.bf16 %v768, %v768
      %v774 = vpack.c.bf16 %v772, %v771
      %s775 = scalar_lea.vmem %s6, 32
      %v776 = vld [vmem:[%s775] sm:$0xff]
      %v777 = vld [vmem:[%s775 + $0x8] sm:$0xff]
      %v778 = vld [vmem:[%s775 + $0x10] sm:$0xff]
      %v779 = vld [vmem:[%s775 + $0x18] sm:$0xff]
      %s780 = scalar_lea.vmem %s7, 1
      %v781 = vld [vmem:[%s780] sm:$0x1]
      %v782 = vpack.c.bf16 %v777, %v776
      %v783 = vpack.c.bf16 %v779, %v778
      %v785 = vperm.slane %v781, 0
      %787 = vmatpush.bf16.msra.mxu0 0
      %788 = vmatpush.bf16.msra.mxu0 0
      %789 = vmatpush.bf16.msra.mxu0 0
      %790 = vmatpush.bf16.msra.mxu0 0
      %791 = vmatpush.bf16.msra.mxu0 0
      %792 = vmatpush.bf16.msra.mxu0 0
      %793 = vmatpush.bf16.msra.mxu0 %v783
      %794 = vmatpush.bf16.msra.mxu0 %v782
      %795 = vmatmul.bf16.gmra.mxu0 %v645
      %v796 = vpop.f32.mrf.mxu0
      %v797 = vadd.f32 %v785, %v796
      %v798 = vpop.f32.mrf.mxu0
      %799 = vdwg.mxu0
      %s800 = scalar_lea.vmem %s6, 96
      %v801 = vld [vmem:[%s800] sm:$0xff]
      %v802 = vld [vmem:[%s800 + $0x8] sm:$0xff]
      %v803 = vld [vmem:[%s800 + $0x10] sm:$0xff]
      %v804 = vld [vmem:[%s800 + $0x18] sm:$0xff]
      %s805 = scalar_lea.vmem %s7, 3
      %v806 = vld [vmem:[%s805] sm:$0x1]
      %v807 = vpack.c.bf16 %v802, %v801
      %v808 = vpack.c.bf16 %v804, %v803
      %v810 = vperm.slane %v806, 0
      %812 = vmatpush.bf16.msra.mxu0 0
      %813 = vmatpush.bf16.msra.mxu0 0
      %814 = vmatpush.bf16.msra.mxu0 0
      %815 = vmatpush.bf16.msra.mxu0 0
      %816 = vmatpush.bf16.msra.mxu0 0
      %817 = vmatpush.bf16.msra.mxu0 0
      %818 = vmatpush.bf16.msra.mxu0 %v808
      %819 = vmatpush.bf16.msra.mxu0 %v807
      %820 = vmatmul.bf16.gmra.mxu0 %v645
      %v821 = vpop.f32.mrf.mxu0
      %v822 = vadd.f32 %v810, %v821
      %v823 = vpop.f32.mrf.mxu0
      %824 = vdwg.mxu0
      %s825 = scalar_lea.vmem %s6, 160
      %v826 = vld [vmem:[%s825] sm:$0xff]
      %v827 = vld [vmem:[%s825 + $0x8] sm:$0xff]
      %v828 = vld [vmem:[%s825 + $0x10] sm:$0xff]
      %v829 = vld [vmem:[%s825 + $0x18] sm:$0xff]
      %s830 = scalar_lea.vmem %s7, 5
      %v831 = vld [vmem:[%s830] sm:$0x1]
      %v832 = vpack.c.bf16 %v827, %v826
      %v833 = vpack.c.bf16 %v829, %v828
      %v835 = vperm.slane %v831, 0
      %837 = vmatpush.bf16.msra.mxu0 0
      %838 = vmatpush.bf16.msra.mxu0 0
      %839 = vmatpush.bf16.msra.mxu0 0
      %840 = vmatpush.bf16.msra.mxu0 0
      %841 = vmatpush.bf16.msra.mxu0 0
      %842 = vmatpush.bf16.msra.mxu0 0
      %843 = vmatpush.bf16.msra.mxu0 %v833
      %844 = vmatpush.bf16.msra.mxu0 %v832
      %845 = vmatmul.bf16.gmra.mxu0 %v645
      %v846 = vpop.f32.mrf.mxu0
      %v847 = vadd.f32 %v835, %v846
      %v848 = vpop.f32.mrf.mxu0
      %849 = vdwg.mxu0
      %v850 = vpack.c.bf16 %v797, %v797
      %v851 = vpack.c.bf16 %v822, %v822
      %v853 = vsel %vm712, %v850, 0
      %v856 = vsel %vm712, %v851, 0
      %858 = vmatpush.bf16.xpose.msra.mxu0 0
      %859 = vmatpush.bf16.xpose.msra.mxu0 0
      %860 = vmatpush.bf16.xpose.msra.mxu0 0
      %861 = vmatpush.bf16.xpose.msra.mxu0 0
      %862 = vmatpush.bf16.xpose.msra.mxu0 0
      %863 = vmatpush.bf16.xpose.msra.mxu0 0
      %864 = vmatpush.bf16.xpose.msra.mxu0 0
      %865 = vmatpush.bf16.xpose.msra.mxu0 %v856
      %866 = vmatmul.bf16.gmra.mxu0 %v853
      %v867 = vpop.f32.mrf.mxu0
      %v868 = vadd.f32 0.0, %v867
      %v869 = vpop.f32.mrf.mxu0
      %870 = vdwg.mxu0
      %v871 = vmul.f32 %v868, 0.25
      %v872 = vadd.f32 %v871, %v734
      %v873 = vsel %vm737, %v872, -inf
      %874 = vmax.xlane.f32.xlu0 %v873
      %v875 = vpop.xlane.xlu0 %874
      %v876 = vsub.f32 %v872, %v875
      %v877 = vmul.f32 %v876, 1.442695
      %v878 = vpow.pop %v877
      %v879 = vsel %vm737, %v878, 0.0
      %880 = vadd.xlane.f32.xlu0 %v879
      %v881 = vpop.xlane.xlu0 %880
      %v882 = vrcp.pop %v881
      %v883 = vmul.f32 %v878, %v882
      %v884 = vpack.c.bf16 %v883, %v883
      %v885 = vpack.c.bf16 %v847, %v847
      %v887 = vsel %vm737, %v884, 0
      %v890 = vsel %vm754, %v885, 0
      %892 = vmatpush.bf16.msra.mxu0 0
      %893 = vmatpush.bf16.msra.mxu0 0
      %894 = vmatpush.bf16.msra.mxu0 0
      %895 = vmatpush.bf16.msra.mxu0 0
      %896 = vmatpush.bf16.msra.mxu0 0
      %897 = vmatpush.bf16.msra.mxu0 0
      %898 = vmatpush.bf16.msra.mxu0 0
      %899 = vmatpush.bf16.msra.mxu0 %v890
      %900 = vmatmul.bf16.gmra.mxu0 %v887
      %v901 = vpop.f32.mrf.mxu0
      %v902 = vadd.f32 0.0, %v901
      %v903 = vpop.f32.mrf.mxu0
      %904 = vdwg.mxu0
      %s905 = scalar_lea.vmem %s8, 16
      %v906 = vld [vmem:[%s905] sm:$0xff]
      %v907 = vld [vmem:[%s905 + $0x8] sm:$0xff]
      %v908 = vpack.c.bf16 %v902, %v902
      %v909 = vpack.c.bf16 %v907, %v906
      %v911 = vsel %vm712, %v908, 0
      %913 = vmatpush.bf16.msra.mxu0 0
      %914 = vmatpush.bf16.msra.mxu0 0
      %915 = vmatpush.bf16.msra.mxu0 0
      %916 = vmatpush.bf16.msra.mxu0 0
      %917 = vmatpush.bf16.msra.mxu0 0
      %918 = vmatpush.bf16.msra.mxu0 0
      %919 = vmatpush.bf16.msra.mxu0 0
      %920 = vmatpush.bf16.msra.mxu0 %v909
      %921 = vmatmul.bf16.gmra.mxu0 %v911
      %v922 = vpop.f32.mrf.mxu0
      %v923 = vadd.f32 0.0, %v922
      %v924 = vpop.f32.mrf.mxu0
      %925 = vdwg.mxu0
      %v927 = vsel %vm712, %v773, 0
      %929 = vmatpush.bf16.msra.mxu0 0
      %930 = vmatpush.bf16.msra.mxu0 0
      %931 = vmatpush.bf16.msra.mxu0 0
      %932 = vmatpush.bf16.msra.mxu0 0
      %933 = vmatpush.bf16.msra.mxu0 0
      %934 = vmatpush.bf16.msra.mxu0 0
      %935 = vmatpush.bf16.msra.mxu0 0
      %936 = vmatpush.bf16.msra.mxu0 %v774
      %937 = vmatmul.bf16.gmra.mxu0 %v927
      %v938 = vpop.f32.mrf.mxu0
      %v939 = vadd.f32 %v923, %v938
      %v940 = vpop.f32.mrf.mxu0
      %941 = vdwg.mxu0
      %v942 = vld [vmem:[%s9] sm:$0x1]
      %v944 = vperm.slane %v942, 0
      %v946 = vadd.f32 %v939, %v944
      %v947 = vadd.f32 %v631, %v946
      %v948 = vld [vmem:[%s10] sm:$0x1]
      %v949 = vld [vmem:[%s11] sm:$0x1]
      %v950 = vsel %vm594, %v947, 0.0
      %951 = vadd.xlane.f32.xlu0 %v950
      %v952 = vpop.xlane.xlu0 %951
      %v953 = vmul.f32 %v952, %v604
      %v954 = vsub.f32 %v947, %v953
      %v955 = vmul.f32 %v954, %v954
      %v956 = vsel %vm594, %v955, 0.0
      %957 = vadd.xlane.f32.xlu0 %v956
      %v958 = vpop.xlane.xlu0 %957
      %v959 = vmul.f32 %v958, %v604
      %v960 = vadd.f32 %v959, 1e-12
      %v961 = vrsqrt.pop %v960
      %v962 = vmul.f32 %v961, %v960
      %v963 = vmul.f32 %v962, %v961
      %v964 = vmul.f32 0.5, %v963
      %v965 = vsub.f32 1.5, %v964
      %v966 = vmul.f32 %v961, %v965
      %vm967 = vweird.f32 %v960
      %vm968 = vweird.f32 %v961
      %vm969 = vmor %vm967, %vm968
      %v970 = vsel %vm969, %v961, %v966
      %v971 = vmul.f32 %v954, %v970
      %v973 = vperm.slane %v948, 0
      %v975 = vmul.f32 %v971, %v973
      %v977 = vperm.slane %v949, 0
      %v979 = vadd.f32 %v975, %v977
      %v980 = vld [vmem:[%s12] sm:$0xff]
      %v981 = vld [vmem:[%s12 + $0x8] sm:$0xff]
      %v982 = vld [vmem:[%s12 + $0x10] sm:$0xff]
      %v983 = vld [vmem:[%s12 + $0x18] sm:$0xff]
      %v984 = vld [vmem:[%s13] sm:$0x1]
      %v985 = vpack.c.bf16 %v979, %v979
      %v986 = vpack.c.bf16 %v981, %v980
      %v987 = vpack.c.bf16 %v983, %v982
      %v989 = vperm.slane %v984, 0
      %v992 = vsel %vm594, %v985, 0
      %994 = vmatpush.bf16.msra.mxu0 0
      %995 = vmatpush.bf16.msra.mxu0 0
      %996 = vmatpush.bf16.msra.mxu0 0
      %997 = vmatpush.bf16.msra.mxu0 0
      %998 = vmatpush.bf16.msra.mxu0 0
      %999 = vmatpush.bf16.msra.mxu0 0
      %1000 = vmatpush.bf16.msra.mxu0 %v987
      %1001 = vmatpush.bf16.msra.mxu0 %v986
      %1002 = vmatmul.bf16.gmra.mxu0 %v992
      %v1003 = vpop.f32.mrf.mxu0
      %v1004 = vadd.f32 %v989, %v1003
      %v1005 = vpop.f32.mrf.mxu0
      %1006 = vdwg.mxu0
      %v1007 = vmul.f32 %v1004, %v1004
      %v1008 = vmul.f32 %v1004, %v1007
      %v1009 = vmul.f32 %v1008, 0.044715
      %v1010 = vadd.f32 %v1004, %v1009
      %v1011 = vmul.f32 %v1010, 0.7978846
      %v1012 = vtanh.pop %v1011
      %v1013 = vadd.f32 %v1012, 1.0
      %v1014 = vmul.f32 %v1013, 0.5
      %v1015 = vmul.f32 %v1004, %v1014
      %v1016 = vld [vmem:[%s14] sm:$0xff]
      %v1017 = vld [vmem:[%s14 + $0x8] sm:$0xff]
      %v1018 = vld [vmem:[%s14 + $0x10] sm:$0xff]
      %v1019 = vld [vmem:[%s14 + $0x18] sm:$0xff]
      %v1020 = vld [vmem:[%s14 + $0x20] sm:$0xff]
      %v1021 = vld [vmem:[%s14 + $0x28] sm:$0xff]
      %v1022 = vld [vmem:[%s14 + $0x30] sm:$0xff]
      %v1023 = vld [vmem:[%s14 + $0x38] sm:$0xff]
      %v1024 = vld [vmem:[%s14 + $0x40] sm:$0xff]
      %v1025 = vld [vmem:[%s14 + $0x48] sm:$0xff]
      %v1026 = vld [vmem:[%s14 + $0x50] sm:$0xff]
      %v1027 = vld [vmem:[%s14 + $0x58] sm:$0xff]
      %v1028 = vld [vmem:[%s14 + $0x60] sm:$0xff]
      %v1029 = vld [vmem:[%s14 + $0x68] sm:$0xff]
      %v1030 = vld [vmem:[%s14 + $0x70] sm:$0xff]
      %v1031 = vld [vmem:[%s14 + $0x78] sm:$0xff]
      %v1032 = vld [vmem:[%s15] sm:$0x1]
      %v1033 = vpack.c.bf16 %v1015, %v1015
      %v1034 = vpack.c.bf16 %v1017, %v1016
      %v1035 = vpack.c.bf16 %v1019, %v1018
      %v1036 = vpack.c.bf16 %v1021, %v1020
      %v1037 = vpack.c.bf16 %v1023, %v1022
      %v1038 = vpack.c.bf16 %v1025, %v1024
      %v1039 = vpack.c.bf16 %v1027, %v1026
      %v1040 = vpack.c.bf16 %v1029, %v1028
      %v1041 = vpack.c.bf16 %v1031, %v1030
      %v1043 = vperm.slane %v1032, 0
      %1045 = vmatpush.bf16.msra.mxu0 %v1041
      %1046 = vmatpush.bf16.msra.mxu0 %v1040
      %1047 = vmatpush.bf16.msra.mxu0 %v1039
      %1048 = vmatpush.bf16.msra.mxu0 %v1038
      %1049 = vmatpush.bf16.msra.mxu0 %v1037
      %1050 = vmatpush.bf16.msra.mxu0 %v1036
      %1051 = vmatpush.bf16.msra.mxu0 %v1035
      %1052 = vmatpush.bf16.msra.mxu0 %v1034
      %1053 = vmatmul.bf16.gmra.mxu0 %v1033
      %v1054 = vpop.f32.mrf.mxu0
      %v1055 = vadd.f32 %v1043, %v1054
      %v1056 = vpop.f32.mrf.mxu0
      %1057 = vdwg.mxu0
      %v1058 = vadd.f32 %v979, %v1055
      %v1059 = vld [vmem:[%s16] sm:$0x1]
      %v1060 = vld [vmem:[%s17] sm:$0x1]
      %v1061 = vsel %vm594, %v1058, 0.0
      %1062 = vadd.xlane.f32.xlu0 %v1061
      %v1063 = vpop.xlane.xlu0 %1062
      %v1064 = vmul.f32 %v1063, %v604
      %v1065 = vsub.f32 %v1058, %v1064
      %v1066 = vmul.f32 %v1065, %v1065
      %v1067 = vsel %vm594, %v1066, 0.0
      %1068 = vadd.xlane.f32.xlu0 %v1067
      %v1069 = vpop.xlane.xlu0 %1068
      %v1070 = vmul.f32 %v1069, %v604
      %v1071 = vadd.f32 %v1070, 1e-12
      %v1072 = vrsqrt.pop %v1071
      %v1073 = vmul.f32 %v1072, %v1071
      %v1074 = vmul.f32 %v1073, %v1072
      %v1075 = vmul.f32 0.5, %v1074
      %v1076 = vsub.f32 1.5, %v1075
      %v1077 = vmul.f32 %v1072, %v1076
      %vm1078 = vweird.f32 %v1071
      %vm1079 = vweird.f32 %v1072
      %vm1080 = vmor %vm1078, %vm1079
      %v1081 = vsel %vm1080, %v1072, %v1077
      %v1082 = vmul.f32 %v1065, %v1081
      %v1084 = vperm.slane %v1059, 0
      %v1086 = vmul.f32 %v1082, %v1084
      %v1088 = vperm.slane %v1060, 0
      %v1090 = vadd.f32 %v1086, %v1088
      %s1091 = scalar_lea.vmem %s6, 192
      %v1092 = vld [vmem:[%s1091] sm:$0xff]
      %v1093 = vld [vmem:[%s1091 + $0x8] sm:$0xff]
      %v1094 = vld [vmem:[%s1091 + $0x10] sm:$0xff]
      %v1095 = vld [vmem:[%s1091 + $0x18] sm:$0xff]
      %s1096 = scalar_lea.vmem %s7, 6
      %v1097 = vld [vmem:[%s1096] sm:$0x1]
      %v1098 = vpack.c.bf16 %v1090, %v1090
      %v1099 = vpack.c.bf16 %v1093, %v1092
      %v1100 = vpack.c.bf16 %v1095, %v1094
      %v1102 = vperm.slane %v1097, 0
      %v1105 = vsel %vm594, %v1098, 0
      %1107 = vmatpush.bf16.msra.mxu0 0
      %1108 = vmatpush.bf16.msra.mxu0 0
      %1109 = vmatpush.bf16.msra.mxu0 0
      %1110 = vmatpush.bf16.msra.mxu0 0
      %1111 = vmatpush.bf16.msra.mxu0 0
      %1112 = vmatpush.bf16.msra.mxu0 0
      %1113 = vmatpush.bf16.msra.mxu0 %v1100
      %1114 = vmatpush.bf16.msra.mxu0 %v1099
      %1115 = vmatmul.bf16.gmra.mxu0 %v1105
      %v1116 = vpop.f32.mrf.mxu0
      %v1117 = vadd.f32 %v1102, %v1116
      %v1118 = vpop.f32.mrf.mxu0
      %1119 = vdwg.mxu0
      %s1120 = scalar_lea.vmem %s6, 256
      %v1121 = vld [vmem:[%s1120] sm:$0xff]
      %v1122 = vld [vmem:[%s1120 + $0x8] sm:$0xff]
      %v1123 = vld [vmem:[%s1120 + $0x10] sm:$0xff]
      %v1124 = vld [vmem:[%s1120 + $0x18] sm:$0xff]
      %s1125 = scalar_lea.vmem %s7, 8
      %v1126 = vld [vmem:[%s1125] sm:$0x1]
      %v1127 = vpack.c.bf16 %v1122, %v1121
      %v1128 = vpack.c.bf16 %v1124, %v1123
      %v1130 = vperm.slane %v1126, 0
      %1132 = vmatpush.bf16.msra.mxu0 0
      %1133 = vmatpush.bf16.msra.mxu0 0
      %1134 = vmatpush.bf16.msra.mxu0 0
      %1135 = vmatpush.bf16.msra.mxu0 0
      %1136 = vmatpush.bf16.msra.mxu0 0
      %1137 = vmatpush.bf16.msra.mxu0 0
      %1138 = vmatpush.bf16.msra.mxu0 %v1128
      %1139 = vmatpush.bf16.msra.mxu0 %v1127
      %1140 = vmatmul.bf16.gmra.mxu0 %v1105
      %v1141 = vpop.f32.mrf.mxu0
      %v1142 = vadd.f32 %v1130, %v1141
      %v1143 = vpop.f32.mrf.mxu0
      %1144 = vdwg.mxu0
      %s1145 = scalar_lea.vmem %s6, 320
      %v1146 = vld [vmem:[%s1145] sm:$0xff]
      %v1147 = vld [vmem:[%s1145 + $0x8] sm:$0xff]
      %v1148 = vld [vmem:[%s1145 + $0x10] sm:$0xff]
      %v1149 = vld [vmem:[%s1145 + $0x18] sm:$0xff]
      %s1150 = scalar_lea.vmem %s7, 10
      %v1151 = vld [vmem:[%s1150] sm:$0x1]
      %v1152 = vpack.c.bf16 %v1147, %v1146
      %v1153 = vpack.c.bf16 %v1149, %v1148
      %v1155 = vperm.slane %v1151, 0
      %1157 = vmatpush.bf16.msra.mxu0 0
      %1158 = vmatpush.bf16.msra.mxu0 0
      %1159 = vmatpush.bf16.msra.mxu0 0
      %1160 = vmatpush.bf16.msra.mxu0 0
      %1161 = vmatpush.bf16.msra.mxu0 0
      %1162 = vmatpush.bf16.msra.mxu0 0
      %1163 = vmatpush.bf16.msra.mxu0 %v1153
      %1164 = vmatpush.bf16.msra.mxu0 %v1152
      %1165 = vmatmul.bf16.gmra.mxu0 %v1105
      %v1166 = vpop.f32.mrf.mxu0
      %v1167 = vadd.f32 %v1155, %v1166
      %v1168 = vpop.f32.mrf.mxu0
      %1169 = vdwg.mxu0
      %v1170 = vpack.c.bf16 %v1117, %v1117
      %v1171 = vpack.c.bf16 %v1142, %v1142
      %v1173 = vsel %vm712, %v1170, 0
      %v1176 = vsel %vm712, %v1171, 0
      %1178 = vmatpush.bf16.xpose.msra.mxu0 0
      %1179 = vmatpush.bf16.xpose.msra.mxu0 0
      %1180 = vmatpush.bf16.xpose.msra.mxu0 0
      %1181 = vmatpush.bf16.xpose.msra.mxu0 0
      %1182 = vmatpush.bf16.xpose.msra.mxu0 0
      %1183 = vmatpush.bf16.xpose.msra.mxu0 0
      %1184 = vmatpush.bf16.xpose.msra.mxu0 0
      %1185 = vmatpush.bf16.xpose.msra.mxu0 %v1176
      %1186 = vmatmul.bf16.gmra.mxu0 %v1173
      %v1187 = vpop.f32.mrf.mxu0
      %v1188 = vadd.f32 0.0, %v1187
      %v1189 = vpop.f32.mrf.mxu0
      %1190 = vdwg.mxu0
      %v1191 = vmul.f32 %v1188, 0.25
      %v1192 = vadd.f32 %v1191, %v734
      %v1193 = vsel %vm737, %v1192, -inf
      %1194 = vmax.xlane.f32.xlu0 %v1193
      %v1195 = vpop.xlane.xlu0 %1194
      %v1196 = vsub.f32 %v1192, %v1195
      %v1197 = vmul.f32 %v1196, 1.442695
      %v1198 = vpow.pop %v1197
      %v1199 = vsel %vm737, %v1198, 0.0
      %1200 = vadd.xlane.f32.xlu0 %v1199
      %v1201 = vpop.xlane.xlu0 %1200
      %v1202 = vrcp.pop %v1201
      %v1203 = vmul.f32 %v1198, %v1202
      %v1204 = vpack.c.bf16 %v1203, %v1203
      %v1205 = vpack.c.bf16 %v1167, %v1167
      %v1207 = vsel %vm737, %v1204, 0
      %v1210 = vsel %vm754, %v1205, 0
      %1212 = vmatpush.bf16.msra.mxu0 0
      %1213 = vmatpush.bf16.msra.mxu0 0
      %1214 = vmatpush.bf16.msra.mxu0 0
      %1215 = vmatpush.bf16.msra.mxu0 0
      %1216 = vmatpush.bf16.msra.mxu0 0
      %1217 = vmatpush.bf16.msra.mxu0 0
      %1218 = vmatpush.bf16.msra.mxu0 0
      %1219 = vmatpush.bf16.msra.mxu0 %v1210
      %1220 = vmatmul.bf16.gmra.mxu0 %v1207
      %v1221 = vpop.f32.mrf.mxu0
      %v1222 = vadd.f32 0.0, %v1221
      %v1223 = vpop.f32.mrf.mxu0
      %1224 = vdwg.mxu0
      %s1225 = scalar_lea.vmem %s8, 32
      %v1226 = vld [vmem:[%s1225] sm:$0xff]
      %v1227 = vld [vmem:[%s1225 + $0x8] sm:$0xff]
      %v1228 = vpack.c.bf16 %v1222, %v1222
      %v1229 = vpack.c.bf16 %v1227, %v1226
      %s1230 = scalar_lea.vmem %s6, 224
      %v1231 = vld [vmem:[%s1230] sm:$0xff]
      %v1232 = vld [vmem:[%s1230 + $0x8] sm:$0xff]
      %v1233 = vld [vmem:[%s1230 + $0x10] sm:$0xff]
      %v1234 = vld [vmem:[%s1230 + $0x18] sm:$0xff]
      %s1235 = scalar_lea.vmem %s7, 7
      %v1236 = vld [vmem:[%s1235] sm:$0x1]
      %v1237 = vpack.c.bf16 %v1232, %v1231
      %v1238 = vpack.c.bf16 %v1234, %v1233
      %v1240 = vperm.slane %v1236, 0
      %1242 = vmatpush.bf16.msra.mxu0 0
      %1243 = vmatpush.bf16.msra.mxu0 0
      %1244 = vmatpush.bf16.msra.mxu0 0
      %1245 = vmatpush.bf16.msra.mxu0 0
      %1246 = vmatpush.bf16.msra.mxu0 0
      %1247 = vmatpush.bf16.msra.mxu0 0
      %1248 = vmatpush.bf16.msra.mxu0 %v1238
      %1249 = vmatpush.bf16.msra.mxu0 %v1237
      %1250 = vmatmul.bf16.gmra.mxu0 %v1105
      %v1251 = vpop.f32.mrf.mxu0
      %v1252 = vadd.f32 %v1240, %v1251
      %v1253 = vpop.f32.mrf.mxu0
      %1254 = vdwg.mxu0
      %s1255 = scalar_lea.vmem %s6, 288
      %v1256 = vld [vmem:[%s1255] sm:$0xff]
      %v1257 = vld [vmem:[%s1255 + $0x8] sm:$0xff]
      %v1258 = vld [vmem:[%s1255 + $0x10] sm:$0xff]
      %v1259 = vld [vmem:[%s1255 + $0x18] sm:$0xff]
      %s1260 = scalar_lea.vmem %s7, 9
      %v1261 = vld [vmem:[%s1260] sm:$0x1]
      %v1262 = vpack.c.bf16 %v1257, %v1256
      %v1263 = vpack.c.bf16 %v1259, %v1258
      %v1265 = vperm.slane %v1261, 0
      %1267 = vmatpush.bf16.msra.mxu0 0
      %1268 = vmatpush.bf16.msra.mxu0 0
      %1269 = vmatpush.bf16.msra.mxu0 0
      %1270 = vmatpush.bf16.msra.mxu0 0
      %1271 = vmatpush.bf16.msra.mxu0 0
      %1272 = vmatpush.bf16.msra.mxu0 0
      %1273 = vmatpush.bf16.msra.mxu0 %v1263
      %1274 = vmatpush.bf16.msra.mxu0 %v1262
      %1275 = vmatmul.bf16.gmra.mxu0 %v1105
      %v1276 = vpop.f32.mrf.mxu0
      %v1277 = vadd.f32 %v1265, %v1276
      %v1278 = vpop.f32.mrf.mxu0
      %1279 = vdwg.mxu0
      %s1280 = scalar_lea.vmem %s6, 352
      %v1281 = vld [vmem:[%s1280] sm:$0xff]
      %v1282 = vld [vmem:[%s1280 + $0x8] sm:$0xff]
      %v1283 = vld [vmem:[%s1280 + $0x10] sm:$0xff]
      %v1284 = vld [vmem:[%s1280 + $0x18] sm:$0xff]
      %s1285 = scalar_lea.vmem %s7, 11
      %v1286 = vld [vmem:[%s1285] sm:$0x1]
      %v1287 = vpack.c.bf16 %v1282, %v1281
      %v1288 = vpack.c.bf16 %v1284, %v1283
      %v1290 = vperm.slane %v1286, 0
      %1292 = vmatpush.bf16.msra.mxu0 0
      %1293 = vmatpush.bf16.msra.mxu0 0
      %1294 = vmatpush.bf16.msra.mxu0 0
      %1295 = vmatpush.bf16.msra.mxu0 0
      %1296 = vmatpush.bf16.msra.mxu0 0
      %1297 = vmatpush.bf16.msra.mxu0 0
      %1298 = vmatpush.bf16.msra.mxu0 %v1288
      %1299 = vmatpush.bf16.msra.mxu0 %v1287
      %1300 = vmatmul.bf16.gmra.mxu0 %v1105
      %v1301 = vpop.f32.mrf.mxu0
      %v1302 = vadd.f32 %v1290, %v1301
      %v1303 = vpop.f32.mrf.mxu0
      %1304 = vdwg.mxu0
      %v1305 = vpack.c.bf16 %v1252, %v1252
      %v1306 = vpack.c.bf16 %v1277, %v1277
      %v1308 = vsel %vm712, %v1305, 0
      %v1311 = vsel %vm712, %v1306, 0
      %1313 = vmatpush.bf16.xpose.msra.mxu0 0
      %1314 = vmatpush.bf16.xpose.msra.mxu0 0
      %1315 = vmatpush.bf16.xpose.msra.mxu0 0
      %1316 = vmatpush.bf16.xpose.msra.mxu0 0
      %1317 = vmatpush.bf16.xpose.msra.mxu0 0
      %1318 = vmatpush.bf16.xpose.msra.mxu0 0
      %1319 = vmatpush.bf16.xpose.msra.mxu0 0
      %1320 = vmatpush.bf16.xpose.msra.mxu0 %v1311
      %1321 = vmatmul.bf16.gmra.mxu0 %v1308
      %v1322 = vpop.f32.mrf.mxu0
      %v1323 = vadd.f32 0.0, %v1322
      %v1324 = vpop.f32.mrf.mxu0
      %1325 = vdwg.mxu0
      %v1326 = vmul.f32 %v1323, 0.25
      %v1327 = vadd.f32 %v1326, %v734
      %v1328 = vsel %vm737, %v1327, -inf
      %1329 = vmax.xlane.f32.xlu0 %v1328
      %v1330 = vpop.xlane.xlu0 %1329
      %v1331 = vsub.f32 %v1327, %v1330
      %v1332 = vmul.f32 %v1331, 1.442695
      %v1333 = vpow.pop %v1332
      %v1334 = vsel %vm737, %v1333, 0.0
      %1335 = vadd.xlane.f32.xlu0 %v1334
      %v1336 = vpop.xlane.xlu0 %1335
      %v1337 = vrcp.pop %v1336
      %v1338 = vmul.f32 %v1333, %v1337
      %v1339 = vpack.c.bf16 %v1338, %v1338
      %v1340 = vpack.c.bf16 %v1302, %v1302
      %v1342 = vsel %vm737, %v1339, 0
      %v1345 = vsel %vm754, %v1340, 0
      %1347 = vmatpush.bf16.msra.mxu0 0
      %1348 = vmatpush.bf16.msra.mxu0 0
      %1349 = vmatpush.bf16.msra.mxu0 0
      %1350 = vmatpush.bf16.msra.mxu0 0
      %1351 = vmatpush.bf16.msra.mxu0 0
      %1352 = vmatpush.bf16.msra.mxu0 0
      %1353 = vmatpush.bf16.msra.mxu0 0
      %1354 = vmatpush.bf16.msra.mxu0 %v1345
      %1355 = vmatmul.bf16.gmra.mxu0 %v1342
      %v1356 = vpop.f32.mrf.mxu0
      %v1357 = vadd.f32 0.0, %v1356
      %v1358 = vpop.f32.mrf.mxu0
      %1359 = vdwg.mxu0
      %s1360 = scalar_lea.vmem %s8, 48
      %v1361 = vld [vmem:[%s1360] sm:$0xff]
      %v1362 = vld [vmem:[%s1360 + $0x8] sm:$0xff]
      %v1363 = vpack.c.bf16 %v1357, %v1357
      %v1364 = vpack.c.bf16 %v1362, %v1361
      %v1366 = vsel %vm712, %v1363, 0
      %1368 = vmatpush.bf16.msra.mxu0 0
      %1369 = vmatpush.bf16.msra.mxu0 0
      %1370 = vmatpush.bf16.msra.mxu0 0
      %1371 = vmatpush.bf16.msra.mxu0 0
      %1372 = vmatpush.bf16.msra.mxu0 0
      %1373 = vmatpush.bf16.msra.mxu0 0
      %1374 = vmatpush.bf16.msra.mxu0 0
      %1375 = vmatpush.bf16.msra.mxu0 %v1364
      %1376 = vmatmul.bf16.gmra.mxu0 %v1366
      %v1377 = vpop.f32.mrf.mxu0
      %v1378 = vadd.f32 0.0, %v1377
      %v1379 = vpop.f32.mrf.mxu0
      %1380 = vdwg.mxu0
      %v1382 = vsel %vm712, %v1228, 0
      %1384 = vmatpush.bf16.msra.mxu0 0
      %1385 = vmatpush.bf16.msra.mxu0 0
      %1386 = vmatpush.bf16.msra.mxu0 0
      %1387 = vmatpush.bf16.msra.mxu0 0
      %1388 = vmatpush.bf16.msra.mxu0 0
      %1389 = vmatpush.bf16.msra.mxu0 0
      %1390 = vmatpush.bf16.msra.mxu0 0
      %1391 = vmatpush.bf16.msra.mxu0 %v1229
      %1392 = vmatmul.bf16.gmra.mxu0 %v1382
      %v1393 = vpop.f32.mrf.mxu0
      %v1394 = vadd.f32 %v1378, %v1393
      %v1395 = vpop.f32.mrf.mxu0
      %1396 = vdwg.mxu0
      %s1397 = scalar_lea.vmem %s9, 1
      %v1398 = vld [vmem:[%s1397] sm:$0x1]
      %v1400 = vperm.slane %v1398, 0
      %v1402 = vadd.f32 %v1394, %v1400
      %v1403 = vadd.f32 %v1090, %v1402
      %s1404 = scalar_lea.vmem %s10, 1
      %v1405 = vld [vmem:[%s1404] sm:$0x1]
      %s1406 = scalar_lea.vmem %s11, 1
      %v1407 = vld [vmem:[%s1406] sm:$0x1]
      %v1408 = vsel %vm594, %v1403, 0.0
      %1409 = vadd.xlane.f32.xlu0 %v1408
      %v1410 = vpop.xlane.xlu0 %1409
      %v1411 = vmul.f32 %v1410, %v604
      %v1412 = vsub.f32 %v1403, %v1411
      %v1413 = vmul.f32 %v1412, %v1412
      %v1414 = vsel %vm594, %v1413, 0.0
      %1415 = vadd.xlane.f32.xlu0 %v1414
      %v1416 = vpop.xlane.xlu0 %1415
      %v1417 = vmul.f32 %v1416, %v604
      %v1418 = vadd.f32 %v1417, 1e-12
      %v1419 = vrsqrt.pop %v1418
      %v1420 = vmul.f32 %v1419, %v1418
      %v1421 = vmul.f32 %v1420, %v1419
      %v1422 = vmul.f32 0.5, %v1421
      %v1423 = vsub.f32 1.5, %v1422
      %v1424 = vmul.f32 %v1419, %v1423
      %vm1425 = vweird.f32 %v1418
      %vm1426 = vweird.f32 %v1419
      %vm1427 = vmor %vm1425, %vm1426
      %v1428 = vsel %vm1427, %v1419, %v1424
      %v1429 = vmul.f32 %v1412, %v1428
      %v1431 = vperm.slane %v1405, 0
      %v1433 = vmul.f32 %v1429, %v1431
      %v1435 = vperm.slane %v1407, 0
      %v1437 = vadd.f32 %v1433, %v1435
      %s1438 = scalar_lea.vmem %s12, 32
      %v1439 = vld [vmem:[%s1438] sm:$0xff]
      %v1440 = vld [vmem:[%s1438 + $0x8] sm:$0xff]
      %v1441 = vld [vmem:[%s1438 + $0x10] sm:$0xff]
      %v1442 = vld [vmem:[%s1438 + $0x18] sm:$0xff]
      %s1443 = scalar_lea.vmem %s13, 1
      %v1444 = vld [vmem:[%s1443] sm:$0x1]
      %v1445 = vpack.c.bf16 %v1437, %v1437
      %v1446 = vpack.c.bf16 %v1440, %v1439
      %v1447 = vpack.c.bf16 %v1442, %v1441
      %v1449 = vperm.slane %v1444, 0
      %v1452 = vsel %vm594, %v1445, 0
      %1454 = vmatpush.bf16.msra.mxu0 0
      %1455 = vmatpush.bf16.msra.mxu0 0
      %1456 = vmatpush.bf16.msra.mxu0 0
      %1457 = vmatpush.bf16.msra.mxu0 0
      %1458 = vmatpush.bf16.msra.mxu0 0
      %1459 = vmatpush.bf16.msra.mxu0 0
      %1460 = vmatpush.bf16.msra.mxu0 %v1447
      %1461 = vmatpush.bf16.msra.mxu0 %v1446
      %1462 = vmatmul.bf16.gmra.mxu0 %v1452
      %v1463 = vpop.f32.mrf.mxu0
      %v1464 = vadd.f32 %v1449, %v1463
      %v1465 = vpop.f32.mrf.mxu0
      %1466 = vdwg.mxu0
      %v1467 = vmul.f32 %v1464, %v1464
      %v1468 = vmul.f32 %v1464, %v1467
      %v1469 = vmul.f32 %v1468, 0.044715
      %v1470 = vadd.f32 %v1464, %v1469
      %v1471 = vmul.f32 %v1470, 0.7978846
      %v1472 = vtanh.pop %v1471
      %v1473 = vadd.f32 %v1472, 1.0
      %v1474 = vmul.f32 %v1473, 0.5
      %v1475 = vmul.f32 %v1464, %v1474
      %s1476 = scalar_lea.vmem %s14, 128
      %v1477 = vld [vmem:[%s1476] sm:$0xff]
      %v1478 = vld [vmem:[%s1476 + $0x8] sm:$0xff]
      %v1479 = vld [vmem:[%s1476 + $0x10] sm:$0xff]
      %v1480 = vld [vmem:[%s1476 + $0x18] sm:$0xff]
      %v1481 = vld [vmem:[%s1476 + $0x20] sm:$0xff]
      %v1482 = vld [vmem:[%s1476 + $0x28] sm:$0xff]
      %v1483 = vld [vmem:[%s1476 + $0x30] sm:$0xff]
      %v1484 = vld [vmem:[%s1476 + $0x38] sm:$0xff]
      %v1485 = vld [vmem:[%s1476 + $0x40] sm:$0xff]
      %v1486 = vld [vmem:[%s1476 + $0x48] sm:$0xff]
      %v1487 = vld [vmem:[%s1476 + $0x50] sm:$0xff]
      %v1488 = vld [vmem:[%s1476 + $0x58] sm:$0xff]
      %v1489 = vld [vmem:[%s1476 + $0x60] sm:$0xff]
      %v1490 = vld [vmem:[%s1476 + $0x68] sm:$0xff]
      %v1491 = vld [vmem:[%s1476 + $0x70] sm:$0xff]
      %v1492 = vld [vmem:[%s1476 + $0x78] sm:$0xff]
      %s1493 = scalar_lea.vmem %s15, 1
      %v1494 = vld [vmem:[%s1493] sm:$0x1]
      %v1495 = vpack.c.bf16 %v1475, %v1475
      %v1496 = vpack.c.bf16 %v1478, %v1477
      %v1497 = vpack.c.bf16 %v1480, %v1479
      %v1498 = vpack.c.bf16 %v1482, %v1481
      %v1499 = vpack.c.bf16 %v1484, %v1483
      %v1500 = vpack.c.bf16 %v1486, %v1485
      %v1501 = vpack.c.bf16 %v1488, %v1487
      %v1502 = vpack.c.bf16 %v1490, %v1489
      %v1503 = vpack.c.bf16 %v1492, %v1491
      %v1505 = vperm.slane %v1494, 0
      %1507 = vmatpush.bf16.msra.mxu0 %v1503
      %1508 = vmatpush.bf16.msra.mxu0 %v1502
      %1509 = vmatpush.bf16.msra.mxu0 %v1501
      %1510 = vmatpush.bf16.msra.mxu0 %v1500
      %1511 = vmatpush.bf16.msra.mxu0 %v1499
      %1512 = vmatpush.bf16.msra.mxu0 %v1498
      %1513 = vmatpush.bf16.msra.mxu0 %v1497
      %1514 = vmatpush.bf16.msra.mxu0 %v1496
      %1515 = vmatmul.bf16.gmra.mxu0 %v1495
      %v1516 = vpop.f32.mrf.mxu0
      %v1517 = vadd.f32 %v1505, %v1516
      %v1518 = vpop.f32.mrf.mxu0
      %1519 = vdwg.mxu0
      %v1520 = vadd.f32 %v1437, %v1517
      %s1521 = scalar_lea.vmem %s16, 1
      %v1522 = vld [vmem:[%s1521] sm:$0x1]
      %s1523 = scalar_lea.vmem %s17, 1
      %v1524 = vld [vmem:[%s1523] sm:$0x1]
      %v1525 = vsel %vm594, %v1520, 0.0
      %1526 = vadd.xlane.f32.xlu0 %v1525
      %v1527 = vpop.xlane.xlu0 %1526
      %v1528 = vmul.f32 %v1527, %v604
      %v1529 = vsub.f32 %v1520, %v1528
      %v1530 = vmul.f32 %v1529, %v1529
      %v1531 = vsel %vm594, %v1530, 0.0
      %1532 = vadd.xlane.f32.xlu0 %v1531
      %v1533 = vpop.xlane.xlu0 %1532
      %v1534 = vmul.f32 %v1533, %v604
      %v1535 = vadd.f32 %v1534, 1e-12
      %v1536 = vrsqrt.pop %v1535
      %v1537 = vmul.f32 %v1536, %v1535
      %v1538 = vmul.f32 %v1537, %v1536
      %v1539 = vmul.f32 0.5, %v1538
      %v1540 = vsub.f32 1.5, %v1539
      %v1541 = vmul.f32 %v1536, %v1540
      %vm1542 = vweird.f32 %v1535
      %vm1543 = vweird.f32 %v1536
      %vm1544 = vmor %vm1542, %vm1543
      %v1545 = vsel %vm1544, %v1536, %v1541
      %v1546 = vmul.f32 %v1529, %v1545
      %v1548 = vperm.slane %v1522, 0
      %v1550 = vmul.f32 %v1546, %v1548
      %v1552 = vperm.slane %v1524, 0
      %v1554 = vadd.f32 %v1550, %v1552
      %vm1555 = vcmask 253952
      %1556 = vst.msk [vmem:[%s582] sm:$0x1] %vm1555, %v1554
      %p1557 = scmp.lt.s32.totalorder %s29, 1
      %s1558 = scalar_select %p1557, %s29, 1
      %s1559 = scalar_lea.vmem %s18, %s1558
      // Predicated region
      $region93: #{clip_forward.4} parent=91 // pred_check
        %p1560 = pneg %p435
      $region94: #{clip_forward.4} parent=91 // pred_check_branch
        %1562 = sbr.rel (%p1560) target = $region96
      $region95: #{clip_forward.4} parent=91 // pred_region
        _
      $region96: #{clip_forward.4} parent=91 // pred_fallthru
        _
    $region92: #{clip_forward.4} parent=5 // pred_fallthru
      _
    %p1563 = scmp.le.s32.totalorder 2, %s24
    // Predicated region
    $region97: #{clip_forward.4} parent=5 // pred_check
      %p1564 = pneg %p1563
    $region98: #{clip_forward.4} parent=5 // pred_check_branch
      %1566 = sbr.rel (%p1564) target = $region100
    $region99: #{clip_forward.4} parent=5 // pred_region
      %s1567 = ssub.s32 %s24, 2
      // Predicated region
      $region101: #{clip_forward.4} parent=99 // pred_check
        %p1568 = pneg %p441
      $region102: #{clip_forward.4} parent=99 // pred_check_branch
        %1570 = sbr.rel (%p1568) target = $region104
      $region103: #{clip_forward.4} parent=99 // pred_region
        %p1571 = scmp.lt.s32.totalorder %s30, 1
        %s1572 = scalar_select %p1571, %s30, 1
        %s1573 = scalar_lea.vmem %s18, %s1572
      $region104: #{clip_forward.4} parent=99 // pred_fallthru
        _
    $region100: #{clip_forward.4} parent=5 // pred_fallthru
      _
  $region6: #{clip_forward.4} parent=0 // loop_footer
    %s28 = sadd.s32 1, %s24
  $region7: #{clip_forward.4} parent=0 // loop_footer_branch
    %23 = sbr.rel target = $region3
  $region8: #{clip_forward.4} parent=0 // loop_exit
    _

// kernel: clip_forward.3
$region0: #{clip_forward.3}
  #allocation0 [shape = 'u32[]', space=smem, size = 0x4, offset = 0x4, fixed_abs, tag = 'smem constant byte address 0x4 - core index']
  #allocation1 [shape = 'u32[72,128]{1,0:T(1,128)}', space=vmem, size = 0x9000, scoped, tag = 'internal scratch']
  %s0 = inlined_call_operand.vmem [shape: f32[2,16,48], index: 0, kind: input, shape index: {}]
  %s1 = inlined_call_operand.vmem [shape: f32[48,32], index: 1, kind: input, shape index: {}]
  %s2 = inlined_call_operand.vmem [shape: f32[1,32], index: 2, kind: input, shape index: {}]
  %s3 = inlined_call_operand.vmem [shape: f32[1,32], index: 3, kind: input, shape index: {}]
  %s4 = inlined_call_operand.vmem [shape: f32[17,32], index: 4, kind: input, shape index: {}]
  %s5 = inlined_call_operand.vmem [shape: f32[2,1,32], index: 5, kind: input, shape index: {}]
  %s6 = inlined_call_operand.vmem [shape: f32[2,1,32], index: 6, kind: input, shape index: {}]
  %s7 = inlined_call_operand.vmem [shape: f32[12,32,16], index: 7, kind: input, shape index: {}]
  %s8 = inlined_call_operand.vmem [shape: f32[12,1,16], index: 8, kind: input, shape index: {}]
  %s9 = inlined_call_operand.vmem [shape: f32[4,16,32], index: 9, kind: input, shape index: {}]
  %s10 = inlined_call_operand.vmem [shape: f32[2,1,32], index: 10, kind: input, shape index: {}]
  %s11 = inlined_call_operand.vmem [shape: f32[2,1,32], index: 11, kind: input, shape index: {}]
  %s12 = inlined_call_operand.vmem [shape: f32[2,1,32], index: 12, kind: input, shape index: {}]
  %s13 = inlined_call_operand.vmem [shape: f32[2,32,128], index: 13, kind: input, shape index: {}]
  %s14 = inlined_call_operand.vmem [shape: f32[2,1,128], index: 14, kind: input, shape index: {}]
  %s15 = inlined_call_operand.vmem [shape: f32[2,128,32], index: 15, kind: input, shape index: {}]
  %s16 = inlined_call_operand.vmem [shape: f32[2,1,32], index: 16, kind: input, shape index: {}]
  %s17 = inlined_call_operand.vmem [shape: f32[1,32], index: 17, kind: input, shape index: {}]
  %s18 = inlined_call_operand.vmem [shape: f32[1,32], index: 18, kind: input, shape index: {}]
  %s19 = inlined_call_operand.vmem [shape: f32[2,1,32], index: 19, kind: output, shape index: {}]
  %s20 = sld [smem:[#allocation0]]
  $region109: #{clip_forward.3} parent=0
    _
  %s22 = ssub.s32 1, %s20
  %s23 = scalar_select 0, %s22, %s20
  loop: start=0, step=1, limit=4
  $region2: #{clip_forward.3} parent=0 // loop_pre_header
    _
  $region3: #{clip_forward.3} parent=0 // loop_header
    %s25 = sphi 0, %s29
    %p26 = scmp.ge.s32.totalorder %s25, 4
    %s35 = sphi 0, %s37
    %s38 = sphi 0, %s35
    %s39 = sphi 0, %s38
    %s55 = sphi 0, %s39
    %s59 = sphi 0, %s59
    %s61 = sphi 0, %s59
    %s62 = sphi 0, %s61
    %s76 = sphi 0, %s62
    %s80 = sphi 0, %s80
    %s82 = sphi 0, %s80
    %s83 = sphi 0, %s82
    %s97 = sphi 0, %s83
    %s101 = sphi 0, %s101
    %s103 = sphi 0, %s101
    %s104 = sphi 0, %s103
    %s118 = sphi 0, %s104
    %s122 = sphi 0, %s122
    %s124 = sphi 0, %s122
    %s125 = sphi 0, %s124
    %s139 = sphi 0, %s125
    %s143 = sphi 0, %s143
    %s145 = sphi 0, %s143
    %s146 = sphi 0, %s145
    %s160 = sphi 0, %s146
    %s164 = sphi 0, %s164
    %s166 = sphi 0, %s164
    %s167 = sphi 0, %s166
    %s181 = sphi 0, %s167
    %s185 = sphi 0, %s185
    %s187 = sphi 0, %s185
    %s188 = sphi 0, %s187
    %s202 = sphi 0, %s188
    %s206 = sphi 0, %s206
    %s208 = sphi 0, %s206
    %s209 = sphi 0, %s208
    %s223 = sphi 0, %s209
    %s227 = sphi 0, %s227
    %s229 = sphi 0, %s227
    %s230 = sphi 0, %s229
    %s244 = sphi 0, %s230
    %s248 = sphi 0, %s248
    %s250 = sphi 0, %s248
    %s251 = sphi 0, %s250
    %s265 = sphi 0, %s251
    %s269 = sphi 0, %s269
    %s271 = sphi 0, %s269
    %s272 = sphi 0, %s271
    %s286 = sphi 0, %s272
    %s290 = sphi 0, %s290
    %s292 = sphi 0, %s290
    %s293 = sphi 0, %s292
    %s307 = sphi 0, %s293
    %s311 = sphi 0, %s311
    %s313 = sphi 0, %s311
    %s314 = sphi 0, %s313
    %s328 = sphi 0, %s314
    %s332 = sphi 0, %s332
    %s334 = sphi 0, %s332
    %s335 = sphi 0, %s334
    %s349 = sphi 0, %s335
    %s353 = sphi 0, %s353
    %s355 = sphi 0, %s353
    %s356 = sphi 0, %s355
    %s370 = sphi 0, %s356
    %s374 = sphi 0, %s374
    %s376 = sphi 0, %s374
    %s377 = sphi 0, %s376
    %s391 = sphi 0, %s377
    %s395 = sphi 0, %s395
    %s397 = sphi 0, %s395
    %s398 = sphi 0, %s397
    %s412 = sphi 0, %s398
    %s416 = sphi 0, %s416
    %s418 = sphi 0, %s416
    %s419 = sphi 0, %s418
    %s433 = sphi 0, %s419
    %s439 = sphi 0, %s441
    %s442 = sphi 0, %s439
    %s443 = sphi 0, %s442
    %s459 = sphi 0, %s443
  $region4: #{clip_forward.3} parent=0 // loop_header_branch
    %28 = sbr.rel (%p26) target = $region8
  $region5: #{clip_forward.3} parent=0 // loop_body
    %s30 = ssub.s32 %s25, 1
    %s31 = ssub.s32 %s25, 2
    %s32 = sadd.s32 %s25, 1
    %s33 = ssub.s32 %s25, %s32
    %p34 = scmp.eq.s32.totalorder %s33, 0
    %s36 = sadd.s32 %s35, 1
    %s37 = scalar_select %p34, %s35, %s36
    %p40 = pneg %p34
    %p41 = scmp.eq.s32.totalorder %s25, 1
    %p42 = por %p40, %p41
    %p43 = scmp.ne.s32.totalorder %s35, %s38
    %p44 = scmp.eq.s32.totalorder %s25, 0
    %p45 = por %p43, %p44
    %p46 = scmp.ne.s32.totalorder %s35, %s38
    %p47 = scmp.eq.s32.totalorder %s30, 1
    %p48 = por %p46, %p47
    %p49 = scmp.ne.s32.totalorder %s38, %s39
    %p50 = scmp.eq.s32.totalorder %s30, 0
    %p51 = por %p49, %p50
    %p52 = scmp.ne.s32.totalorder %s38, %s39
    %p53 = scmp.eq.s32.totalorder %s31, 1
    %p54 = por %p52, %p53
    %p56 = scmp.ne.s32.totalorder %s39, %s55
    %p57 = scmp.eq.s32.totalorder %s31, 0
    %p58 = por %p56, %p57
    %s60 = sadd.s32 %s59, 1
    %p63 = scmp.eq.s32.totalorder %s25, 1
    %p64 = scmp.ne.s32.totalorder %s59, %s61
    %p65 = scmp.eq.s32.totalorder %s25, 0
    %p66 = por %p64, %p65
    %p67 = scmp.ne.s32.totalorder %s59, %s61
    %p68 = scmp.eq.s32.totalorder %s30, 1
    %p69 = por %p67, %p68
    %p70 = scmp.ne.s32.totalorder %s61, %s62
    %p71 = scmp.eq.s32.totalorder %s30, 0
    %p72 = por %p70, %p71
    %p73 = scmp.ne.s32.totalorder %s61, %s62
    %p74 = scmp.eq.s32.totalorder %s31, 1
    %p75 = por %p73, %p74
    %p77 = scmp.ne.s32.totalorder %s62, %s76
    %p78 = scmp.eq.s32.totalorder %s31, 0
    %p79 = por %p77, %p78
    %s81 = sadd.s32 %s80, 1
    %p84 = scmp.eq.s32.totalorder %s25, 1
    %p85 = scmp.ne.s32.totalorder %s80, %s82
    %p86 = scmp.eq.s32.totalorder %s25, 0
    %p87 = por %p85, %p86
    %p88 = scmp.ne.s32.totalorder %s80, %s82
    %p89 = scmp.eq.s32.totalorder %s30, 1
    %p90 = por %p88, %p89
    %p91 = scmp.ne.s32.totalorder %s82, %s83
    %p92 = scmp.eq.s32.totalorder %s30, 0
    %p93 = por %p91, %p92
    %p94 = scmp.ne.s32.totalorder %s82, %s83
    %p95 = scmp.eq.s32.totalorder %s31, 1
    %p96 = por %p94, %p95
    %p98 = scmp.ne.s32.totalorder %s83, %s97
    %p99 = scmp.eq.s32.totalorder %s31, 0
    %p100 = por %p98, %p99
    %s102 = sadd.s32 %s101, 1
    %p105 = scmp.eq.s32.totalorder %s25, 1
    %p106 = scmp.ne.s32.totalorder %s101, %s103
    %p107 = scmp.eq.s32.totalorder %s25, 0
    %p108 = por %p106, %p107
    %p109 = scmp.ne.s32.totalorder %s101, %s103
    %p110 = scmp.eq.s32.totalorder %s30, 1
    %p111 = por %p109, %p110
    %p112 = scmp.ne.s32.totalorder %s103, %s104
    %p113 = scmp.eq.s32.totalorder %s30, 0
    %p114 = por %p112, %p113
    %p115 = scmp.ne.s32.totalorder %s103, %s104
    %p116 = scmp.eq.s32.totalorder %s31, 1
    %p117 = por %p115, %p116
    %p119 = scmp.ne.s32.totalorder %s104, %s118
    %p120 = scmp.eq.s32.totalorder %s31, 0
    %p121 = por %p119, %p120
    %s123 = sadd.s32 %s122, 1
    %p126 = scmp.eq.s32.totalorder %s25, 1
    %p127 = scmp.ne.s32.totalorder %s122, %s124
    %p128 = scmp.eq.s32.totalorder %s25, 0
    %p129 = por %p127, %p128
    %p130 = scmp.ne.s32.totalorder %s122, %s124
    %p131 = scmp.eq.s32.totalorder %s30, 1
    %p132 = por %p130, %p131
    %p133 = scmp.ne.s32.totalorder %s124, %s125
    %p134 = scmp.eq.s32.totalorder %s30, 0
    %p135 = por %p133, %p134
    %p136 = scmp.ne.s32.totalorder %s124, %s125
    %p137 = scmp.eq.s32.totalorder %s31, 1
    %p138 = por %p136, %p137
    %p140 = scmp.ne.s32.totalorder %s125, %s139
    %p141 = scmp.eq.s32.totalorder %s31, 0
    %p142 = por %p140, %p141
    %s144 = sadd.s32 %s143, 1
    %p147 = scmp.eq.s32.totalorder %s25, 1
    %p148 = scmp.ne.s32.totalorder %s143, %s145
    %p149 = scmp.eq.s32.totalorder %s25, 0
    %p150 = por %p148, %p149
    %p151 = scmp.ne.s32.totalorder %s143, %s145
    %p152 = scmp.eq.s32.totalorder %s30, 1
    %p153 = por %p151, %p152
    %p154 = scmp.ne.s32.totalorder %s145, %s146
    %p155 = scmp.eq.s32.totalorder %s30, 0
    %p156 = por %p154, %p155
    %p157 = scmp.ne.s32.totalorder %s145, %s146
    %p158 = scmp.eq.s32.totalorder %s31, 1
    %p159 = por %p157, %p158
    %p161 = scmp.ne.s32.totalorder %s146, %s160
    %p162 = scmp.eq.s32.totalorder %s31, 0
    %p163 = por %p161, %p162
    %s165 = sadd.s32 %s164, 1
    %p168 = scmp.eq.s32.totalorder %s25, 1
    %p169 = scmp.ne.s32.totalorder %s164, %s166
    %p170 = scmp.eq.s32.totalorder %s25, 0
    %p171 = por %p169, %p170
    %p172 = scmp.ne.s32.totalorder %s164, %s166
    %p173 = scmp.eq.s32.totalorder %s30, 1
    %p174 = por %p172, %p173
    %p175 = scmp.ne.s32.totalorder %s166, %s167
    %p176 = scmp.eq.s32.totalorder %s30, 0
    %p177 = por %p175, %p176
    %p178 = scmp.ne.s32.totalorder %s166, %s167
    %p179 = scmp.eq.s32.totalorder %s31, 1
    %p180 = por %p178, %p179
    %p182 = scmp.ne.s32.totalorder %s167, %s181
    %p183 = scmp.eq.s32.totalorder %s31, 0
    %p184 = por %p182, %p183
    %s186 = sadd.s32 %s185, 1
    %p189 = scmp.eq.s32.totalorder %s25, 1
    %p190 = scmp.ne.s32.totalorder %s185, %s187
    %p191 = scmp.eq.s32.totalorder %s25, 0
    %p192 = por %p190, %p191
    %p193 = scmp.ne.s32.totalorder %s185, %s187
    %p194 = scmp.eq.s32.totalorder %s30, 1
    %p195 = por %p193, %p194
    %p196 = scmp.ne.s32.totalorder %s187, %s188
    %p197 = scmp.eq.s32.totalorder %s30, 0
    %p198 = por %p196, %p197
    %p199 = scmp.ne.s32.totalorder %s187, %s188
    %p200 = scmp.eq.s32.totalorder %s31, 1
    %p201 = por %p199, %p200
    %p203 = scmp.ne.s32.totalorder %s188, %s202
    %p204 = scmp.eq.s32.totalorder %s31, 0
    %p205 = por %p203, %p204
    %s207 = sadd.s32 %s206, 1
    %p210 = scmp.eq.s32.totalorder %s25, 1
    %p211 = scmp.ne.s32.totalorder %s206, %s208
    %p212 = scmp.eq.s32.totalorder %s25, 0
    %p213 = por %p211, %p212
    %p214 = scmp.ne.s32.totalorder %s206, %s208
    %p215 = scmp.eq.s32.totalorder %s30, 1
    %p216 = por %p214, %p215
    %p217 = scmp.ne.s32.totalorder %s208, %s209
    %p218 = scmp.eq.s32.totalorder %s30, 0
    %p219 = por %p217, %p218
    %p220 = scmp.ne.s32.totalorder %s208, %s209
    %p221 = scmp.eq.s32.totalorder %s31, 1
    %p222 = por %p220, %p221
    %p224 = scmp.ne.s32.totalorder %s209, %s223
    %p225 = scmp.eq.s32.totalorder %s31, 0
    %p226 = por %p224, %p225
    %s228 = sadd.s32 %s227, 1
    %p231 = scmp.eq.s32.totalorder %s25, 1
    %p232 = scmp.ne.s32.totalorder %s227, %s229
    %p233 = scmp.eq.s32.totalorder %s25, 0
    %p234 = por %p232, %p233
    %p235 = scmp.ne.s32.totalorder %s227, %s229
    %p236 = scmp.eq.s32.totalorder %s30, 1
    %p237 = por %p235, %p236
    %p238 = scmp.ne.s32.totalorder %s229, %s230
    %p239 = scmp.eq.s32.totalorder %s30, 0
    %p240 = por %p238, %p239
    %p241 = scmp.ne.s32.totalorder %s229, %s230
    %p242 = scmp.eq.s32.totalorder %s31, 1
    %p243 = por %p241, %p242
    %p245 = scmp.ne.s32.totalorder %s230, %s244
    %p246 = scmp.eq.s32.totalorder %s31, 0
    %p247 = por %p245, %p246
    %s249 = sadd.s32 %s248, 1
    %p252 = scmp.eq.s32.totalorder %s25, 1
    %p253 = scmp.ne.s32.totalorder %s248, %s250
    %p254 = scmp.eq.s32.totalorder %s25, 0
    %p255 = por %p253, %p254
    %p256 = scmp.ne.s32.totalorder %s248, %s250
    %p257 = scmp.eq.s32.totalorder %s30, 1
    %p258 = por %p256, %p257
    %p259 = scmp.ne.s32.totalorder %s250, %s251
    %p260 = scmp.eq.s32.totalorder %s30, 0
    %p261 = por %p259, %p260
    %p262 = scmp.ne.s32.totalorder %s250, %s251
    %p263 = scmp.eq.s32.totalorder %s31, 1
    %p264 = por %p262, %p263
    %p266 = scmp.ne.s32.totalorder %s251, %s265
    %p267 = scmp.eq.s32.totalorder %s31, 0
    %p268 = por %p266, %p267
    %s270 = sadd.s32 %s269, 1
    %p273 = scmp.eq.s32.totalorder %s25, 1
    %p274 = scmp.ne.s32.totalorder %s269, %s271
    %p275 = scmp.eq.s32.totalorder %s25, 0
    %p276 = por %p274, %p275
    %p277 = scmp.ne.s32.totalorder %s269, %s271
    %p278 = scmp.eq.s32.totalorder %s30, 1
    %p279 = por %p277, %p278
    %p280 = scmp.ne.s32.totalorder %s271, %s272
    %p281 = scmp.eq.s32.totalorder %s30, 0
    %p282 = por %p280, %p281
    %p283 = scmp.ne.s32.totalorder %s271, %s272
    %p284 = scmp.eq.s32.totalorder %s31, 1
    %p285 = por %p283, %p284
    %p287 = scmp.ne.s32.totalorder %s272, %s286
    %p288 = scmp.eq.s32.totalorder %s31, 0
    %p289 = por %p287, %p288
    %s291 = sadd.s32 %s290, 1
    %p294 = scmp.eq.s32.totalorder %s25, 1
    %p295 = scmp.ne.s32.totalorder %s290, %s292
    %p296 = scmp.eq.s32.totalorder %s25, 0
    %p297 = por %p295, %p296
    %p298 = scmp.ne.s32.totalorder %s290, %s292
    %p299 = scmp.eq.s32.totalorder %s30, 1
    %p300 = por %p298, %p299
    %p301 = scmp.ne.s32.totalorder %s292, %s293
    %p302 = scmp.eq.s32.totalorder %s30, 0
    %p303 = por %p301, %p302
    %p304 = scmp.ne.s32.totalorder %s292, %s293
    %p305 = scmp.eq.s32.totalorder %s31, 1
    %p306 = por %p304, %p305
    %p308 = scmp.ne.s32.totalorder %s293, %s307
    %p309 = scmp.eq.s32.totalorder %s31, 0
    %p310 = por %p308, %p309
    %s312 = sadd.s32 %s311, 1
    %p315 = scmp.eq.s32.totalorder %s25, 1
    %p316 = scmp.ne.s32.totalorder %s311, %s313
    %p317 = scmp.eq.s32.totalorder %s25, 0
    %p318 = por %p316, %p317
    %p319 = scmp.ne.s32.totalorder %s311, %s313
    %p320 = scmp.eq.s32.totalorder %s30, 1
    %p321 = por %p319, %p320
    %p322 = scmp.ne.s32.totalorder %s313, %s314
    %p323 = scmp.eq.s32.totalorder %s30, 0
    %p324 = por %p322, %p323
    %p325 = scmp.ne.s32.totalorder %s313, %s314
    %p326 = scmp.eq.s32.totalorder %s31, 1
    %p327 = por %p325, %p326
    %p329 = scmp.ne.s32.totalorder %s314, %s328
    %p330 = scmp.eq.s32.totalorder %s31, 0
    %p331 = por %p329, %p330
    %s333 = sadd.s32 %s332, 1
    %p336 = scmp.eq.s32.totalorder %s25, 1
    %p337 = scmp.ne.s32.totalorder %s332, %s334
    %p338 = scmp.eq.s32.totalorder %s25, 0
    %p339 = por %p337, %p338
    %p340 = scmp.ne.s32.totalorder %s332, %s334
    %p341 = scmp.eq.s32.totalorder %s30, 1
    %p342 = por %p340, %p341
    %p343 = scmp.ne.s32.totalorder %s334, %s335
    %p344 = scmp.eq.s32.totalorder %s30, 0
    %p345 = por %p343, %p344
    %p346 = scmp.ne.s32.totalorder %s334, %s335
    %p347 = scmp.eq.s32.totalorder %s31, 1
    %p348 = por %p346, %p347
    %p350 = scmp.ne.s32.totalorder %s335, %s349
    %p351 = scmp.eq.s32.totalorder %s31, 0
    %p352 = por %p350, %p351
    %s354 = sadd.s32 %s353, 1
    %p357 = scmp.eq.s32.totalorder %s25, 1
    %p358 = scmp.ne.s32.totalorder %s353, %s355
    %p359 = scmp.eq.s32.totalorder %s25, 0
    %p360 = por %p358, %p359
    %p361 = scmp.ne.s32.totalorder %s353, %s355
    %p362 = scmp.eq.s32.totalorder %s30, 1
    %p363 = por %p361, %p362
    %p364 = scmp.ne.s32.totalorder %s355, %s356
    %p365 = scmp.eq.s32.totalorder %s30, 0
    %p366 = por %p364, %p365
    %p367 = scmp.ne.s32.totalorder %s355, %s356
    %p368 = scmp.eq.s32.totalorder %s31, 1
    %p369 = por %p367, %p368
    %p371 = scmp.ne.s32.totalorder %s356, %s370
    %p372 = scmp.eq.s32.totalorder %s31, 0
    %p373 = por %p371, %p372
    %s375 = sadd.s32 %s374, 1
    %p378 = scmp.eq.s32.totalorder %s25, 1
    %p379 = scmp.ne.s32.totalorder %s374, %s376
    %p380 = scmp.eq.s32.totalorder %s25, 0
    %p381 = por %p379, %p380
    %p382 = scmp.ne.s32.totalorder %s374, %s376
    %p383 = scmp.eq.s32.totalorder %s30, 1
    %p384 = por %p382, %p383
    %p385 = scmp.ne.s32.totalorder %s376, %s377
    %p386 = scmp.eq.s32.totalorder %s30, 0
    %p387 = por %p385, %p386
    %p388 = scmp.ne.s32.totalorder %s376, %s377
    %p389 = scmp.eq.s32.totalorder %s31, 1
    %p390 = por %p388, %p389
    %p392 = scmp.ne.s32.totalorder %s377, %s391
    %p393 = scmp.eq.s32.totalorder %s31, 0
    %p394 = por %p392, %p393
    %s396 = sadd.s32 %s395, 1
    %p399 = scmp.eq.s32.totalorder %s25, 1
    %p400 = scmp.ne.s32.totalorder %s395, %s397
    %p401 = scmp.eq.s32.totalorder %s25, 0
    %p402 = por %p400, %p401
    %p403 = scmp.ne.s32.totalorder %s395, %s397
    %p404 = scmp.eq.s32.totalorder %s30, 1
    %p405 = por %p403, %p404
    %p406 = scmp.ne.s32.totalorder %s397, %s398
    %p407 = scmp.eq.s32.totalorder %s30, 0
    %p408 = por %p406, %p407
    %p409 = scmp.ne.s32.totalorder %s397, %s398
    %p410 = scmp.eq.s32.totalorder %s31, 1
    %p411 = por %p409, %p410
    %p413 = scmp.ne.s32.totalorder %s398, %s412
    %p414 = scmp.eq.s32.totalorder %s31, 0
    %p415 = por %p413, %p414
    %s417 = sadd.s32 %s416, 1
    %p420 = scmp.eq.s32.totalorder %s25, 1
    %p421 = scmp.ne.s32.totalorder %s416, %s418
    %p422 = scmp.eq.s32.totalorder %s25, 0
    %p423 = por %p421, %p422
    %p424 = scmp.ne.s32.totalorder %s416, %s418
    %p425 = scmp.eq.s32.totalorder %s30, 1
    %p426 = por %p424, %p425
    %p427 = scmp.ne.s32.totalorder %s418, %s419
    %p428 = scmp.eq.s32.totalorder %s30, 0
    %p429 = por %p427, %p428
    %p430 = scmp.ne.s32.totalorder %s418, %s419
    %p431 = scmp.eq.s32.totalorder %s31, 1
    %p432 = por %p430, %p431
    %p434 = scmp.ne.s32.totalorder %s419, %s433
    %p435 = scmp.eq.s32.totalorder %s31, 0
    %p436 = por %p434, %p435
    %s437 = ssub.s32 %s25, %s32
    %p438 = scmp.eq.s32.totalorder %s437, 0
    %s440 = sadd.s32 %s439, 1
    %s441 = scalar_select %p438, %s439, %s440
    %p444 = pneg %p438
    %p445 = scmp.eq.s32.totalorder %s25, 1
    %p446 = por %p444, %p445
    %p447 = scmp.ne.s32.totalorder %s439, %s442
    %p448 = scmp.eq.s32.totalorder %s25, 0
    %p449 = por %p447, %p448
    %p450 = scmp.ne.s32.totalorder %s439, %s442
    %p451 = scmp.eq.s32.totalorder %s30, 1
    %p452 = por %p450, %p451
    %p453 = scmp.ne.s32.totalorder %s442, %s443
    %p454 = scmp.eq.s32.totalorder %s30, 0
    %p455 = por %p453, %p454
    %p456 = scmp.ne.s32.totalorder %s442, %s443
    %p457 = scmp.eq.s32.totalorder %s31, 1
    %p458 = por %p456, %p457
    %p460 = scmp.ne.s32.totalorder %s443, %s459
    %p461 = scmp.eq.s32.totalorder %s31, 0
    %p462 = por %p460, %p461
    %p463 = scmp.le.s32.totalorder 1, %s25
    %p464 = scmp.lt.s32.totalorder %s25, 3
    %p465 = pnand %p463, %p464
    %p466 = pneg %p465
    // Predicated region
    $region9: #{clip_forward.3} parent=5 // pred_check
      _
    $region10: #{clip_forward.3} parent=5 // pred_check_branch
      %468 = sbr.rel (%p465) target = $region12
    $region11: #{clip_forward.3} parent=5 // pred_region
      %s469 = ssub.s32 %s25, 1
      // Predicated region
      $region13: #{clip_forward.3} parent=11 // pred_check
        %p470 = pneg %p72
      $region14: #{clip_forward.3} parent=11 // pred_check_branch
        %472 = sbr.rel (%p470) target = $region16
      $region15: #{clip_forward.3} parent=11 // pred_region
        _
      $region16: #{clip_forward.3} parent=11 // pred_fallthru
        _
      // Predicated region
      $region17: #{clip_forward.3} parent=11 // pred_check
        %p473 = pneg %p93
      $region18: #{clip_forward.3} parent=11 // pred_check_branch
        %475 = sbr.rel (%p473) target = $region20
      $region19: #{clip_forward.3} parent=11 // pred_region
        _
      $region20: #{clip_forward.3} parent=11 // pred_fallthru
        _
      // Predicated region
      $region21: #{clip_forward.3} parent=11 // pred_check
        %p476 = pneg %p114
      $region22: #{clip_forward.3} parent=11 // pred_check_branch
        %478 = sbr.rel (%p476) target = $region24
      $region23: #{clip_forward.3} parent=11 // pred_region
        _
      $region24: #{clip_forward.3} parent=11 // pred_fallthru
        _
      // Predicated region
      $region25: #{clip_forward.3} parent=11 // pred_check
        %p479 = pneg %p135
      $region26: #{clip_forward.3} parent=11 // pred_check_branch
        %481 = sbr.rel (%p479) target = $region28
      $region27: #{clip_forward.3} parent=11 // pred_region
        _
      $region28: #{clip_forward.3} parent=11 // pred_fallthru
        _
      // Predicated region
      $region29: #{clip_forward.3} parent=11 // pred_check
        %p482 = pneg %p156
      $region30: #{clip_forward.3} parent=11 // pred_check_branch
        %484 = sbr.rel (%p482) target = $region32
      $region31: #{clip_forward.3} parent=11 // pred_region
        _
      $region32: #{clip_forward.3} parent=11 // pred_fallthru
        _
      // Predicated region
      $region33: #{clip_forward.3} parent=11 // pred_check
        %p485 = pneg %p177
      $region34: #{clip_forward.3} parent=11 // pred_check_branch
        %487 = sbr.rel (%p485) target = $region36
      $region35: #{clip_forward.3} parent=11 // pred_region
        _
      $region36: #{clip_forward.3} parent=11 // pred_fallthru
        _
      // Predicated region
      $region37: #{clip_forward.3} parent=11 // pred_check
        %p488 = pneg %p198
      $region38: #{clip_forward.3} parent=11 // pred_check_branch
        %490 = sbr.rel (%p488) target = $region40
      $region39: #{clip_forward.3} parent=11 // pred_region
        _
      $region40: #{clip_forward.3} parent=11 // pred_fallthru
        _
      // Predicated region
      $region41: #{clip_forward.3} parent=11 // pred_check
        %p491 = pneg %p219
      $region42: #{clip_forward.3} parent=11 // pred_check_branch
        %493 = sbr.rel (%p491) target = $region44
      $region43: #{clip_forward.3} parent=11 // pred_region
        _
      $region44: #{clip_forward.3} parent=11 // pred_fallthru
        _
      // Predicated region
      $region45: #{clip_forward.3} parent=11 // pred_check
        %p494 = pneg %p240
      $region46: #{clip_forward.3} parent=11 // pred_check_branch
        %496 = sbr.rel (%p494) target = $region48
      $region47: #{clip_forward.3} parent=11 // pred_region
        _
      $region48: #{clip_forward.3} parent=11 // pred_fallthru
        _
      // Predicated region
      $region49: #{clip_forward.3} parent=11 // pred_check
        %p497 = pneg %p261
      $region50: #{clip_forward.3} parent=11 // pred_check_branch
        %499 = sbr.rel (%p497) target = $region52
      $region51: #{clip_forward.3} parent=11 // pred_region
        _
      $region52: #{clip_forward.3} parent=11 // pred_fallthru
        _
      // Predicated region
      $region53: #{clip_forward.3} parent=11 // pred_check
        %p500 = pneg %p282
      $region54: #{clip_forward.3} parent=11 // pred_check_branch
        %502 = sbr.rel (%p500) target = $region56
      $region55: #{clip_forward.3} parent=11 // pred_region
        _
      $region56: #{clip_forward.3} parent=11 // pred_fallthru
        _
      // Predicated region
      $region57: #{clip_forward.3} parent=11 // pred_check
        %p503 = pneg %p303
      $region58: #{clip_forward.3} parent=11 // pred_check_branch
        %505 = sbr.rel (%p503) target = $region60
      $region59: #{clip_forward.3} parent=11 // pred_region
        _
      $region60: #{clip_forward.3} parent=11 // pred_fallthru
        _
      // Predicated region
      $region61: #{clip_forward.3} parent=11 // pred_check
        %p506 = pneg %p324
      $region62: #{clip_forward.3} parent=11 // pred_check_branch
        %508 = sbr.rel (%p506) target = $region64
      $region63: #{clip_forward.3} parent=11 // pred_region
        _
      $region64: #{clip_forward.3} parent=11 // pred_fallthru
        _
      // Predicated region
      $region65: #{clip_forward.3} parent=11 // pred_check
        %p509 = pneg %p345
      $region66: #{clip_forward.3} parent=11 // pred_check_branch
        %511 = sbr.rel (%p509) target = $region68
      $region67: #{clip_forward.3} parent=11 // pred_region
        _
      $region68: #{clip_forward.3} parent=11 // pred_fallthru
        _
      // Predicated region
      $region69: #{clip_forward.3} parent=11 // pred_check
        %p512 = pneg %p366
      $region70: #{clip_forward.3} parent=11 // pred_check_branch
        %514 = sbr.rel (%p512) target = $region72
      $region71: #{clip_forward.3} parent=11 // pred_region
        _
      $region72: #{clip_forward.3} parent=11 // pred_fallthru
        _
      // Predicated region
      $region73: #{clip_forward.3} parent=11 // pred_check
        %p515 = pneg %p387
      $region74: #{clip_forward.3} parent=11 // pred_check_branch
        %517 = sbr.rel (%p515) target = $region76
      $region75: #{clip_forward.3} parent=11 // pred_region
        _
      $region76: #{clip_forward.3} parent=11 // pred_fallthru
        _
      // Predicated region
      $region77: #{clip_forward.3} parent=11 // pred_check
        %p518 = pneg %p408
      $region78: #{clip_forward.3} parent=11 // pred_check_branch
        %520 = sbr.rel (%p518) target = $region80
      $region79: #{clip_forward.3} parent=11 // pred_region
        _
      $region80: #{clip_forward.3} parent=11 // pred_fallthru
        _
      // Predicated region
      $region81: #{clip_forward.3} parent=11 // pred_check
        %p521 = pneg %p429
      $region82: #{clip_forward.3} parent=11 // pred_check_branch
        %523 = sbr.rel (%p521) target = $region84
      $region83: #{clip_forward.3} parent=11 // pred_region
        _
      $region84: #{clip_forward.3} parent=11 // pred_fallthru
        _
    $region12: #{clip_forward.3} parent=5 // pred_fallthru
      _
    %p524 = scmp.lt.s32.totalorder %s25, 2
    // Predicated region
    $region85: #{clip_forward.3} parent=5 // pred_check
      %p525 = pneg %p524
    $region86: #{clip_forward.3} parent=5 // pred_check_branch
      %527 = sbr.rel (%p525) target = $region88
    $region87: #{clip_forward.3} parent=5 // pred_region
      // Predicated region
      $region89: #{clip_forward.3} parent=87 // pred_check
        %p528 = pneg %p45
      $region90: #{clip_forward.3} parent=87 // pred_check_branch
        %530 = sbr.rel (%p528) target = $region92
      $region91: #{clip_forward.3} parent=87 // pred_region
        %p531 = scmp.lt.s32.totalorder %s25, 1
        %s532 = scalar_select %p531, %s25, 1
        %s533 = smul.addr %s532, 2
        %s534 = smul.addr %s533, 8
        %s535 = scalar_lea.vmem %s0, %s534
      $region92: #{clip_forward.3} parent=87 // pred_fallthru
        _
    $region88: #{clip_forward.3} parent=5 // pred_fallthru
      _
    %p536 = scmp.le.s32.totalorder 1, %s25
    %p537 = scmp.lt.s32.totalorder %s25, 3
    %p538 = pnand %p536, %p537
    %p539 = pneg %p538
    // Predicated region
    $region93: #{clip_forward.3} parent=5 // pred_check
      _
    $region94: #{clip_forward.3} parent=5 // pred_check_branch
      %541 = sbr.rel (%p538) target = $region96
    $region95: #{clip_forward.3} parent=5 // pred_region
      %s542 = ssub.s32 %s25, 1
      %p543 = scmp.lt.s32.totalorder %s30, 1
      %s544 = scalar_select %p543, %s30, 1
      %s545 = smul.addr %s544, 2
      %s546 = smul.addr %s545, 8
      %s547 = scalar_lea.vmem %s0, %s546
      %p548 = pneg %p51
      %p549 = pneg %p48
      %p550 = pneg %p72
      %p551 = pneg %p69
      %p552 = pneg %p93
      %p553 = pneg %p90
      %p554 = pneg %p114
      %p555 = pneg %p111
      %p556 = pneg %p135
      %p557 = pneg %p132
      %p558 = pneg %p156
      %p559 = pneg %p153
      %p560 = pneg %p177
      %p561 = pneg %p174
      %p562 = pneg %p198
      %p563 = pneg %p195
      %p564 = pneg %p219
      %p565 = pneg %p216
      %p566 = pneg %p240
      %p567 = pneg %p237
      %p568 = pneg %p261
      %p569 = pneg %p258
      %p570 = pneg %p282
      %p571 = pneg %p279
      %p572 = pneg %p303
      %p573 = pneg %p300
      %p574 = pneg %p324
      %p575 = pneg %p321
      %p576 = pneg %p345
      %p577 = pneg %p342
      %p578 = pneg %p366
      %p579 = pneg %p363
      %p580 = pneg %p387
      %p581 = pneg %p384
      %p582 = pneg %p408
      %p583 = pneg %p405
      %p584 = pneg %p429
      %p585 = pneg %p426
      %p586 = pneg %p455
      %p587 = pneg %p452
      %p588 = scmp.lt.s32.totalorder %s30, 1
      %s589 = scalar_select %p588, %s30, 1
      %s590 = scalar_lea.vmem %s19, %s589
      %p591 = scmp.lt.s32.totalorder %s30, 1
      %s592 = scalar_select %p591, %s30, 1
      %s593 = smul.addr %s592, 2
      %s594 = smul.addr %s593, 8
      %s595 = scalar_lea.vmem %s0, %s594
      %p596 = scmp.lt.s32.totalorder %s30, 1
      %s597 = scalar_select %p596, %s30, 1
      %s598 = scalar_lea.vmem %s19, %s597
      %v600 = vld [vmem:[%s595] sm:$0xff]
      %v601 = vld [vmem:[%s595 + $0x8] sm:$0xff]
      %v602 = vld [vmem:[%s1] sm:$0xff]
      %v603 = vld [vmem:[%s1 + $0x8] sm:$0xff]
      %v604 = vld [vmem:[%s1 + $0x10] sm:$0xff]
      %v605 = vld [vmem:[%s1 + $0x18] sm:$0xff]
      %v606 = vld [vmem:[%s1 + $0x20] sm:$0xff]
      %v607 = vld [vmem:[%s1 + $0x28] sm:$0xff]
      %v608 = vld [vmem:[%s2] sm:$0x1]
      %v609 = vpack.c.bf16 %v601, %v600
      %v610 = vpack.c.bf16 %v603, %v602
      %v611 = vpack.c.bf16 %v605, %v604
      %v612 = vpack.c.bf16 %v607, %v606
      %v614 = vperm.slane %v608, 0
      %vm616 = vcmask 392192
      %v618 = vsel %vm616, %v609, 0
      %620 = vmatpush.bf16.msra.mxu0 0
      %621 = vmatpush.bf16.msra.mxu0 0
      %622 = vmatpush.bf16.msra.mxu0 0
      %623 = vmatpush.bf16.msra.mxu0 0
      %624 = vmatpush.bf16.msra.mxu0 0
      %625 = vmatpush.bf16.msra.mxu0 %v612
      %626 = vmatpush.bf16.msra.mxu0 %v611
      %627 = vmatpush.bf16.msra.mxu0 %v610
      %628 = vmatmul.bf16.gmra.mxu0 %v618
      %v629 = vpop.f32.mrf.mxu0
      %v630 = vadd.f32 %v614, %v629
      %v631 = vpop.f32.mrf.mxu0
      %v632 = vadd.f32 %v614, %v631
      %633 = vdwg.mxu0
      %v634 = vld [vmem:[%s3] sm:$0x1]
      %vm637 = vcmask 1040384
      %v638 = vrot.slane %v630, 7
      %v639 = vrot.slane %v632, 7
      %v640 = vsel %vm637, %v638, %v639
      %v644 = vsel %vm637, %v634, %v638
      %v645 = vld [vmem:[%s4] sm:$0xff]
      %v646 = vld [vmem:[%s4 + $0x8] sm:$0xff]
      %v647 = vld [vmem:[%s4 + $0x10] sm:$0x1]
      %v648 = vadd.f32 %v644, %v645
      %v649 = vadd.f32 %v640, %v646
      %v650 = vadd.f32 %v639, %v647
      %v651 = vld [vmem:[%s5] sm:$0x1]
      %v652 = vld [vmem:[%s6] sm:$0x1]
      %vm653 = vcmask 261120
      %v654 = vsel %vm653, %v648, 0.0
      %655 = vadd.xlane.f32.xlu0 %v654
      %v656 = vpop.xlane.xlu0 %655
      %v657 = vsel %vm653, %v649, 0.0
      %658 = vadd.xlane.f32.xlu0 %v657
      %v659 = vpop.xlane.xlu0 %658
      %vm660 = vcmask 253952
      %v661 = vsel %vm660, %v650, 0.0
      %662 = vadd.xlane.f32.xlu0 %v661
      %v663 = vpop.xlane.xlu0 %662
      %v664 = vrcp.pop 32.0
      %v665 = vmul.f32 32.0, %v664
      %v666 = vsub.f32 1.0, %v665
      %v667 = vmul.f32 %v664, %v666
      %v668 = vadd.f32 %v664, %v667
      %vm669 = vweird.f32 %v664
      %v670 = vsel %vm669, %v664, %v668
      %v671 = vmul.f32 %v656, %v670
      %v672 = vmul.f32 %v659, %v670
      %v673 = vmul.f32 %v663, %v670
      %v674 = vsub.f32 %v648, %v671
      %v675 = vsub.f32 %v649, %v672
      %v676 = vsub.f32 %v650, %v673
      %v677 = vmul.f32 %v674, %v674
      %v678 = vmul.f32 %v675, %v675
      %v679 = vmul.f32 %v676, %v676
      %v680 = vsel %vm653, %v677, 0.0
      %681 = vadd.xlane.f32.xlu0 %v680
      %v682 = vpop.xlane.xlu0 %681
      %v683 = vsel %vm653, %v678, 0.0
      %684 = vadd.xlane.f32.xlu0 %v683
      %v685 = vpop.xlane.xlu0 %684
      %v686 = vsel %vm660, %v679, 0.0
      %687 = vadd.xlane.f32.xlu0 %v686
      %v688 = vpop.xlane.xlu0 %687
      %v689 = vmul.f32 %v682, %v670
      %v690 = vmul.f32 %v685, %v670
      %v691 = vmul.f32 %v688, %v670
      %v692 = vadd.f32 %v689, 1e-06
      %v693 = vadd.f32 %v690, 1e-06
      %v694 = vadd.f32 %v691, 1e-06
      %v695 = vrsqrt.pop %v692
      %v696 = vmul.f32 %v695, %v692
      %v697 = vmul.f32 %v696, %v695
      %v698 = vmul.f32 0.5, %v697
      %v699 = vsub.f32 1.5, %v698
      %v700 = vmul.f32 %v695, %v699
      %vm701 = vweird.f32 %v692
      %vm702 = vweird.f32 %v695
      %vm703 = vmor %vm701, %vm702
      %v704 = vsel %vm703, %v695, %v700
      %v705 = vrsqrt.pop %v693
      %v706 = vmul.f32 %v705, %v693
      %v707 = vmul.f32 %v706, %v705
      %v708 = vmul.f32 0.5, %v707
      %v709 = vsub.f32 1.5, %v708
      %v710 = vmul.f32 %v705, %v709
      %vm711 = vweird.f32 %v693
      %vm712 = vweird.f32 %v705
      %vm713 = vmor %vm711, %vm712
      %v714 = vsel %vm713, %v705, %v710
      %v715 = vrsqrt.pop %v694
      %v716 = vmul.f32 %v715, %v694
      %v717 = vmul.f32 %v716, %v715
      %v718 = vmul.f32 0.5, %v717
      %v719 = vsub.f32 1.5, %v718
      %v720 = vmul.f32 %v715, %v719
      %vm721 = vweird.f32 %v694
      %vm722 = vweird.f32 %v715
      %vm723 = vmor %vm721, %vm722
      %v724 = vsel %vm723, %v715, %v720
      %v725 = vmul.f32 %v674, %v704
      %v726 = vmul.f32 %v675, %v714
      %v727 = vmul.f32 %v676, %v724
      %v729 = vperm.slane %v651, 0
      %v731 = vmul.f32 %v725, %v729
      %v732 = vmul.f32 %v726, %v729
      %v733 = vmul.f32 %v727, %v729
      %v735 = vperm.slane %v652, 0
      %v737 = vadd.f32 %v731, %v735
      %v738 = vadd.f32 %v732, %v735
      %v739 = vadd.f32 %v733, %v735
      %v740 = vld [vmem:[%s7] sm:$0xff]
      %v741 = vld [vmem:[%s7 + $0x8] sm:$0xff]
      %v742 = vld [vmem:[%s7 + $0x10] sm:$0xff]
      %v743 = vld [vmem:[%s7 + $0x18] sm:$0xff]
      %v744 = vld [vmem:[%s8] sm:$0x1]
      %v745 = vpack.c.bf16 %v738, %v737
      %v746 = vpack.c.bf16 %v739, %v739
      %v747 = vpack.c.bf16 %v741, %v740
      %v748 = vpack.c.bf16 %v743, %v742
      %v750 = vperm.slane %v744, 0
      %v753 = vsel %vm653, %v745, 0
      %v756 = vsel %vm653, %v746, 0
      %758 = vmatpush.bf16.msra.mxu0 0
      %759 = vmatpush.bf16.msra.mxu0 0
      %760 = vmatpush.bf16.msra.mxu0 0
      %761 = vmatpush.bf16.msra.mxu0 0
      %762 = vmatpush.bf16.msra.mxu0 0
      %763 = vmatpush.bf16.msra.mxu0 0
      %764 = vmatpush.bf16.msra.mxu0 %v748
      %765 = vmatpush.bf16.msra.mxu0 %v747
      %766 = vmatmul.bf16.gmra.mxu0 %v753
      %v767 = vpop.f32.mrf.mxu0
      %v768 = vadd.f32 %v750, %v767
      %v769 = vpop.f32.mrf.mxu0
      %v770 = vadd.f32 %v750, %v769
      %771 = vmatmul.bf16.gmra.mxu0 %v756
      %v772 = vpop.f32.mrf.mxu0
      %v773 = vadd.f32 %v750, %v772
      %v774 = vpop.f32.mrf.mxu0
      %775 = vdwg.mxu0
      %s776 = scalar_lea.vmem %s7, 64
      %v777 = vld [vmem:[%s776] sm:$0xff]
      %v778 = vld [vmem:[%s776 + $0x8] sm:$0xff]
      %v779 = vld [vmem:[%s776 + $0x10] sm:$0xff]
      %v780 = vld [vmem:[%s776 + $0x18] sm:$0xff]
      %s781 = scalar_lea.vmem %s8, 2
      %v782 = vld [vmem:[%s781] sm:$0x1]
      %v783 = vpack.c.bf16 %v778, %v777
      %v784 = vpack.c.bf16 %v780, %v779
      %v786 = vperm.slane %v782, 0
      %788 = vmatpush.bf16.msra.mxu0 0
      %789 = vmatpush.bf16.msra.mxu0 0
      %790 = vmatpush.bf16.msra.mxu0 0
      %791 = vmatpush.bf16.msra.mxu0 0
      %792 = vmatpush.bf16.msra.mxu0 0
      %793 = vmatpush.bf16.msra.mxu0 0
      %794 = vmatpush.bf16.msra.mxu0 %v784
      %795 = vmatpush.bf16.msra.mxu0 %v783
      %796 = vmatmul.bf16.gmra.mxu0 %v753
      %v797 = vpop.f32.mrf.mxu0
      %v798 = vadd.f32 %v786, %v797
      %v799 = vpop.f32.mrf.mxu0
      %v800 = vadd.f32 %v786, %v799
      %801 = vmatmul.bf16.gmra.mxu0 %v756
      %v802 = vpop.f32.mrf.mxu0
      %v803 = vadd.f32 %v786, %v802
      %v804 = vpop.f32.mrf.mxu0
      %805 = vdwg.mxu0
      %s806 = scalar_lea.vmem %s7, 128
      %v807 = vld [vmem:[%s806] sm:$0xff]
      %v808 = vld [vmem:[%s806 + $0x8] sm:$0xff]
      %v809 = vld [vmem:[%s806 + $0x10] sm:$0xff]
      %v810 = vld [vmem:[%s806 + $0x18] sm:$0xff]
      %s811 = scalar_lea.vmem %s8, 4
      %v812 = vld [vmem:[%s811] sm:$0x1]
      %v813 = vpack.c.bf16 %v808, %v807
      %v814 = vpack.c.bf16 %v810, %v809
      %v816 = vperm.slane %v812, 0
      %818 = vmatpush.bf16.msra.mxu0 0
      %819 = vmatpush.bf16.msra.mxu0 0
      %820 = vmatpush.bf16.msra.mxu0 0
      %821 = vmatpush.bf16.msra.mxu0 0
      %822 = vmatpush.bf16.msra.mxu0 0
      %823 = vmatpush.bf16.msra.mxu0 0
      %824 = vmatpush.bf16.msra.mxu0 %v814
      %825 = vmatpush.bf16.msra.mxu0 %v813
      %826 = vmatmul.bf16.gmra.mxu0 %v753
      %v827 = vpop.f32.mrf.mxu0
      %v828 = vadd.f32 %v816, %v827
      %v829 = vpop.f32.mrf.mxu0
      %v830 = vadd.f32 %v816, %v829
      %831 = vmatmul.bf16.gmra.mxu0 %v756
      %v832 = vpop.f32.mrf.mxu0
      %v833 = vadd.f32 %v816, %v832
      %v834 = vpop.f32.mrf.mxu0
      %835 = vdwg.mxu0
      %v836 = vpack.c.bf16 %v770, %v768
      %v837 = vpack.c.bf16 %v773, %v773
      %v838 = vpack.c.bf16 %v800, %v798
      %v839 = vpack.c.bf16 %v803, %v803
      %vm840 = vcmask 130048
      %v842 = vsel %vm840, %v836, 0
      %v845 = vsel %vm840, %v837, 0
      %v848 = vsel %vm840, %v838, 0
      %v851 = vsel %vm840, %v839, 0
      %853 = vmatpush.bf16.xpose.msra.mxu0 0
      %854 = vmatpush.bf16.xpose.msra.mxu0 0
      %855 = vmatpush.bf16.xpose.msra.mxu0 0
      %856 = vmatpush.bf16.xpose.msra.mxu0 0
      %857 = vmatpush.bf16.xpose.msra.mxu0 0
      %858 = vmatpush.bf16.xpose.msra.mxu0 0
      %859 = vmatpush.bf16.xpose.msra.mxu0 %v851
      %860 = vmatpush.bf16.xpose.msra.mxu0 %v848
      %861 = vmatmul.bf16.gmra.mxu0 %v842
      %v862 = vpop.f32.mrf.mxu0
      %v863 = vadd.f32 0.0, %v862
      %v864 = vpop.f32.mrf.mxu0
      %v865 = vadd.f32 0.0, %v864
      %866 = vmatmul.bf16.gmra.mxu0 %v845
      %v867 = vpop.f32.mrf.mxu0
      %v868 = vadd.f32 0.0, %v867
      %v869 = vpop.f32.mrf.mxu0
      %870 = vdwg.mxu0
      %v871 = vmul.f32 %v863, 0.25
      %v872 = vmul.f32 %v865, 0.25
      %v873 = vmul.f32 %v868, 0.25
      %vm874 = vcmask 138240
      %v875 = vsel %vm874, %v871, -inf
      %876 = vmax.xlane.f32.xlu0 %v875
      %v877 = vpop.xlane.xlu0 %876
      %v878 = vsel %vm874, %v872, -inf
      %879 = vmax.xlane.f32.xlu0 %v878
      %v880 = vpop.xlane.xlu0 %879
      %vm881 = vcmask 131072
      %v882 = vsel %vm881, %v873, -inf
      %883 = vmax.xlane.f32.xlu0 %v882
      %v884 = vpop.xlane.xlu0 %883
      %v885 = vsub.f32 %v871, %v877
      %v886 = vsub.f32 %v872, %v880
      %v887 = vsub.f32 %v873, %v884
      %v888 = vmul.f32 %v885, 1.442695
      %v889 = vpow.pop %v888
      %v890 = vmul.f32 %v886, 1.442695
      %v891 = vpow.pop %v890
      %v892 = vmul.f32 %v887, 1.442695
      %v893 = vpow.pop %v892
      %v894 = vsel %vm874, %v889, 0.0
      %895 = vadd.xlane.f32.xlu0 %v894
      %v896 = vpop.xlane.xlu0 %895
      %v897 = vsel %vm874, %v891, 0.0
      %898 = vadd.xlane.f32.xlu0 %v897
      %v899 = vpop.xlane.xlu0 %898
      %v900 = vsel %vm881, %v893, 0.0
      %901 = vadd.xlane.f32.xlu0 %v900
      %v902 = vpop.xlane.xlu0 %901
      %v903 = vrcp.pop %v896
      %v904 = vrcp.pop %v899
      %v905 = vrcp.pop %v902
      %v906 = vmul.f32 %v889, %v903
      %v907 = vmul.f32 %v891, %v904
      %v908 = vmul.f32 %v893, %v905
      %v909 = vpack.c.bf16 %v907, %v906
      %v910 = vpack.c.bf16 %v908, %v908
      %v911 = vpack.c.bf16 %v830, %v828
      %v912 = vpack.c.bf16 %v833, %v833
      %v914 = vsel %vm874, %v909, 0
      %v917 = vsel %vm874, %v910, 0
      %v919 = vsel 0, 4294967295, 65535
      %v920 = vsel %vm637, %v919, 0
      %v922 = vand.u32 %v912, %v920
      %924 = vmatpush.bf16.msra.mxu0 0
      %925 = vmatpush.bf16.msra.mxu0 0
      %926 = vmatpush.bf16.msra.mxu0 0
      %927 = vmatpush.bf16.msra.mxu0 0
      %928 = vmatpush.bf16.msra.mxu0 0
      %929 = vmatpush.bf16.msra.mxu0 0
      %930 = vmatpush.bf16.msra.mxu0 %v922
      %931 = vmatpush.bf16.msra.mxu0 %v911
      %932 = vmatmul.bf16.gmra.mxu0 %v914
      %v933 = vpop.f32.mrf.mxu0
      %v934 = vadd.f32 0.0, %v933
      %v935 = vpop.f32.mrf.mxu0
      %v936 = vadd.f32 0.0, %v935
      %937 = vmatmul.bf16.gmra.mxu0 %v917
      %v938 = vpop.f32.mrf.mxu0
      %v939 = vadd.f32 0.0, %v938
      %v940 = vpop.f32.mrf.mxu0
      %941 = vdwg.mxu0
      %v942 = vld [vmem:[%s9] sm:$0xff]
      %v943 = vld [vmem:[%s9 + $0x8] sm:$0xff]
      %v944 = vpack.c.bf16 %v936, %v934
      %v945 = vpack.c.bf16 %v939, %v939
      %v946 = vpack.c.bf16 %v943, %v942
      %s947 = scalar_lea.vmem %s7, 32
      %v948 = vld [vmem:[%s947] sm:$0xff]
      %v949 = vld [vmem:[%s947 + $0x8] sm:$0xff]
      %v950 = vld [vmem:[%s947 + $0x10] sm:$0xff]
      %v951 = vld [vmem:[%s947 + $0x18] sm:$0xff]
      %s952 = scalar_lea.vmem %s8, 1
      %v953 = vld [vmem:[%s952] sm:$0x1]
      %v954 = vpack.c.bf16 %v949, %v948
      %v955 = vpack.c.bf16 %v951, %v950
      %v957 = vperm.slane %v953, 0
      %959 = vmatpush.bf16.msra.mxu0 0
      %960 = vmatpush.bf16.msra.mxu0 0
      %961 = vmatpush.bf16.msra.mxu0 0
      %962 = vmatpush.bf16.msra.mxu0 0
      %963 = vmatpush.bf16.msra.mxu0 0
      %964 = vmatpush.bf16.msra.mxu0 0
      %965 = vmatpush.bf16.msra.mxu0 %v955
      %966 = vmatpush.bf16.msra.mxu0 %v954
      %967 = vmatmul.bf16.gmra.mxu0 %v753
      %v968 = vpop.f32.mrf.mxu0
      %v969 = vadd.f32 %v957, %v968
      %v970 = vpop.f32.mrf.mxu0
      %v971 = vadd.f32 %v957, %v970
      %972 = vmatmul.bf16.gmra.mxu0 %v756
      %v973 = vpop.f32.mrf.mxu0
      %v974 = vadd.f32 %v957, %v973
      %v975 = vpop.f32.mrf.mxu0
      %976 = vdwg.mxu0
      %s977 = scalar_lea.vmem %s7, 96
      %v978 = vld [vmem:[%s977] sm:$0xff]
      %v979 = vld [vmem:[%s977 + $0x8] sm:$0xff]
      %v980 = vld [vmem:[%s977 + $0x10] sm:$0xff]
      %v981 = vld [vmem:[%s977 + $0x18] sm:$0xff]
      %s982 = scalar_lea.vmem %s8, 3
      %v983 = vld [vmem:[%s982] sm:$0x1]
      %v984 = vpack.c.bf16 %v979, %v978
      %v985 = vpack.c.bf16 %v981, %v980
      %v987 = vperm.slane %v983, 0
      %989 = vmatpush.bf16.msra.mxu0 0
      %990 = vmatpush.bf16.msra.mxu0 0
      %991 = vmatpush.bf16.msra.mxu0 0
      %992 = vmatpush.bf16.msra.mxu0 0
      %993 = vmatpush.bf16.msra.mxu0 0
      %994 = vmatpush.bf16.msra.mxu0 0
      %995 = vmatpush.bf16.msra.mxu0 %v985
      %996 = vmatpush.bf16.msra.mxu0 %v984
      %997 = vmatmul.bf16.gmra.mxu0 %v753
      %v998 = vpop.f32.mrf.mxu0
      %v999 = vadd.f32 %v987, %v998
      %v1000 = vpop.f32.mrf.mxu0
      %v1001 = vadd.f32 %v987, %v1000
      %1002 = vmatmul.bf16.gmra.mxu0 %v756
      %v1003 = vpop.f32.mrf.mxu0
      %v1004 = vadd.f32 %v987, %v1003
      %v1005 = vpop.f32.mrf.mxu0
      %1006 = vdwg.mxu0
      %s1007 = scalar_lea.vmem %s7, 160
      %v1008 = vld [vmem:[%s1007] sm:$0xff]
      %v1009 = vld [vmem:[%s1007 + $0x8] sm:$0xff]
      %v1010 = vld [vmem:[%s1007 + $0x10] sm:$0xff]
      %v1011 = vld [vmem:[%s1007 + $0x18] sm:$0xff]
      %s1012 = scalar_lea.vmem %s8, 5
      %v1013 = vld [vmem:[%s1012] sm:$0x1]
      %v1014 = vpack.c.bf16 %v1009, %v1008
      %v1015 = vpack.c.bf16 %v1011, %v1010
      %v1017 = vperm.slane %v1013, 0
      %1019 = vmatpush.bf16.msra.mxu0 0
      %1020 = vmatpush.bf16.msra.mxu0 0
      %1021 = vmatpush.bf16.msra.mxu0 0
      %1022 = vmatpush.bf16.msra.mxu0 0
      %1023 = vmatpush.bf16.msra.mxu0 0
      %1024 = vmatpush.bf16.msra.mxu0 0
      %1025 = vmatpush.bf16.msra.mxu0 %v1015
      %1026 = vmatpush.bf16.msra.mxu0 %v1014
      %1027 = vmatmul.bf16.gmra.mxu0 %v753
      %v1028 = vpop.f32.mrf.mxu0
      %v1029 = vadd.f32 %v1017, %v1028
      %v1030 = vpop.f32.mrf.mxu0
      %v1031 = vadd.f32 %v1017, %v1030
      %1032 = vmatmul.bf16.gmra.mxu0 %v756
      %v1033 = vpop.f32.mrf.mxu0
      %v1034 = vadd.f32 %v1017, %v1033
      %v1035 = vpop.f32.mrf.mxu0
      %1036 = vdwg.mxu0
      %v1037 = vpack.c.bf16 %v971, %v969
      %v1038 = vpack.c.bf16 %v974, %v974
      %v1039 = vpack.c.bf16 %v1001, %v999
      %v1040 = vpack.c.bf16 %v1004, %v1004
      %v1042 = vsel %vm840, %v1037, 0
      %v1045 = vsel %vm840, %v1038, 0
      %v1048 = vsel %vm840, %v1039, 0
      %v1051 = vsel %vm840, %v1040, 0
      %1053 = vmatpush.bf16.xpose.msra.mxu0 0
      %1054 = vmatpush.bf16.xpose.msra.mxu0 0
      %1055 = vmatpush.bf16.xpose.msra.mxu0 0
      %1056 = vmatpush.bf16.xpose.msra.mxu0 0
      %1057 = vmatpush.bf16.xpose.msra.mxu0 0
      %1058 = vmatpush.bf16.xpose.msra.mxu0 0
      %1059 = vmatpush.bf16.xpose.msra.mxu0 %v1051
      %1060 = vmatpush.bf16.xpose.msra.mxu0 %v1048
      %1061 = vmatmul.bf16.gmra.mxu0 %v1042
      %v1062 = vpop.f32.mrf.mxu0
      %v1063 = vadd.f32 0.0, %v1062
      %v1064 = vpop.f32.mrf.mxu0
      %v1065 = vadd.f32 0.0, %v1064
      %1066 = vmatmul.bf16.gmra.mxu0 %v1045
      %v1067 = vpop.f32.mrf.mxu0
      %v1068 = vadd.f32 0.0, %v1067
      %v1069 = vpop.f32.mrf.mxu0
      %1070 = vdwg.mxu0
      %v1071 = vmul.f32 %v1063, 0.25
      %v1072 = vmul.f32 %v1065, 0.25
      %v1073 = vmul.f32 %v1068, 0.25
      %v1074 = vsel %vm874, %v1071, -inf
      %1075 = vmax.xlane.f32.xlu0 %v1074
      %v1076 = vpop.xlane.xlu0 %1075
      %v1077 = vsel %vm874, %v1072, -inf
      %1078 = vmax.xlane.f32.xlu0 %v1077
      %v1079 = vpop.xlane.xlu0 %1078
      %v1080 = vsel %vm881, %v1073, -inf
      %1081 = vmax.xlane.f32.xlu0 %v1080
      %v1082 = vpop.xlane.xlu0 %1081
      %v1083 = vsub.f32 %v1071, %v1076
      %v1084 = vsub.f32 %v1072, %v1079
      %v1085 = vsub.f32 %v1073, %v1082
      %v1086 = vmul.f32 %v1083, 1.442695
      %v1087 = vpow.pop %v1086
      %v1088 = vmul.f32 %v1084, 1.442695
      %v1089 = vpow.pop %v1088
      %v1090 = vmul.f32 %v1085, 1.442695
      %v1091 = vpow.pop %v1090
      %v1092 = vsel %vm874, %v1087, 0.0
      %1093 = vadd.xlane.f32.xlu0 %v1092
      %v1094 = vpop.xlane.xlu0 %1093
      %v1095 = vsel %vm874, %v1089, 0.0
      %1096 = vadd.xlane.f32.xlu0 %v1095
      %v1097 = vpop.xlane.xlu0 %1096
      %v1098 = vsel %vm881, %v1091, 0.0
      %1099 = vadd.xlane.f32.xlu0 %v1098
      %v1100 = vpop.xlane.xlu0 %1099
      %v1101 = vrcp.pop %v1094
      %v1102 = vrcp.pop %v1097
      %v1103 = vrcp.pop %v1100
      %v1104 = vmul.f32 %v1087, %v1101
      %v1105 = vmul.f32 %v1089, %v1102
      %v1106 = vmul.f32 %v1091, %v1103
      %v1107 = vpack.c.bf16 %v1105, %v1104
      %v1108 = vpack.c.bf16 %v1106, %v1106
      %v1109 = vpack.c.bf16 %v1031, %v1029
      %v1110 = vpack.c.bf16 %v1034, %v1034
      %v1112 = vsel %vm874, %v1107, 0
      %v1115 = vsel %vm874, %v1108, 0
      %v1118 = vand.u32 %v1110, %v920
      %1120 = vmatpush.bf16.msra.mxu0 0
      %1121 = vmatpush.bf16.msra.mxu0 0
      %1122 = vmatpush.bf16.msra.mxu0 0
      %1123 = vmatpush.bf16.msra.mxu0 0
      %1124 = vmatpush.bf16.msra.mxu0 0
      %1125 = vmatpush.bf16.msra.mxu0 0
      %1126 = vmatpush.bf16.msra.mxu0 %v1118
      %1127 = vmatpush.bf16.msra.mxu0 %v1109
      %1128 = vmatmul.bf16.gmra.mxu0 %v1112
      %v1129 = vpop.f32.mrf.mxu0
      %v1130 = vadd.f32 0.0, %v1129
      %v1131 = vpop.f32.mrf.mxu0
      %v1132 = vadd.f32 0.0, %v1131
      %1133 = vmatmul.bf16.gmra.mxu0 %v1115
      %v1134 = vpop.f32.mrf.mxu0
      %v1135 = vadd.f32 0.0, %v1134
      %v1136 = vpop.f32.mrf.mxu0
      %1137 = vdwg.mxu0
      %s1138 = scalar_lea.vmem %s9, 16
      %v1139 = vld [vmem:[%s1138] sm:$0xff]
      %v1140 = vld [vmem:[%s1138 + $0x8] sm:$0xff]
      %v1141 = vpack.c.bf16 %v1132, %v1130
      %v1142 = vpack.c.bf16 %v1135, %v1135
      %v1143 = vpack.c.bf16 %v1140, %v1139
      %v1145 = vsel %vm840, %v1141, 0
      %v1148 = vsel %vm840, %v1142, 0
      %1150 = vmatpush.bf16.msra.mxu0 0
      %1151 = vmatpush.bf16.msra.mxu0 0
      %1152 = vmatpush.bf16.msra.mxu0 0
      %1153 = vmatpush.bf16.msra.mxu0 0
      %1154 = vmatpush.bf16.msra.mxu0 0
      %1155 = vmatpush.bf16.msra.mxu0 0
      %1156 = vmatpush.bf16.msra.mxu0 0
      %1157 = vmatpush.bf16.msra.mxu0 %v1143
      %1158 = vmatmul.bf16.gmra.mxu0 %v1145
      %v1159 = vpop.f32.mrf.mxu0
      %v1160 = vadd.f32 0.0, %v1159
      %v1161 = vpop.f32.mrf.mxu0
      %v1162 = vadd.f32 0.0, %v1161
      %1163 = vmatmul.bf16.gmra.mxu0 %v1148
      %v1164 = vpop.f32.mrf.mxu0
      %v1165 = vadd.f32 0.0, %v1164
      %v1166 = vpop.f32.mrf.mxu0
      %1167 = vdwg.mxu0
      %v1169 = vsel %vm840, %v944, 0
      %v1172 = vsel %vm840, %v945, 0
      %1174 = vmatpush.bf16.msra.mxu0 0
      %1175 = vmatpush.bf16.msra.mxu0 0
      %1176 = vmatpush.bf16.msra.mxu0 0
      %1177 = vmatpush.bf16.msra.mxu0 0
      %1178 = vmatpush.bf16.msra.mxu0 0
      %1179 = vmatpush.bf16.msra.mxu0 0
      %1180 = vmatpush.bf16.msra.mxu0 0
      %1181 = vmatpush.bf16.msra.mxu0 %v946
      %1182 = vmatmul.bf16.gmra.mxu0 %v1169
      %v1183 = vpop.f32.mrf.mxu0
      %v1184 = vadd.f32 %v1160, %v1183
      %v1185 = vpop.f32.mrf.mxu0
      %v1186 = vadd.f32 %v1162, %v1185
      %1187 = vmatmul.bf16.gmra.mxu0 %v1172
      %v1188 = vpop.f32.mrf.mxu0
      %v1189 = vadd.f32 %v1165, %v1188
      %v1190 = vpop.f32.mrf.mxu0
      %1191 = vdwg.mxu0
      %v1192 = vadd.f32 %v648, %v1184
      %v1193 = vadd.f32 %v649, %v1186
      %v1194 = vadd.f32 %v650, %v1189
      %v1195 = vld [vmem:[%s10] sm:$0x1]
      %v1197 = vperm.slane %v1195, 0
      %v1199 = vadd.f32 %v1192, %v1197
      %v1200 = vadd.f32 %v1193, %v1197
      %v1201 = vadd.f32 %v1194, %v1197
      %v1202 = vld [vmem:[%s11] sm:$0x1]
      %v1203 = vld [vmem:[%s12] sm:$0x1]
      %v1204 = vsel %vm653, %v1199, 0.0
      %1205 = vadd.xlane.f32.xlu0 %v1204
      %v1206 = vpop.xlane.xlu0 %1205
      %v1207 = vsel %vm653, %v1200, 0.0
      %1208 = vadd.xlane.f32.xlu0 %v1207
      %v1209 = vpop.xlane.xlu0 %1208
      %v1210 = vsel %vm660, %v1201, 0.0
      %1211 = vadd.xlane.f32.xlu0 %v1210
      %v1212 = vpop.xlane.xlu0 %1211
      %v1213 = vmul.f32 %v1206, %v670
      %v1214 = vmul.f32 %v1209, %v670
      %v1215 = vmul.f32 %v1212, %v670
      %v1216 = vsub.f32 %v1199, %v1213
      %v1217 = vsub.f32 %v1200, %v1214
      %v1218 = vsub.f32 %v1201, %v1215
      %v1219 = vmul.f32 %v1216, %v1216
      %v1220 = vmul.f32 %v1217, %v1217
      %v1221 = vmul.f32 %v1218, %v1218
      %v1222 = vsel %vm653, %v1219, 0.0
      %1223 = vadd.xlane.f32.xlu0 %v1222
      %v1224 = vpop.xlane.xlu0 %1223
      %v1225 = vsel %vm653, %v1220, 0.0
      %1226 = vadd.xlane.f32.xlu0 %v1225
      %v1227 = vpop.xlane.xlu0 %1226
      %v1228 = vsel %vm660, %v1221, 0.0
      %1229 = vadd.xlane.f32.xlu0 %v1228
      %v1230 = vpop.xlane.xlu0 %1229
      %v1231 = vmul.f32 %v1224, %v670
      %v1232 = vmul.f32 %v1227, %v670
      %v1233 = vmul.f32 %v1230, %v670
      %v1234 = vadd.f32 %v1231, 1e-06
      %v1235 = vadd.f32 %v1232, 1e-06
      %v1236 = vadd.f32 %v1233, 1e-06
      %v1237 = vrsqrt.pop %v1234
      %v1238 = vmul.f32 %v1237, %v1234
      %v1239 = vmul.f32 %v1238, %v1237
      %v1240 = vmul.f32 0.5, %v1239
      %v1241 = vsub.f32 1.5, %v1240
      %v1242 = vmul.f32 %v1237, %v1241
      %vm1243 = vweird.f32 %v1234
      %vm1244 = vweird.f32 %v1237
      %vm1245 = vmor %vm1243, %vm1244
      %v1246 = vsel %vm1245, %v1237, %v1242
      %v1247 = vrsqrt.pop %v1235
      %v1248 = vmul.f32 %v1247, %v1235
      %v1249 = vmul.f32 %v1248, %v1247
      %v1250 = vmul.f32 0.5, %v1249
      %v1251 = vsub.f32 1.5, %v1250
      %v1252 = vmul.f32 %v1247, %v1251
      %vm1253 = vweird.f32 %v1235
      %vm1254 = vweird.f32 %v1247
      %vm1255 = vmor %vm1253, %vm1254
      %v1256 = vsel %vm1255, %v1247, %v1252
      %v1257 = vrsqrt.pop %v1236
      %v1258 = vmul.f32 %v1257, %v1236
      %v1259 = vmul.f32 %v1258, %v1257
      %v1260 = vmul.f32 0.5, %v1259
      %v1261 = vsub.f32 1.5, %v1260
      %v1262 = vmul.f32 %v1257, %v1261
      %vm1263 = vweird.f32 %v1236
      %vm1264 = vweird.f32 %v1257
      %vm1265 = vmor %vm1263, %vm1264
      %v1266 = vsel %vm1265, %v1257, %v1262
      %v1267 = vmul.f32 %v1216, %v1246
      %v1268 = vmul.f32 %v1217, %v1256
      %v1269 = vmul.f32 %v1218, %v1266
      %v1271 = vperm.slane %v1202, 0
      %v1273 = vmul.f32 %v1267, %v1271
      %v1274 = vmul.f32 %v1268, %v1271
      %v1275 = vmul.f32 %v1269, %v1271
      %v1277 = vperm.slane %v1203, 0
      %v1279 = vadd.f32 %v1273, %v1277
      %v1280 = vadd.f32 %v1274, %v1277
      %v1281 = vadd.f32 %v1275, %v1277
      %v1282 = vld [vmem:[%s13] sm:$0xff]
      %v1283 = vld [vmem:[%s13 + $0x8] sm:$0xff]
      %v1284 = vld [vmem:[%s13 + $0x10] sm:$0xff]
      %v1285 = vld [vmem:[%s13 + $0x18] sm:$0xff]
      %v1286 = vld [vmem:[%s14] sm:$0x1]
      %v1287 = vpack.c.bf16 %v1280, %v1279
      %v1288 = vpack.c.bf16 %v1281, %v1281
      %v1289 = vpack.c.bf16 %v1283, %v1282
      %v1290 = vpack.c.bf16 %v1285, %v1284
      %v1292 = vperm.slane %v1286, 0
      %v1295 = vsel %vm653, %v1287, 0
      %v1298 = vsel %vm653, %v1288, 0
      %1300 = vmatpush.bf16.msra.mxu0 0
      %1301 = vmatpush.bf16.msra.mxu0 0
      %1302 = vmatpush.bf16.msra.mxu0 0
      %1303 = vmatpush.bf16.msra.mxu0 0
      %1304 = vmatpush.bf16.msra.mxu0 0
      %1305 = vmatpush.bf16.msra.mxu0 0
      %1306 = vmatpush.bf16.msra.mxu0 %v1290
      %1307 = vmatpush.bf16.msra.mxu0 %v1289
      %1308 = vmatmul.bf16.gmra.mxu0 %v1295
      %v1309 = vpop.f32.mrf.mxu0
      %v1310 = vadd.f32 %v1292, %v1309
      %v1311 = vpop.f32.mrf.mxu0
      %v1312 = vadd.f32 %v1292, %v1311
      %1313 = vmatmul.bf16.gmra.mxu0 %v1298
      %v1314 = vpop.f32.mrf.mxu0
      %v1315 = vadd.f32 %v1292, %v1314
      %v1316 = vpop.f32.mrf.mxu0
      %1317 = vdwg.mxu0
      %v1318 = vmul.f32 %v1310, %v1310
      %v1319 = vmul.f32 %v1312, %v1312
      %v1320 = vmul.f32 %v1315, %v1315
      %v1321 = vmul.f32 %v1310, %v1318
      %v1322 = vmul.f32 %v1312, %v1319
      %v1323 = vmul.f32 %v1315, %v1320
      %v1324 = vmul.f32 %v1321, 0.044715
      %v1325 = vmul.f32 %v1322, 0.044715
      %v1326 = vmul.f32 %v1323, 0.044715
      %v1327 = vadd.f32 %v1310, %v1324
      %v1328 = vadd.f32 %v1312, %v1325
      %v1329 = vadd.f32 %v1315, %v1326
      %v1330 = vmul.f32 %v1327, 0.7978846
      %v1331 = vmul.f32 %v1328, 0.7978846
      %v1332 = vmul.f32 %v1329, 0.7978846
      %v1333 = vtanh.pop %v1330
      %v1334 = vtanh.pop %v1331
      %v1335 = vtanh.pop %v1332
      %v1336 = vadd.f32 %v1333, 1.0
      %v1337 = vadd.f32 %v1334, 1.0
      %v1338 = vadd.f32 %v1335, 1.0
      %v1339 = vmul.f32 %v1336, 0.5
      %v1340 = vmul.f32 %v1337, 0.5
      %v1341 = vmul.f32 %v1338, 0.5
      %v1342 = vmul.f32 %v1310, %v1339
      %v1343 = vmul.f32 %v1312, %v1340
      %v1344 = vmul.f32 %v1315, %v1341
      %v1345 = vld [vmem:[%s15] sm:$0xff]
      %v1346 = vld [vmem:[%s15 + $0x8] sm:$0xff]
      %v1347 = vld [vmem:[%s15 + $0x10] sm:$0xff]
      %v1348 = vld [vmem:[%s15 + $0x18] sm:$0xff]
      %v1349 = vld [vmem:[%s15 + $0x20] sm:$0xff]
      %v1350 = vld [vmem:[%s15 + $0x28] sm:$0xff]
      %v1351 = vld [vmem:[%s15 + $0x30] sm:$0xff]
      %v1352 = vld [vmem:[%s15 + $0x38] sm:$0xff]
      %v1353 = vld [vmem:[%s15 + $0x40] sm:$0xff]
      %v1354 = vld [vmem:[%s15 + $0x48] sm:$0xff]
      %v1355 = vld [vmem:[%s15 + $0x50] sm:$0xff]
      %v1356 = vld [vmem:[%s15 + $0x58] sm:$0xff]
      %v1357 = vld [vmem:[%s15 + $0x60] sm:$0xff]
      %v1358 = vld [vmem:[%s15 + $0x68] sm:$0xff]
      %v1359 = vld [vmem:[%s15 + $0x70] sm:$0xff]
      %v1360 = vld [vmem:[%s15 + $0x78] sm:$0xff]
      %v1361 = vld [vmem:[%s16] sm:$0x1]
      %v1362 = vpack.c.bf16 %v1343, %v1342
      %v1363 = vpack.c.bf16 %v1344, %v1344
      %v1364 = vpack.c.bf16 %v1346, %v1345
      %v1365 = vpack.c.bf16 %v1348, %v1347
      %v1366 = vpack.c.bf16 %v1350, %v1349
      %v1367 = vpack.c.bf16 %v1352, %v1351
      %v1368 = vpack.c.bf16 %v1354, %v1353
      %v1369 = vpack.c.bf16 %v1356, %v1355
      %v1370 = vpack.c.bf16 %v1358, %v1357
      %v1371 = vpack.c.bf16 %v1360, %v1359
      %v1373 = vperm.slane %v1361, 0
      %1375 = vmatpush.bf16.msra.mxu0 %v1371
      %1376 = vmatpush.bf16.msra.mxu0 %v1370
      %1377 = vmatpush.bf16.msra.mxu0 %v1369
      %1378 = vmatpush.bf16.msra.mxu0 %v1368
      %1379 = vmatpush.bf16.msra.mxu0 %v1367
      %1380 = vmatpush.bf16.msra.mxu0 %v1366
      %1381 = vmatpush.bf16.msra.mxu0 %v1365
      %1382 = vmatpush.bf16.msra.mxu0 %v1364
      %1383 = vmatmul.bf16.gmra.mxu0 %v1362
      %v1384 = vpop.f32.mrf.mxu0
      %v1385 = vadd.f32 %v1373, %v1384
      %v1386 = vpop.f32.mrf.mxu0
      %v1387 = vadd.f32 %v1373, %v1386
      %1388 = vmatmul.bf16.gmra.mxu0 %v1363
      %v1389 = vpop.f32.mrf.mxu0
      %v1390 = vadd.f32 %v1373, %v1389
      %v1391 = vpop.f32.mrf.mxu0
      %1392 = vdwg.mxu0
      %v1393 = vadd.f32 %v1199, %v1385
      %v1394 = vadd.f32 %v1200, %v1387
      %v1395 = vadd.f32 %v1201, %v1390
      %s1396 = scalar_lea.vmem %s5, 1
      %v1397 = vld [vmem:[%s1396] sm:$0x1]
      %s1398 = scalar_lea.vmem %s6, 1
      %v1399 = vld [vmem:[%s1398] sm:$0x1]
      %v1400 = vsel %vm653, %v1393, 0.0
      %1401 = vadd.xlane.f32.xlu0 %v1400
      %v1402 = vpop.xlane.xlu0 %1401
      %v1403 = vsel %vm653, %v1394, 0.0
      %1404 = vadd.xlane.f32.xlu0 %v1403
      %v1405 = vpop.xlane.xlu0 %1404
      %v1406 = vsel %vm660, %v1395, 0.0
      %1407 = vadd.xlane.f32.xlu0 %v1406
      %v1408 = vpop.xlane.xlu0 %1407
      %v1409 = vmul.f32 %v1402, %v670
      %v1410 = vmul.f32 %v1405, %v670
      %v1411 = vmul.f32 %v1408, %v670
      %v1412 = vsub.f32 %v1393, %v1409
      %v1413 = vsub.f32 %v1394, %v1410
      %v1414 = vsub.f32 %v1395, %v1411
      %v1415 = vmul.f32 %v1412, %v1412
      %v1416 = vmul.f32 %v1413, %v1413
      %v1417 = vmul.f32 %v1414, %v1414
      %v1418 = vsel %vm653, %v1415, 0.0
      %1419 = vadd.xlane.f32.xlu0 %v1418
      %v1420 = vpop.xlane.xlu0 %1419
      %v1421 = vsel %vm653, %v1416, 0.0
      %1422 = vadd.xlane.f32.xlu0 %v1421
      %v1423 = vpop.xlane.xlu0 %1422
      %v1424 = vsel %vm660, %v1417, 0.0
      %1425 = vadd.xlane.f32.xlu0 %v1424
      %v1426 = vpop.xlane.xlu0 %1425
      %v1427 = vmul.f32 %v1420, %v670
      %v1428 = vmul.f32 %v1423, %v670
      %v1429 = vmul.f32 %v1426, %v670
      %v1430 = vadd.f32 %v1427, 1e-06
      %v1431 = vadd.f32 %v1428, 1e-06
      %v1432 = vadd.f32 %v1429, 1e-06
      %v1433 = vrsqrt.pop %v1430
      %v1434 = vmul.f32 %v1433, %v1430
      %v1435 = vmul.f32 %v1434, %v1433
      %v1436 = vmul.f32 0.5, %v1435
      %v1437 = vsub.f32 1.5, %v1436
      %v1438 = vmul.f32 %v1433, %v1437
      %vm1439 = vweird.f32 %v1430
      %vm1440 = vweird.f32 %v1433
      %vm1441 = vmor %vm1439, %vm1440
      %v1442 = vsel %vm1441, %v1433, %v1438
      %v1443 = vrsqrt.pop %v1431
      %v1444 = vmul.f32 %v1443, %v1431
      %v1445 = vmul.f32 %v1444, %v1443
      %v1446 = vmul.f32 0.5, %v1445
      %v1447 = vsub.f32 1.5, %v1446
      %v1448 = vmul.f32 %v1443, %v1447
      %vm1449 = vweird.f32 %v1431
      %vm1450 = vweird.f32 %v1443
      %vm1451 = vmor %vm1449, %vm1450
      %v1452 = vsel %vm1451, %v1443, %v1448
      %v1453 = vrsqrt.pop %v1432
      %v1454 = vmul.f32 %v1453, %v1432
      %v1455 = vmul.f32 %v1454, %v1453
      %v1456 = vmul.f32 0.5, %v1455
      %v1457 = vsub.f32 1.5, %v1456
      %v1458 = vmul.f32 %v1453, %v1457
      %vm1459 = vweird.f32 %v1432
      %vm1460 = vweird.f32 %v1453
      %vm1461 = vmor %vm1459, %vm1460
      %v1462 = vsel %vm1461, %v1453, %v1458
      %v1463 = vmul.f32 %v1412, %v1442
      %v1464 = vmul.f32 %v1413, %v1452
      %v1465 = vmul.f32 %v1414, %v1462
      %v1467 = vperm.slane %v1397, 0
      %v1469 = vmul.f32 %v1463, %v1467
      %v1470 = vmul.f32 %v1464, %v1467
      %v1471 = vmul.f32 %v1465, %v1467
      %v1473 = vperm.slane %v1399, 0
      %v1475 = vadd.f32 %v1469, %v1473
      %v1476 = vadd.f32 %v1470, %v1473
      %v1477 = vadd.f32 %v1471, %v1473
      %s1478 = scalar_lea.vmem %s7, 192
      %v1479 = vld [vmem:[%s1478] sm:$0xff]
      %v1480 = vld [vmem:[%s1478 + $0x8] sm:$0xff]
      %v1481 = vld [vmem:[%s1478 + $0x10] sm:$0xff]
      %v1482 = vld [vmem:[%s1478 + $0x18] sm:$0xff]
      %s1483 = scalar_lea.vmem %s8, 6
      %v1484 = vld [vmem:[%s1483] sm:$0x1]
      %v1485 = vpack.c.bf16 %v1476, %v1475
      %v1486 = vpack.c.bf16 %v1477, %v1477
      %v1487 = vpack.c.bf16 %v1480, %v1479
      %v1488 = vpack.c.bf16 %v1482, %v1481
      %v1490 = vperm.slane %v1484, 0
      %v1493 = vsel %vm653, %v1485, 0
      %v1496 = vsel %vm653, %v1486, 0
      %1498 = vmatpush.bf16.msra.mxu0 0
      %1499 = vmatpush.bf16.msra.mxu0 0
      %1500 = vmatpush.bf16.msra.mxu0 0
      %1501 = vmatpush.bf16.msra.mxu0 0
      %1502 = vmatpush.bf16.msra.mxu0 0
      %1503 = vmatpush.bf16.msra.mxu0 0
      %1504 = vmatpush.bf16.msra.mxu0 %v1488
      %1505 = vmatpush.bf16.msra.mxu0 %v1487
      %1506 = vmatmul.bf16.gmra.mxu0 %v1493
      %v1507 = vpop.f32.mrf.mxu0
      %v1508 = vadd.f32 %v1490, %v1507
      %v1509 = vpop.f32.mrf.mxu0
      %v1510 = vadd.f32 %v1490, %v1509
      %1511 = vmatmul.bf16.gmra.mxu0 %v1496
      %v1512 = vpop.f32.mrf.mxu0
      %v1513 = vadd.f32 %v1490, %v1512
      %v1514 = vpop.f32.mrf.mxu0
      %1515 = vdwg.mxu0
      %s1516 = scalar_lea.vmem %s7, 256
      %v1517 = vld [vmem:[%s1516] sm:$0xff]
      %v1518 = vld [vmem:[%s1516 + $0x8] sm:$0xff]
      %v1519 = vld [vmem:[%s1516 + $0x10] sm:$0xff]
      %v1520 = vld [vmem:[%s1516 + $0x18] sm:$0xff]
      %s1521 = scalar_lea.vmem %s8, 8
      %v1522 = vld [vmem:[%s1521] sm:$0x1]
      %v1523 = vpack.c.bf16 %v1518, %v1517
      %v1524 = vpack.c.bf16 %v1520, %v1519
      %v1526 = vperm.slane %v1522, 0
      %1528 = vmatpush.bf16.msra.mxu0 0
      %1529 = vmatpush.bf16.msra.mxu0 0
      %1530 = vmatpush.bf16.msra.mxu0 0
      %1531 = vmatpush.bf16.msra.mxu0 0
      %1532 = vmatpush.bf16.msra.mxu0 0
      %1533 = vmatpush.bf16.msra.mxu0 0
      %1534 = vmatpush.bf16.msra.mxu0 %v1524
      %1535 = vmatpush.bf16.msra.mxu0 %v1523
      %1536 = vmatmul.bf16.gmra.mxu0 %v1493
      %v1537 = vpop.f32.mrf.mxu0
      %v1538 = vadd.f32 %v1526, %v1537
      %v1539 = vpop.f32.mrf.mxu0
      %v1540 = vadd.f32 %v1526, %v1539
      %1541 = vmatmul.bf16.gmra.mxu0 %v1496
      %v1542 = vpop.f32.mrf.mxu0
      %v1543 = vadd.f32 %v1526, %v1542
      %v1544 = vpop.f32.mrf.mxu0
      %1545 = vdwg.mxu0
      %s1546 = scalar_lea.vmem %s7, 320
      %v1547 = vld [vmem:[%s1546] sm:$0xff]
      %v1548 = vld [vmem:[%s1546 + $0x8] sm:$0xff]
      %v1549 = vld [vmem:[%s1546 + $0x10] sm:$0xff]
      %v1550 = vld [vmem:[%s1546 + $0x18] sm:$0xff]
      %s1551 = scalar_lea.vmem %s8, 10
      %v1552 = vld [vmem:[%s1551] sm:$0x1]
      %v1553 = vpack.c.bf16 %v1548, %v1547
      %v1554 = vpack.c.bf16 %v1550, %v1549
      %v1556 = vperm.slane %v1552, 0
      %1558 = vmatpush.bf16.msra.mxu0 0
      %1559 = vmatpush.bf16.msra.mxu0 0
      %1560 = vmatpush.bf16.msra.mxu0 0
      %1561 = vmatpush.bf16.msra.mxu0 0
      %1562 = vmatpush.bf16.msra.mxu0 0
      %1563 = vmatpush.bf16.msra.mxu0 0
      %1564 = vmatpush.bf16.msra.mxu0 %v1554
      %1565 = vmatpush.bf16.msra.mxu0 %v1553
      %1566 = vmatmul.bf16.gmra.mxu0 %v1493
      %v1567 = vpop.f32.mrf.mxu0
      %v1568 = vadd.f32 %v1556, %v1567
      %v1569 = vpop.f32.mrf.mxu0
      %v1570 = vadd.f32 %v1556, %v1569
      %1571 = vmatmul.bf16.gmra.mxu0 %v1496
      %v1572 = vpop.f32.mrf.mxu0
      %v1573 = vadd.f32 %v1556, %v1572
      %v1574 = vpop.f32.mrf.mxu0
      %1575 = vdwg.mxu0
      %v1576 = vpack.c.bf16 %v1510, %v1508
      %v1577 = vpack.c.bf16 %v1513, %v1513
      %v1578 = vpack.c.bf16 %v1540, %v1538
      %v1579 = vpack.c.bf16 %v1543, %v1543
      %v1581 = vsel %vm840, %v1576, 0
      %v1584 = vsel %vm840, %v1577, 0
      %v1587 = vsel %vm840, %v1578, 0
      %v1590 = vsel %vm840, %v1579, 0
      %1592 = vmatpush.bf16.xpose.msra.mxu0 0
      %1593 = vmatpush.bf16.xpose.msra.mxu0 0
      %1594 = vmatpush.bf16.xpose.msra.mxu0 0
      %1595 = vmatpush.bf16.xpose.msra.mxu0 0
      %1596 = vmatpush.bf16.xpose.msra.mxu0 0
      %1597 = vmatpush.bf16.xpose.msra.mxu0 0
      %1598 = vmatpush.bf16.xpose.msra.mxu0 %v1590
      %1599 = vmatpush.bf16.xpose.msra.mxu0 %v1587
      %1600 = vmatmul.bf16.gmra.mxu0 %v1581
      %v1601 = vpop.f32.mrf.mxu0
      %v1602 = vadd.f32 0.0, %v1601
      %v1603 = vpop.f32.mrf.mxu0
      %v1604 = vadd.f32 0.0, %v1603
      %1605 = vmatmul.bf16.gmra.mxu0 %v1584
      %v1606 = vpop.f32.mrf.mxu0
      %v1607 = vadd.f32 0.0, %v1606
      %v1608 = vpop.f32.mrf.mxu0
      %1609 = vdwg.mxu0
      %v1610 = vmul.f32 %v1602, 0.25
      %v1611 = vmul.f32 %v1604, 0.25
      %v1612 = vmul.f32 %v1607, 0.25
      %v1613 = vsel %vm874, %v1610, -inf
      %1614 = vmax.xlane.f32.xlu0 %v1613
      %v1615 = vpop.xlane.xlu0 %1614
      %v1616 = vsel %vm874, %v1611, -inf
      %1617 = vmax.xlane.f32.xlu0 %v1616
      %v1618 = vpop.xlane.xlu0 %1617
      %v1619 = vsel %vm881, %v1612, -inf
      %1620 = vmax.xlane.f32.xlu0 %v1619
      %v1621 = vpop.xlane.xlu0 %1620
      %v1622 = vsub.f32 %v1610, %v1615
      %v1623 = vsub.f32 %v1611, %v1618
      %v1624 = vsub.f32 %v1612, %v1621
      %v1625 = vmul.f32 %v1622, 1.442695
      %v1626 = vpow.pop %v1625
      %v1627 = vmul.f32 %v1623, 1.442695
      %v1628 = vpow.pop %v1627
      %v1629 = vmul.f32 %v1624, 1.442695
      %v1630 = vpow.pop %v1629
      %v1631 = vsel %vm874, %v1626, 0.0
      %1632 = vadd.xlane.f32.xlu0 %v1631
      %v1633 = vpop.xlane.xlu0 %1632
      %v1634 = vsel %vm874, %v1628, 0.0
      %1635 = vadd.xlane.f32.xlu0 %v1634
      %v1636 = vpop.xlane.xlu0 %1635
      %v1637 = vsel %vm881, %v1630, 0.0
      %1638 = vadd.xlane.f32.xlu0 %v1637
      %v1639 = vpop.xlane.xlu0 %1638
      %v1640 = vrcp.pop %v1633
      %v1641 = vrcp.pop %v1636
      %v1642 = vrcp.pop %v1639
      %v1643 = vmul.f32 %v1626, %v1640
      %v1644 = vmul.f32 %v1628, %v1641
      %v1645 = vmul.f32 %v1630, %v1642
      %v1646 = vpack.c.bf16 %v1644, %v1643
      %v1647 = vpack.c.bf16 %v1645, %v1645
      %v1648 = vpack.c.bf16 %v1570, %v1568
      %v1649 = vpack.c.bf16 %v1573, %v1573
      %v1651 = vsel %vm874, %v1646, 0
      %v1654 = vsel %vm874, %v1647, 0
      %v1657 = vand.u32 %v1649, %v920
      %1659 = vmatpush.bf16.msra.mxu0 0
      %1660 = vmatpush.bf16.msra.mxu0 0
      %1661 = vmatpush.bf16.msra.mxu0 0
      %1662 = vmatpush.bf16.msra.mxu0 0
      %1663 = vmatpush.bf16.msra.mxu0 0
      %1664 = vmatpush.bf16.msra.mxu0 0
      %1665 = vmatpush.bf16.msra.mxu0 %v1657
      %1666 = vmatpush.bf16.msra.mxu0 %v1648
      %1667 = vmatmul.bf16.gmra.mxu0 %v1651
      %v1668 = vpop.f32.mrf.mxu0
      %v1669 = vadd.f32 0.0, %v1668
      %v1670 = vpop.f32.mrf.mxu0
      %v1671 = vadd.f32 0.0, %v1670
      %1672 = vmatmul.bf16.gmra.mxu0 %v1654
      %v1673 = vpop.f32.mrf.mxu0
      %v1674 = vadd.f32 0.0, %v1673
      %v1675 = vpop.f32.mrf.mxu0
      %1676 = vdwg.mxu0
      %s1677 = scalar_lea.vmem %s9, 32
      %v1678 = vld [vmem:[%s1677] sm:$0xff]
      %v1679 = vld [vmem:[%s1677 + $0x8] sm:$0xff]
      %v1680 = vpack.c.bf16 %v1671, %v1669
      %v1681 = vpack.c.bf16 %v1674, %v1674
      %v1682 = vpack.c.bf16 %v1679, %v1678
      %s1683 = scalar_lea.vmem %s7, 224
      %v1684 = vld [vmem:[%s1683] sm:$0xff]
      %v1685 = vld [vmem:[%s1683 + $0x8] sm:$0xff]
      %v1686 = vld [vmem:[%s1683 + $0x10] sm:$0xff]
      %v1687 = vld [vmem:[%s1683 + $0x18] sm:$0xff]
      %s1688 = scalar_lea.vmem %s8, 7
      %v1689 = vld [vmem:[%s1688] sm:$0x1]
      %v1690 = vpack.c.bf16 %v1685, %v1684
      %v1691 = vpack.c.bf16 %v1687, %v1686
      %v1693 = vperm.slane %v1689, 0
      %1695 = vmatpush.bf16.msra.mxu0 0
      %1696 = vmatpush.bf16.msra.mxu0 0
      %1697 = vmatpush.bf16.msra.mxu0 0
      %1698 = vmatpush.bf16.msra.mxu0 0
      %1699 = vmatpush.bf16.msra.mxu0 0
      %1700 = vmatpush.bf16.msra.mxu0 0
      %1701 = vmatpush.bf16.msra.mxu0 %v1691
      %1702 = vmatpush.bf16.msra.mxu0 %v1690
      %1703 = vmatmul.bf16.gmra.mxu0 %v1493
      %v1704 = vpop.f32.mrf.mxu0
      %v1705 = vadd.f32 %v1693, %v1704
      %v1706 = vpop.f32.mrf.mxu0
      %v1707 = vadd.f32 %v1693, %v1706
      %1708 = vmatmul.bf16.gmra.mxu0 %v1496
      %v1709 = vpop.f32.mrf.mxu0
      %v1710 = vadd.f32 %v1693, %v1709
      %v1711 = vpop.f32.mrf.mxu0
      %1712 = vdwg.mxu0
      %s1713 = scalar_lea.vmem %s7, 288
      %v1714 = vld [vmem:[%s1713] sm:$0xff]
      %v1715 = vld [vmem:[%s1713 + $0x8] sm:$0xff]
      %v1716 = vld [vmem:[%s1713 + $0x10] sm:$0xff]
      %v1717 = vld [vmem:[%s1713 + $0x18] sm:$0xff]
      %s1718 = scalar_lea.vmem %s8, 9
      %v1719 = vld [vmem:[%s1718] sm:$0x1]
      %v1720 = vpack.c.bf16 %v1715, %v1714
      %v1721 = vpack.c.bf16 %v1717, %v1716
      %v1723 = vperm.slane %v1719, 0
      %1725 = vmatpush.bf16.msra.mxu0 0
      %1726 = vmatpush.bf16.msra.mxu0 0
      %1727 = vmatpush.bf16.msra.mxu0 0
      %1728 = vmatpush.bf16.msra.mxu0 0
      %1729 = vmatpush.bf16.msra.mxu0 0
      %1730 = vmatpush.bf16.msra.mxu0 0
      %1731 = vmatpush.bf16.msra.mxu0 %v1721
      %1732 = vmatpush.bf16.msra.mxu0 %v1720
      %1733 = vmatmul.bf16.gmra.mxu0 %v1493
      %v1734 = vpop.f32.mrf.mxu0
      %v1735 = vadd.f32 %v1723, %v1734
      %v1736 = vpop.f32.mrf.mxu0
      %v1737 = vadd.f32 %v1723, %v1736
      %1738 = vmatmul.bf16.gmra.mxu0 %v1496
      %v1739 = vpop.f32.mrf.mxu0
      %v1740 = vadd.f32 %v1723, %v1739
      %v1741 = vpop.f32.mrf.mxu0
      %1742 = vdwg.mxu0
      %s1743 = scalar_lea.vmem %s7, 352
      %v1744 = vld [vmem:[%s1743] sm:$0xff]
      %v1745 = vld [vmem:[%s1743 + $0x8] sm:$0xff]
      %v1746 = vld [vmem:[%s1743 + $0x10] sm:$0xff]
      %v1747 = vld [vmem:[%s1743 + $0x18] sm:$0xff]
      %s1748 = scalar_lea.vmem %s8, 11
      %v1749 = vld [vmem:[%s1748] sm:$0x1]
      %v1750 = vpack.c.bf16 %v1745, %v1744
      %v1751 = vpack.c.bf16 %v1747, %v1746
      %v1753 = vperm.slane %v1749, 0
      %1755 = vmatpush.bf16.msra.mxu0 0
      %1756 = vmatpush.bf16.msra.mxu0 0
      %1757 = vmatpush.bf16.msra.mxu0 0
      %1758 = vmatpush.bf16.msra.mxu0 0
      %1759 = vmatpush.bf16.msra.mxu0 0
      %1760 = vmatpush.bf16.msra.mxu0 0
      %1761 = vmatpush.bf16.msra.mxu0 %v1751
      %1762 = vmatpush.bf16.msra.mxu0 %v1750
      %1763 = vmatmul.bf16.gmra.mxu0 %v1493
      %v1764 = vpop.f32.mrf.mxu0
      %v1765 = vadd.f32 %v1753, %v1764
      %v1766 = vpop.f32.mrf.mxu0
      %v1767 = vadd.f32 %v1753, %v1766
      %1768 = vmatmul.bf16.gmra.mxu0 %v1496
      %v1769 = vpop.f32.mrf.mxu0
      %v1770 = vadd.f32 %v1753, %v1769
      %v1771 = vpop.f32.mrf.mxu0
      %1772 = vdwg.mxu0
      %v1773 = vpack.c.bf16 %v1707, %v1705
      %v1774 = vpack.c.bf16 %v1710, %v1710
      %v1775 = vpack.c.bf16 %v1737, %v1735
      %v1776 = vpack.c.bf16 %v1740, %v1740
      %v1778 = vsel %vm840, %v1773, 0
      %v1781 = vsel %vm840, %v1774, 0
      %v1784 = vsel %vm840, %v1775, 0
      %v1787 = vsel %vm840, %v1776, 0
      %1789 = vmatpush.bf16.xpose.msra.mxu0 0
      %1790 = vmatpush.bf16.xpose.msra.mxu0 0
      %1791 = vmatpush.bf16.xpose.msra.mxu0 0
      %1792 = vmatpush.bf16.xpose.msra.mxu0 0
      %1793 = vmatpush.bf16.xpose.msra.mxu0 0
      %1794 = vmatpush.bf16.xpose.msra.mxu0 0
      %1795 = vmatpush.bf16.xpose.msra.mxu0 %v1787
      %1796 = vmatpush.bf16.xpose.msra.mxu0 %v1784
      %1797 = vmatmul.bf16.gmra.mxu0 %v1778
      %v1798 = vpop.f32.mrf.mxu0
      %v1799 = vadd.f32 0.0, %v1798
      %v1800 = vpop.f32.mrf.mxu0
      %v1801 = vadd.f32 0.0, %v1800
      %1802 = vmatmul.bf16.gmra.mxu0 %v1781
      %v1803 = vpop.f32.mrf.mxu0
      %v1804 = vadd.f32 0.0, %v1803
      %v1805 = vpop.f32.mrf.mxu0
      %1806 = vdwg.mxu0
      %v1807 = vmul.f32 %v1799, 0.25
      %v1808 = vmul.f32 %v1801, 0.25
      %v1809 = vmul.f32 %v1804, 0.25
      %v1810 = vsel %vm874, %v1807, -inf
      %1811 = vmax.xlane.f32.xlu0 %v1810
      %v1812 = vpop.xlane.xlu0 %1811
      %v1813 = vsel %vm874, %v1808, -inf
      %1814 = vmax.xlane.f32.xlu0 %v1813
      %v1815 = vpop.xlane.xlu0 %1814
      %v1816 = vsel %vm881, %v1809, -inf
      %1817 = vmax.xlane.f32.xlu0 %v1816
      %v1818 = vpop.xlane.xlu0 %1817
      %v1819 = vsub.f32 %v1807, %v1812
      %v1820 = vsub.f32 %v1808, %v1815
      %v1821 = vsub.f32 %v1809, %v1818
      %v1822 = vmul.f32 %v1819, 1.442695
      %v1823 = vpow.pop %v1822
      %v1824 = vmul.f32 %v1820, 1.442695
      %v1825 = vpow.pop %v1824
      %v1826 = vmul.f32 %v1821, 1.442695
      %v1827 = vpow.pop %v1826
      %v1828 = vsel %vm874, %v1823, 0.0
      %1829 = vadd.xlane.f32.xlu0 %v1828
      %v1830 = vpop.xlane.xlu0 %1829
      %v1831 = vsel %vm874, %v1825, 0.0
      %1832 = vadd.xlane.f32.xlu0 %v1831
      %v1833 = vpop.xlane.xlu0 %1832
      %v1834 = vsel %vm881, %v1827, 0.0
      %1835 = vadd.xlane.f32.xlu0 %v1834
      %v1836 = vpop.xlane.xlu0 %1835
      %v1837 = vrcp.pop %v1830
      %v1838 = vrcp.pop %v1833
      %v1839 = vrcp.pop %v1836
      %v1840 = vmul.f32 %v1823, %v1837
      %v1841 = vmul.f32 %v1825, %v1838
      %v1842 = vmul.f32 %v1827, %v1839
      %v1843 = vpack.c.bf16 %v1841, %v1840
      %v1844 = vpack.c.bf16 %v1842, %v1842
      %v1845 = vpack.c.bf16 %v1767, %v1765
      %v1846 = vpack.c.bf16 %v1770, %v1770
      %v1848 = vsel %vm874, %v1843, 0
      %v1851 = vsel %vm874, %v1844, 0
      %v1854 = vand.u32 %v1846, %v920
      %1856 = vmatpush.bf16.msra.mxu0 0
      %1857 = vmatpush.bf16.msra.mxu0 0
      %1858 = vmatpush.bf16.msra.mxu0 0
      %1859 = vmatpush.bf16.msra.mxu0 0
      %1860 = vmatpush.bf16.msra.mxu0 0
      %1861 = vmatpush.bf16.msra.mxu0 0
      %1862 = vmatpush.bf16.msra.mxu0 %v1854
      %1863 = vmatpush.bf16.msra.mxu0 %v1845
      %1864 = vmatmul.bf16.gmra.mxu0 %v1848
      %v1865 = vpop.f32.mrf.mxu0
      %v1866 = vadd.f32 0.0, %v1865
      %v1867 = vpop.f32.mrf.mxu0
      %v1868 = vadd.f32 0.0, %v1867
      %1869 = vmatmul.bf16.gmra.mxu0 %v1851
      %v1870 = vpop.f32.mrf.mxu0
      %v1871 = vadd.f32 0.0, %v1870
      %v1872 = vpop.f32.mrf.mxu0
      %1873 = vdwg.mxu0
      %s1874 = scalar_lea.vmem %s9, 48
      %v1875 = vld [vmem:[%s1874] sm:$0xff]
      %v1876 = vld [vmem:[%s1874 + $0x8] sm:$0xff]
      %v1877 = vpack.c.bf16 %v1868, %v1866
      %v1878 = vpack.c.bf16 %v1871, %v1871
      %v1879 = vpack.c.bf16 %v1876, %v1875
      %v1881 = vsel %vm840, %v1877, 0
      %v1884 = vsel %vm840, %v1878, 0
      %1886 = vmatpush.bf16.msra.mxu0 0
      %1887 = vmatpush.bf16.msra.mxu0 0
      %1888 = vmatpush.bf16.msra.mxu0 0
      %1889 = vmatpush.bf16.msra.mxu0 0
      %1890 = vmatpush.bf16.msra.mxu0 0
      %1891 = vmatpush.bf16.msra.mxu0 0
      %1892 = vmatpush.bf16.msra.mxu0 0
      %1893 = vmatpush.bf16.msra.mxu0 %v1879
      %1894 = vmatmul.bf16.gmra.mxu0 %v1881
      %v1895 = vpop.f32.mrf.mxu0
      %v1896 = vadd.f32 0.0, %v1895
      %v1897 = vpop.f32.mrf.mxu0
      %v1898 = vadd.f32 0.0, %v1897
      %1899 = vmatmul.bf16.gmra.mxu0 %v1884
      %v1900 = vpop.f32.mrf.mxu0
      %v1901 = vadd.f32 0.0, %v1900
      %v1902 = vpop.f32.mrf.mxu0
      %1903 = vdwg.mxu0
      %v1905 = vsel %vm840, %v1680, 0
      %v1908 = vsel %vm840, %v1681, 0
      %1910 = vmatpush.bf16.msra.mxu0 0
      %1911 = vmatpush.bf16.msra.mxu0 0
      %1912 = vmatpush.bf16.msra.mxu0 0
      %1913 = vmatpush.bf16.msra.mxu0 0
      %1914 = vmatpush.bf16.msra.mxu0 0
      %1915 = vmatpush.bf16.msra.mxu0 0
      %1916 = vmatpush.bf16.msra.mxu0 0
      %1917 = vmatpush.bf16.msra.mxu0 %v1682
      %1918 = vmatmul.bf16.gmra.mxu0 %v1905
      %v1919 = vpop.f32.mrf.mxu0
      %v1920 = vadd.f32 %v1896, %v1919
      %v1921 = vpop.f32.mrf.mxu0
      %v1922 = vadd.f32 %v1898, %v1921
      %1923 = vmatmul.bf16.gmra.mxu0 %v1908
      %v1924 = vpop.f32.mrf.mxu0
      %v1925 = vadd.f32 %v1901, %v1924
      %v1926 = vpop.f32.mrf.mxu0
      %1927 = vdwg.mxu0
      %v1928 = vadd.f32 %v1393, %v1920
      %v1929 = vadd.f32 %v1394, %v1922
      %v1930 = vadd.f32 %v1395, %v1925
      %s1931 = scalar_lea.vmem %s10, 1
      %v1932 = vld [vmem:[%s1931] sm:$0x1]
      %v1934 = vperm.slane %v1932, 0
      %v1936 = vadd.f32 %v1928, %v1934
      %v1937 = vadd.f32 %v1929, %v1934
      %v1938 = vadd.f32 %v1930, %v1934
      %s1939 = scalar_lea.vmem %s11, 1
      %v1940 = vld [vmem:[%s1939] sm:$0x1]
      %s1941 = scalar_lea.vmem %s12, 1
      %v1942 = vld [vmem:[%s1941] sm:$0x1]
      %v1943 = vsel %vm653, %v1936, 0.0
      %1944 = vadd.xlane.f32.xlu0 %v1943
      %v1945 = vpop.xlane.xlu0 %1944
      %v1946 = vsel %vm653, %v1937, 0.0
      %1947 = vadd.xlane.f32.xlu0 %v1946
      %v1948 = vpop.xlane.xlu0 %1947
      %v1949 = vsel %vm660, %v1938, 0.0
      %1950 = vadd.xlane.f32.xlu0 %v1949
      %v1951 = vpop.xlane.xlu0 %1950
      %v1952 = vmul.f32 %v1945, %v670
      %v1953 = vmul.f32 %v1948, %v670
      %v1954 = vmul.f32 %v1951, %v670
      %v1955 = vsub.f32 %v1936, %v1952
      %v1956 = vsub.f32 %v1937, %v1953
      %v1957 = vsub.f32 %v1938, %v1954
      %v1958 = vmul.f32 %v1955, %v1955
      %v1959 = vmul.f32 %v1956, %v1956
      %v1960 = vmul.f32 %v1957, %v1957
      %v1961 = vsel %vm653, %v1958, 0.0
      %1962 = vadd.xlane.f32.xlu0 %v1961
      %v1963 = vpop.xlane.xlu0 %1962
      %v1964 = vsel %vm653, %v1959, 0.0
      %1965 = vadd.xlane.f32.xlu0 %v1964
      %v1966 = vpop.xlane.xlu0 %1965
      %v1967 = vsel %vm660, %v1960, 0.0
      %1968 = vadd.xlane.f32.xlu0 %v1967
      %v1969 = vpop.xlane.xlu0 %1968
      %v1970 = vmul.f32 %v1963, %v670
      %v1971 = vmul.f32 %v1966, %v670
      %v1972 = vmul.f32 %v1969, %v670
      %v1973 = vadd.f32 %v1970, 1e-06
      %v1974 = vadd.f32 %v1971, 1e-06
      %v1975 = vadd.f32 %v1972, 1e-06
      %v1976 = vrsqrt.pop %v1973
      %v1977 = vmul.f32 %v1976, %v1973
      %v1978 = vmul.f32 %v1977, %v1976
      %v1979 = vmul.f32 0.5, %v1978
      %v1980 = vsub.f32 1.5, %v1979
      %v1981 = vmul.f32 %v1976, %v1980
      %vm1982 = vweird.f32 %v1973
      %vm1983 = vweird.f32 %v1976
      %vm1984 = vmor %vm1982, %vm1983
      %v1985 = vsel %vm1984, %v1976, %v1981
      %v1986 = vrsqrt.pop %v1974
      %v1987 = vmul.f32 %v1986, %v1974
      %v1988 = vmul.f32 %v1987, %v1986
      %v1989 = vmul.f32 0.5, %v1988
      %v1990 = vsub.f32 1.5, %v1989
      %v1991 = vmul.f32 %v1986, %v1990
      %vm1992 = vweird.f32 %v1974
      %vm1993 = vweird.f32 %v1986
      %vm1994 = vmor %vm1992, %vm1993
      %v1995 = vsel %vm1994, %v1986, %v1991
      %v1996 = vrsqrt.pop %v1975
      %v1997 = vmul.f32 %v1996, %v1975
      %v1998 = vmul.f32 %v1997, %v1996
      %v1999 = vmul.f32 0.5, %v1998
      %v2000 = vsub.f32 1.5, %v1999
      %v2001 = vmul.f32 %v1996, %v2000
      %vm2002 = vweird.f32 %v1975
      %vm2003 = vweird.f32 %v1996
      %vm2004 = vmor %vm2002, %vm2003
      %v2005 = vsel %vm2004, %v1996, %v2001
      %v2006 = vmul.f32 %v1955, %v1985
      %v2007 = vmul.f32 %v1956, %v1995
      %v2008 = vmul.f32 %v1957, %v2005
      %v2010 = vperm.slane %v1940, 0
      %v2012 = vmul.f32 %v2006, %v2010
      %v2013 = vmul.f32 %v2007, %v2010
      %v2014 = vmul.f32 %v2008, %v2010
      %v2016 = vperm.slane %v1942, 0
      %v2018 = vadd.f32 %v2012, %v2016
      %v2019 = vadd.f32 %v2013, %v2016
      %v2020 = vadd.f32 %v2014, %v2016
      %s2021 = scalar_lea.vmem %s13, 32
      %v2022 = vld [vmem:[%s2021] sm:$0xff]
      %v2023 = vld [vmem:[%s2021 + $0x8] sm:$0xff]
      %v2024 = vld [vmem:[%s2021 + $0x10] sm:$0xff]
      %v2025 = vld [vmem:[%s2021 + $0x18] sm:$0xff]
      %s2026 = scalar_lea.vmem %s14, 1
      %v2027 = vld [vmem:[%s2026] sm:$0x1]
      %v2028 = vpack.c.bf16 %v2019, %v2018
      %v2029 = vpack.c.bf16 %v2020, %v2020
      %v2030 = vpack.c.bf16 %v2023, %v2022
      %v2031 = vpack.c.bf16 %v2025, %v2024
      %v2033 = vperm.slane %v2027, 0
      %v2036 = vsel %vm653, %v2028, 0
      %v2039 = vsel %vm653, %v2029, 0
      %2041 = vmatpush.bf16.msra.mxu0 0
      %2042 = vmatpush.bf16.msra.mxu0 0
      %2043 = vmatpush.bf16.msra.mxu0 0
      %2044 = vmatpush.bf16.msra.mxu0 0
      %2045 = vmatpush.bf16.msra.mxu0 0
      %2046 = vmatpush.bf16.msra.mxu0 0
      %2047 = vmatpush.bf16.msra.mxu0 %v2031
      %2048 = vmatpush.bf16.msra.mxu0 %v2030
      %2049 = vmatmul.bf16.gmra.mxu0 %v2036
      %v2050 = vpop.f32.mrf.mxu0
      %v2051 = vadd.f32 %v2033, %v2050
      %v2052 = vpop.f32.mrf.mxu0
      %v2053 = vadd.f32 %v2033, %v2052
      %2054 = vmatmul.bf16.gmra.mxu0 %v2039
      %v2055 = vpop.f32.mrf.mxu0
      %v2056 = vadd.f32 %v2033, %v2055
      %v2057 = vpop.f32.mrf.mxu0
      %2058 = vdwg.mxu0
      %v2059 = vmul.f32 %v2051, %v2051
      %v2060 = vmul.f32 %v2053, %v2053
      %v2061 = vmul.f32 %v2056, %v2056
      %v2062 = vmul.f32 %v2051, %v2059
      %v2063 = vmul.f32 %v2053, %v2060
      %v2064 = vmul.f32 %v2056, %v2061
      %v2065 = vmul.f32 %v2062, 0.044715
      %v2066 = vmul.f32 %v2063, 0.044715
      %v2067 = vmul.f32 %v2064, 0.044715
      %v2068 = vadd.f32 %v2051, %v2065
      %v2069 = vadd.f32 %v2053, %v2066
      %v2070 = vadd.f32 %v2056, %v2067
      %v2071 = vmul.f32 %v2068, 0.7978846
      %v2072 = vmul.f32 %v2069, 0.7978846
      %v2073 = vmul.f32 %v2070, 0.7978846
      %v2074 = vtanh.pop %v2071
      %v2075 = vtanh.pop %v2072
      %v2076 = vtanh.pop %v2073
      %v2077 = vadd.f32 %v2074, 1.0
      %v2078 = vadd.f32 %v2075, 1.0
      %v2079 = vadd.f32 %v2076, 1.0
      %v2080 = vmul.f32 %v2077, 0.5
      %v2081 = vmul.f32 %v2078, 0.5
      %v2082 = vmul.f32 %v2079, 0.5
      %v2083 = vmul.f32 %v2051, %v2080
      %v2084 = vmul.f32 %v2053, %v2081
      %v2085 = vmul.f32 %v2056, %v2082
      %s2086 = scalar_lea.vmem %s15, 128
      %v2087 = vld [vmem:[%s2086] sm:$0xff]
      %v2088 = vld [vmem:[%s2086 + $0x8] sm:$0xff]
      %v2089 = vld [vmem:[%s2086 + $0x10] sm:$0xff]
      %v2090 = vld [vmem:[%s2086 + $0x18] sm:$0xff]
      %v2091 = vld [vmem:[%s2086 + $0x20] sm:$0xff]
      %v2092 = vld [vmem:[%s2086 + $0x28] sm:$0xff]
      %v2093 = vld [vmem:[%s2086 + $0x30] sm:$0xff]
      %v2094 = vld [vmem:[%s2086 + $0x38] sm:$0xff]
      %v2095 = vld [vmem:[%s2086 + $0x40] sm:$0xff]
      %v2096 = vld [vmem:[%s2086 + $0x48] sm:$0xff]
      %v2097 = vld [vmem:[%s2086 + $0x50] sm:$0xff]
      %v2098 = vld [vmem:[%s2086 + $0x58] sm:$0xff]
      %v2099 = vld [vmem:[%s2086 + $0x60] sm:$0xff]
      %v2100 = vld [vmem:[%s2086 + $0x68] sm:$0xff]
      %v2101 = vld [vmem:[%s2086 + $0x70] sm:$0xff]
      %v2102 = vld [vmem:[%s2086 + $0x78] sm:$0xff]
      %s2103 = scalar_lea.vmem %s16, 1
      %v2104 = vld [vmem:[%s2103] sm:$0x1]
      %v2105 = vpack.c.bf16 %v2084, %v2083
      %v2106 = vpack.c.bf16 %v2085, %v2085
      %v2107 = vpack.c.bf16 %v2088, %v2087
      %v2108 = vpack.c.bf16 %v2090, %v2089
      %v2109 = vpack.c.bf16 %v2092, %v2091
      %v2110 = vpack.c.bf16 %v2094, %v2093
      %v2111 = vpack.c.bf16 %v2096, %v2095
      %v2112 = vpack.c.bf16 %v2098, %v2097
      %v2113 = vpack.c.bf16 %v2100, %v2099
      %v2114 = vpack.c.bf16 %v2102, %v2101
      %v2116 = vperm.slane %v2104, 0
      %2118 = vmatpush.bf16.msra.mxu0 %v2114
      %2119 = vmatpush.bf16.msra.mxu0 %v2113
      %2120 = vmatpush.bf16.msra.mxu0 %v2112
      %2121 = vmatpush.bf16.msra.mxu0 %v2111
      %2122 = vmatpush.bf16.msra.mxu0 %v2110
      %2123 = vmatpush.bf16.msra.mxu0 %v2109
      %2124 = vmatpush.bf16.msra.mxu0 %v2108
      %2125 = vmatpush.bf16.msra.mxu0 %v2107
      %2126 = vmatmul.bf16.gmra.mxu0 %v2105
      %v2127 = vpop.f32.mrf.mxu0
      %v2128 = vadd.f32 %v2116, %v2127
      %v2129 = vpop.f32.mrf.mxu0
      %2130 = vmatmul.bf16.gmra.mxu0 %v2106
      %v2131 = vpop.f32.mrf.mxu0
      %v2132 = vpop.f32.mrf.mxu0
      %2133 = vdwg.mxu0
      %v2134 = vadd.f32 %v1936, %v2128
      %v2135 = vld [vmem:[%s17] sm:$0x1]
      %v2136 = vld [vmem:[%s18] sm:$0x1]
      %v2137 = vsel %vm660, %v2134, 0.0
      %2138 = vadd.xlane.f32.xlu0 %v2137
      %v2139 = vpop.xlane.xlu0 %2138
      %v2140 = vmul.f32 %v2139, %v670
      %v2141 = vsub.f32 %v2134, %v2140
      %v2142 = vmul.f32 %v2141, %v2141
      %v2143 = vsel %vm660, %v2142, 0.0
      %2144 = vadd.xlane.f32.xlu0 %v2143
      %v2145 = vpop.xlane.xlu0 %2144
      %v2146 = vmul.f32 %v2145, %v670
      %v2147 = vadd.f32 %v2146, 1e-06
      %v2148 = vrsqrt.pop %v2147
      %v2149 = vmul.f32 %v2148, %v2147
      %v2150 = vmul.f32 %v2149, %v2148
      %v2151 = vmul.f32 0.5, %v2150
      %v2152 = vsub.f32 1.5, %v2151
      %v2153 = vmul.f32 %v2148, %v2152
      %vm2154 = vweird.f32 %v2147
      %vm2155 = vweird.f32 %v2148
      %vm2156 = vmor %vm2154, %vm2155
      %v2157 = vsel %vm2156, %v2148, %v2153
      %v2158 = vmul.f32 %v2141, %v2157
      %v2159 = vmul.f32 %v2158, %v2135
      %v2160 = vadd.f32 %v2159, %v2136
      %2161 = vst.msk [vmem:[%s598] sm:$0x1] %vm660, %v2160
      %p2162 = scmp.lt.s32.totalorder %s30, 1
      %s2163 = scalar_select %p2162, %s30, 1
      %s2164 = scalar_lea.vmem %s19, %s2163
      // Predicated region
      $region97: #{clip_forward.3} parent=95 // pred_check
        %p2165 = pneg %p452
      $region98: #{clip_forward.3} parent=95 // pred_check_branch
        %2167 = sbr.rel (%p2165) target = $region100
      $region99: #{clip_forward.3} parent=95 // pred_region
        _
      $region100: #{clip_forward.3} parent=95 // pred_fallthru
        _
    $region96: #{clip_forward.3} parent=5 // pred_fallthru
      _
    %p2168 = scmp.le.s32.totalorder 2, %s25
    // Predicated region
    $region101: #{clip_forward.3} parent=5 // pred_check
      %p2169 = pneg %p2168
    $region102: #{clip_forward.3} parent=5 // pred_check_branch
      %2171 = sbr.rel (%p2169) target = $region104
    $region103: #{clip_forward.3} parent=5 // pred_region
      %s2172 = ssub.s32 %s25, 2
      // Predicated region
      $region105: #{clip_forward.3} parent=103 // pred_check
        %p2173 = pneg %p458
      $region106: #{clip_forward.3} parent=103 // pred_check_branch
        %2175 = sbr.rel (%p2173) target = $region108
      $region107: #{clip_forward.3} parent=103 // pred_region
        %p2176 = scmp.lt.s32.totalorder %s31, 1
        %s2177 = scalar_select %p2176, %s31, 1
        %s2178 = scalar_lea.vmem %s19, %s2177
      $region108: #{clip_forward.3} parent=103 // pred_fallthru
        _
    $region104: #{clip_forward.3} parent=5 // pred_fallthru
      _
  $region6: #{clip_forward.3} parent=0 // loop_footer
    %s29 = sadd.s32 1, %s25
  $region7: #{clip_forward.3} parent=0 // loop_footer_branch
    %24 = sbr.rel target = $region3
  $region8: #{clip_forward.3} parent=0 // loop_exit
    _

</llo_original>
